<compile_context>
chip_gen: v6e
topology: v6e:2x2x1
jax: 0.10.0
libtpu: 0.0.40
codegen_flags: <defaults>
</compile_context>

<pallas_src>
import functools
import math

import jax
import jax.numpy as jnp
from jax.experimental import pallas as pl
from jax.experimental.pallas import tpu as pltpu


def _round_up(x, m):
    return (x + m - 1) // m * m


def _vmem_budget_bytes():
    """Generation-aware VMEM cap (headroom left for Mosaic internal scratch)."""
    cap = 128 * 2**20
    try:
        info = pltpu.get_tpu_info()
        cap = int(getattr(info, "vmem_capacity_bytes", cap) or cap)
    except Exception:
        pass
    return max(16 * 2**20, (cap * 3) // 4)


def _make_shared_conv_kernel(*, n_branches, H, W, C_in, Cx, C_grp, C_out_pad,
                             K, taps, tap_group, n_grp, stride, dilations,
                             pad_max, h_top, w_left, Hp, Wp, H_out, W_out,
                             compute_dtype, out_dtype):
    M = H_out * W_out

    def tap_window(xpad_ref, t, d, p):
        kh, kw = t // K, t % K
        h0 = h_top - p + kh * d          # static ints (branch dispatch is static)
        w0 = w_left - p + kw * d
        if stride == 1:
            return xpad_ref[h0:h0 + H_out, w0:w0 + W_out, :]
        return xpad_ref[pl.ds(h0, H_out, stride=stride),
                        pl.ds(w0, W_out, stride=stride), :]

    def kernel(x_ref, w_ref, o_ref, xpad_ref, *acc_scratch):
        acc_ref = acc_scratch[0] if acc_scratch else None
        b = pl.program_id(1)

        # ---- 1. Border-only zeroing of the halo (O(halo), megacore-safe). ----
        if pad_max > 0:
            xpad_ref[0:h_top, :, :] = jnp.zeros((h_top, Wp, Cx), compute_dtype)
            xpad_ref[h_top + H:Hp, :, :] = jnp.zeros(
                (Hp - h_top - H, Wp, Cx), compute_dtype)
            xpad_ref[h_top:h_top + H, 0:w_left, :] = jnp.zeros(
                (H, w_left, Cx), compute_dtype)
            xpad_ref[h_top:h_top + H, w_left + W:Wp, :] = jnp.zeros(
                (H, Wp - w_left - W, Cx), compute_dtype)

        # ---- 2. Place the raw block into the padded scratch (one pass). ----
        # TODO(synk): do this placement with a manual DMA into
        # xpad_ref.at[interior] (P4 double buffering) to free the vector-store
        # slot; the in-kernel cast to compute_dtype currently blocks that.
        xblk = x_ref[0, 0].astype(compute_dtype)            # (H, W, C_in)
        if Cx != C_in:
            xblk = jnp.concatenate(
                [xblk, jnp.zeros((H, W, Cx - C_in), compute_dtype)], axis=-1)
        xpad_ref[h_top:h_top + H, w_left:w_left + W, :] = xblk

        # ---- 3. Per-branch matmuls (tap offsets are compile-time constants).
        # TODO(synk): collapse this static dispatch via scalar-prefetched
        # dilations + dynamic pl.ds window starts once dynamic sublane-offset
        # windows are validated on all target generations.
        def run_branch(bi):
            d = dilations[bi]
            p = d if K == 3 else 0       # PyTorch: padding = dilation iff K==3
            for g in range(n_grp):
                if tap_group == 1:
                    lhs3 = tap_window(xpad_ref, g, d, p)     # (H_out, W_out, C_grp)
                else:
                    parts = [tap_window(xpad_ref, g * tap_group + j, d, p)
                             for j in range(tap_group)
                             if g * tap_group + j < taps]
                    lane_pad = C_grp - len(parts) * C_in
                    if lane_pad:
                        parts.append(jnp.zeros((H_out, W_out, lane_pad),
                                               compute_dtype))
                    lhs3 = jnp.concatenate(parts, axis=-1)
                lhs = lhs3.reshape(M, C_grp)
                contrib = jnp.dot(lhs, w_ref[g],
                                  preferred_element_type=jnp.float32)
                if n_grp == 1:
                    o_ref[0, 0] = contrib.reshape(
                        H_out, W_out, C_out_pad).astype(out_dtype)
                elif g == 0:
                    acc_ref[...] = contrib
                else:
                    acc_ref[...] += contrib
            if n_grp > 1:
                o_ref[0, 0] = acc_ref[...].reshape(
                    H_out, W_out, C_out_pad).astype(out_dtype)

        for bi in range(n_branches):
            pl.when(b == bi)(functools.partial(run_branch, bi))

    return kernel


def shared_conv_pallas(xs_nhwc, w_hwio, *, kernel_size, stride, dilations,
                       compute_dtype=None):
    """Fused shared-weight dilated conv over all branches.

    xs_nhwc: list of (N, H, W, C_in) arrays (all the same shape).
    w_hwio:  (K, K, C_in, C_out) shared weight.
    Returns a list of (N, H_out, W_out, C_out) arrays, one per branch.
    """
    n_branches = len(xs_nhwc)
    for xb in xs_nhwc[1:]:
        assert xb.shape == xs_nhwc[0].shape, "branches must share input shape"
    x = jnp.stack(xs_nhwc, axis=0)                   # (n_branches, N, H, W, C_in)
    _, N, H, W, C_in = x.shape

    K = kernel_size
    assert K in (1, 3)
    taps = K * K
    C_out = w_hwio.shape[-1]
    out_dtype = jnp.dtype(xs_nhwc[0].dtype)
    cdtype = jnp.dtype(compute_dtype) if compute_dtype is not None else out_dtype
    dilations = tuple(int(d) for d in dilations)[:n_branches]

    # Output geometry ("same" conv: padding == dilation for K==3, 0 for K==1).
    H_out = (H - 1) // stride + 1
    W_out = (W - 1) // stride + 1
    M = H_out * W_out

    # Padded-scratch geometry: halo = max(dilation); interior placed at a
    # sublane-aligned W offset so the interior copy is a clean tiled store.
    pad_max = max(dilations) if K == 3 else 0
    h_top = pad_max
    w_left = _round_up(pad_max, 8)
    Hp = h_top + H + pad_max
    Wp = w_left + W + pad_max

    # Contraction packing: tap-accumulate for large C_in; pack multiple taps
    # into one 128-lane contraction group when C_in is small.
    if C_in >= 128:
        tap_group = 1
    else:
        tap_group = min(taps, max(1, 128 // C_in))
    C_grp = _round_up(tap_group * C_in, 128)         # contraction lanes / matmul
    n_grp = -(-taps // tap_group)                    # matmuls per output block
    Cx = C_grp if tap_group == 1 else C_in           # xpad scratch lane width
    C_out_pad = _round_up(C_out, 128)                # lane-dense output store

    # Weight packed once in the wrapper: (n_grp, C_grp, C_out_pad), zero-padded.
    w_flat = w_hwio.astype(cdtype).reshape(taps, C_in, C_out)
    w_flat = jnp.pad(w_flat, ((0, n_grp * tap_group - taps), (0, 0), (0, 0)))
    w_grp = w_flat.reshape(n_grp, tap_group * C_in, C_out)
    w_grp = jnp.pad(w_grp, ((0, 0), (0, C_grp - tap_group * C_in),
                            (0, C_out_pad - C_out)))

    kernel = _make_shared_conv_kernel(
        n_branches=n_branches, H=H, W=W, C_in=C_in, Cx=Cx, C_grp=C_grp,
        C_out_pad=C_out_pad, K=K, taps=taps, tap_group=tap_group, n_grp=n_grp,
        stride=stride, dilations=dilations, pad_max=pad_max, h_top=h_top,
        w_left=w_left, Hp=Hp, Wp=Wp, H_out=H_out, W_out=W_out,
        compute_dtype=cdtype, out_dtype=out_dtype)

    in_specs = [
        # One branch block per grid step: index_map picks (branch, image).
        pl.BlockSpec((1, 1, H, W, C_in), lambda n, b: (b, n, 0, 0, 0)),
        # Shared packed weight: constant index_map -> fetched once, resident.
        pl.BlockSpec((n_grp, C_grp, C_out_pad), lambda n, b: (0, 0, 0)),
    ]
    out_spec = pl.BlockSpec((1, 1, H_out, W_out, C_out_pad),
                            lambda n, b: (n, b, 0, 0, 0))

    scratch_shapes = [pltpu.VMEM((Hp, Wp, Cx), cdtype)]
    if n_grp > 1:
        scratch_shapes.append(pltpu.VMEM((M, C_out_pad), jnp.float32))

    # Rough VMEM footprint (lane/sublane padded, double-buffered blocks).
    def _padded_bytes(shape, dt):
        s = list(shape)
        s[-1] = _round_up(s[-1], 128)
        if len(s) >= 2:
            s[-2] = _round_up(s[-2], 8)
        return math.prod(s) * jnp.dtype(dt).itemsize

    est = (2 * (_padded_bytes((1, 1, H, W, C_in), out_dtype)
                + _padded_bytes((n_grp, C_grp, C_out_pad), cdtype)
                + _padded_bytes((1, 1, H_out, W_out, C_out_pad), out_dtype))
           + _padded_bytes((Hp, Wp, Cx), cdtype)
           + (_padded_bytes((M, C_out_pad), jnp.float32) if n_grp > 1 else 0)
           + 2 * _padded_bytes((M, C_grp), cdtype)
           + 2 * _padded_bytes((M, C_out_pad), jnp.float32))
    vmem_limit = (None if est <= 12 * 2**20
                  else min(int(est * 3) // 2, _vmem_budget_bytes()))

    # TODO(synk): for large activations add a spatial row-block grid axis with
    # a halo'd manual DMA (P4) so xpad / output blocks fit v7x's 64 MiB VMEM;
    # at demo shapes whole-image blocks are a few hundred KiB.
    out = pl.pallas_call(
        kernel,
        out_shape=jax.ShapeDtypeStruct(
            (N, n_branches, H_out, W_out, C_out_pad), out_dtype),
        grid_spec=pltpu.PrefetchScalarGridSpec(
            num_scalar_prefetch=0,
            grid=(N, n_branches),
            in_specs=in_specs,
            out_specs=out_spec,
            scratch_shapes=scratch_shapes),
        compiler_params=pltpu.CompilerParams(
            dimension_semantics=("parallel", "parallel"),
            vmem_limit_bytes=vmem_limit),
    )(x, w_grp)

    # NOTE: if the consumer accepts NHWC channel-padded outputs, return `out`
    # directly and skip these XLA un-pad / layout passes.
    return [out[:, i, :, :, :C_out] for i in range(n_branches)]


class SharedConvPallas:
    """JAX/Pallas SharedConv: one shared weight, one dilation per branch."""

    def __init__(self, dim_in, dim_out, kernel_size, stride, dilation, key,
                 compute_dtype=None):
        assert kernel_size in (1, 3)
        self.kernel_size = kernel_size
        self.stride = stride
        self.dilation = tuple(dilation)
        self.compute_dtype = compute_dtype
        fan_in = dim_in * kernel_size * kernel_size
        bound = 1.0 / (fan_in ** 0.5)
        # PyTorch OIHW layout: (dim_out, dim_in, K, K)
        self.weight_oihw = jax.random.uniform(
            key, (dim_out, dim_in, kernel_size, kernel_size),
            minval=-bound, maxval=bound, dtype=jnp.float32)

    def __call__(self, xs_nchw):
        n = len(xs_nchw)
        assert n <= len(self.dilation)
        w_hwio = jnp.transpose(self.weight_oihw, (2, 3, 1, 0))  # (K,K,Cin,Cout)
        xs_nhwc = [jnp.transpose(xb, (0, 2, 3, 1)) for xb in xs_nchw]
        ys_nhwc = shared_conv_pallas(
            xs_nhwc, w_hwio, kernel_size=self.kernel_size, stride=self.stride,
            dilations=self.dilation[:n], compute_dtype=self.compute_dtype)
        return [jnp.transpose(y, (0, 3, 1, 2)) for y in ys_nhwc]  # back to NCHW


def _reference_branch(x_nchw, w_oihw, kernel_size, stride, dilation):
    pad = dilation if kernel_size == 3 else 0
    return jax.lax.conv_general_dilated(
        x_nchw, w_oihw,
        window_strides=(stride, stride),
        padding=((pad, pad), (pad, pad)),
        rhs_dilation=(dilation, dilation),
        dimension_numbers=("NCHW", "OIHW", "NCHW"))


def _run_case(case_idx, *, N, C_in, C_out, H, W, kernel_size, stride,
              dilation, compute_dtype=None, atol=1e-4, rtol=1e-4):
    base = jax.random.fold_in(jax.random.PRNGKey(0), case_idx)
    k_w, k_x = jax.random.split(base)
    module = SharedConvPallas(C_in, C_out, kernel_size, stride, dilation, k_w,
                              compute_dtype=compute_dtype)
    xs = [jax.random.normal(jax.random.fold_in(k_x, i), (N, C_in, H, W),
                            dtype=jnp.float32)
          for i in range(len(dilation))]
    outs = module(xs)
    outs = [jax.block_until_ready(o) for o in outs]
    for i in range(len(dilation)):
        ref = _reference_branch(xs[i], module.weight_oihw, kernel_size, stride,
                                dilation[i])
        assert outs[i].shape == ref.shape, (case_idx, i, outs[i].shape, ref.shape)
        err = float(jnp.max(jnp.abs(outs[i] - ref)))
        assert jnp.allclose(outs[i], ref, atol=atol, rtol=rtol), (
            f"case {case_idx} branch {i}: max abs err {err}")


if __name__ == "__main__":
    # 1. Base config (module docstring): K=3, stride=1, dilation=[1,2,3].
    _run_case(0, N=2, C_in=4, C_out=8, H=16, W=16, kernel_size=3, stride=1,
              dilation=[1, 2, 3])
    # 2. Strided conv (exercises strided pl.ds windows).
    _run_case(1, N=2, C_in=4, C_out=8, H=16, W=16, kernel_size=3, stride=2,
              dilation=[1, 2, 3])
    # 3. 1x1 conv path (no halo, single tap).
    _run_case(2, N=2, C_in=4, C_out=8, H=16, W=16, kernel_size=1, stride=1,
              dilation=[1, 1, 1])
    # 4. Wide C_in -> tap-accumulate path (per-tap matmuls + f32 VMEM acc).
    _run_case(3, N=1, C_in=128, C_out=8, H=16, W=16, kernel_size=3, stride=1,
              dilation=[1, 2], atol=1e-2, rtol=1e-2)
    # 5. bf16 MXU path with f32 accumulation (loose tolerance).
    _run_case(4, N=2, C_in=4, C_out=8, H=16, W=16, kernel_size=3, stride=1,
              dilation=[1, 2, 3], compute_dtype=jnp.bfloat16, atol=5e-2,
              rtol=5e-2)
    print("KERNEL_OK")
</pallas_src>

<mosaic_0001>
module attributes {stable_mosaic.version = 11 : i64} {
  func.func @kernel(%arg0: i32, %arg1: i32, %arg2: memref<1x1x16x16x4xf32, #tpu.memory_space<vmem>>, %arg3: memref<1x128x128xf32, #tpu.memory_space<vmem>>, %arg4: memref<1x1x16x16x128xf32, #tpu.memory_space<vmem>>, %arg5: memref<22x27x4xf32, #tpu.memory_space<vmem>>) attributes {dimension_semantics = [#tpu.dimension_semantics<parallel>, #tpu.dimension_semantics<parallel>], iteration_bounds = array<i64: 2, 3>, scalar_prefetch = 0 : i64, scratch_operands = 1 : i64, tpu.core_type = #tpu.core_type<tc>, window_params = [{transform_indices = @transform_0, window_bounds = array<i64: 1, 1, 16, 16, 4>}, {pipeline_mode = #tpu.pipeline_mode<synchronous>, transform_indices = @transform_1, window_bounds = array<i64: 1, 128, 128>}, {transform_indices = @transform_2, window_bounds = array<i64: 1, 1, 16, 16, 128>}]} {
    %cst = arith.constant 0.000000e+00 : f32
    %0 = vector.broadcast %cst : f32 to vector<3x27x4xf32>
    %c0 = arith.constant 0 : index
    %c0_0 = arith.constant 0 : index
    %c0_1 = arith.constant 0 : index
    %1 = vector.load %arg5[%c0, %c0_0, %c0_1] : memref<22x27x4xf32, #tpu.memory_space<vmem>>, vector<3x27x4xf32>
    tpu.vector_store %arg5[%c0, %c0_0, %c0_1], %0 {strides = array<i32>} : memref<22x27x4xf32, #tpu.memory_space<vmem>>, vector<3x27x4xf32>,
    %cst_2 = arith.constant 0.000000e+00 : f32
    %2 = vector.broadcast %cst_2 : f32 to vector<3x27x4xf32>
    %c19 = arith.constant 19 : index
    %c0_3 = arith.constant 0 : index
    %c0_4 = arith.constant 0 : index
    %3 = vector.load %arg5[%c19, %c0_3, %c0_4] : memref<22x27x4xf32, #tpu.memory_space<vmem>>, vector<3x27x4xf32>
    tpu.vector_store %arg5[%c19, %c0_3, %c0_4], %2 {strides = array<i32>} : memref<22x27x4xf32, #tpu.memory_space<vmem>>, vector<3x27x4xf32>,
    %cst_5 = arith.constant 0.000000e+00 : f32
    %4 = vector.broadcast %cst_5 : f32 to vector<16x8x4xf32>
    %c3 = arith.constant 3 : index
    %c0_6 = arith.constant 0 : index
    %c0_7 = arith.constant 0 : index
    %5 = vector.load %arg5[%c3, %c0_6, %c0_7] : memref<22x27x4xf32, #tpu.memory_space<vmem>>, vector<16x8x4xf32>
    tpu.vector_store %arg5[%c3, %c0_6, %c0_7], %4 {strides = array<i32>} : memref<22x27x4xf32, #tpu.memory_space<vmem>>, vector<16x8x4xf32>,
    %cst_8 = arith.constant 0.000000e+00 : f32
    %6 = vector.broadcast %cst_8 : f32 to vector<16x3x4xf32>
    %c3_9 = arith.constant 3 : index
    %c24 = arith.constant 24 : index
    %c0_10 = arith.constant 0 : index
    %7 = vector.load %arg5[%c3_9, %c24, %c0_10] : memref<22x27x4xf32, #tpu.memory_space<vmem>>, vector<16x3x4xf32>
    tpu.vector_store %arg5[%c3_9, %c24, %c0_10], %6 {strides = array<i32>} : memref<22x27x4xf32, #tpu.memory_space<vmem>>, vector<16x3x4xf32>,
    %c0_11 = arith.constant 0 : index
    %c0_12 = arith.constant 0 : index
    %c0_13 = arith.constant 0 : index
    %c0_14 = arith.constant 0 : index
    %c0_15 = arith.constant 0 : index
    %8 = vector.load %arg2[%c0_11, %c0_12, %c0_13, %c0_14, %c0_15] : memref<1x1x16x16x4xf32, #tpu.memory_space<vmem>>, vector<1x1x16x16x4xf32>
    %9 = vector.shape_cast %8 : vector<1x1x16x16x4xf32> to vector<16x16x4xf32>
    %c3_16 = arith.constant 3 : index
    %c8 = arith.constant 8 : index
    %c0_17 = arith.constant 0 : index
    %10 = vector.load %arg5[%c3_16, %c8, %c0_17] : memref<22x27x4xf32, #tpu.memory_space<vmem>>, vector<16x16x4xf32>
    tpu.vector_store %arg5[%c3_16, %c8, %c0_17], %9 {strides = array<i32>} : memref<22x27x4xf32, #tpu.memory_space<vmem>>, vector<16x16x4xf32>,
    %c0_i32 = arith.constant 0 : i32
    %11 = arith.cmpi eq, %arg1, %c0_i32 : i32
    %12 = arith.extui %11 : i1 to i32
    %c0_i32_18 = arith.constant 0 : i32
    %13 = arith.cmpi ne, %12, %c0_i32_18 : i32
    scf.if %13 {
      %c2 = arith.constant 2 : index
      %c7 = arith.constant 7 : index
      %c0_21 = arith.constant 0 : index
      %20 = vector.load %arg5[%c2, %c7, %c0_21] : memref<22x27x4xf32, #tpu.memory_space<vmem>>, vector<16x16x4xf32>
      %c2_22 = arith.constant 2 : index
      %c8_23 = arith.constant 8 : index
      %c0_24 = arith.constant 0 : index
      %21 = vector.load %arg5[%c2_22, %c8_23, %c0_24] : memref<22x27x4xf32, #tpu.memory_space<vmem>>, vector<16x16x4xf32>
      %c2_25 = arith.constant 2 : index
      %c9 = arith.constant 9 : index
      %c0_26 = arith.constant 0 : index
      %22 = vector.load %arg5[%c2_25, %c9, %c0_26] : memref<22x27x4xf32, #tpu.memory_space<vmem>>, vector<16x16x4xf32>
      %c3_27 = arith.constant 3 : index
      %c7_28 = arith.constant 7 : index
      %c0_29 = arith.constant 0 : index
      %23 = vector.load %arg5[%c3_27, %c7_28, %c0_29] : memref<22x27x4xf32, #tpu.memory_space<vmem>>, vector<16x16x4xf32>
      %c3_30 = arith.constant 3 : index
      %c8_31 = arith.constant 8 : index
      %c0_32 = arith.constant 0 : index
      %24 = vector.load %arg5[%c3_30, %c8_31, %c0_32] : memref<22x27x4xf32, #tpu.memory_space<vmem>>, vector<16x16x4xf32>
      %c3_33 = arith.constant 3 : index
      %c9_34 = arith.constant 9 : index
      %c0_35 = arith.constant 0 : index
      %25 = vector.load %arg5[%c3_33, %c9_34, %c0_35] : memref<22x27x4xf32, #tpu.memory_space<vmem>>, vector<16x16x4xf32>
      %c4 = arith.constant 4 : index
      %c7_36 = arith.constant 7 : index
      %c0_37 = arith.constant 0 : index
      %26 = vector.load %arg5[%c4, %c7_36, %c0_37] : memref<22x27x4xf32, #tpu.memory_space<vmem>>, vector<16x16x4xf32>
      %c4_38 = arith.constant 4 : index
      %c8_39 = arith.constant 8 : index
      %c0_40 = arith.constant 0 : index
      %27 = vector.load %arg5[%c4_38, %c8_39, %c0_40] : memref<22x27x4xf32, #tpu.memory_space<vmem>>, vector<16x16x4xf32>
      %c4_41 = arith.constant 4 : index
      %c9_42 = arith.constant 9 : index
      %c0_43 = arith.constant 0 : index
      %28 = vector.load %arg5[%c4_41, %c9_42, %c0_43] : memref<22x27x4xf32, #tpu.memory_space<vmem>>, vector<16x16x4xf32>
      %cst_44 = arith.constant 0.000000e+00 : f32
      %29 = vector.broadcast %cst_44 : f32 to vector<16x16x92xf32>
      %30 = tpu.concatenate %20, %21, %22, %23, %24, %25, %26, %27, %28, %29 in 2 : vector<16x16x4xf32>, vector<16x16x4xf32>, vector<16x16x4xf32>, vector<16x16x4xf32>, vector<16x16x4xf32>, vector<16x16x4xf32>, vector<16x16x4xf32>, vector<16x16x4xf32>, vector<16x16x4xf32>, vector<16x16x92xf32> -> vector<16x16x128xf32>
      %31 = vector.shape_cast %30 : vector<16x16x128xf32> to vector<256x128xf32>
      %c0_45 = arith.constant 0 : index
      %c0_46 = arith.constant 0 : index
      %c0_47 = arith.constant 0 : index
      %32 = vector.load %arg3[%c0_45, %c0_46, %c0_47] : memref<1x128x128xf32, #tpu.memory_space<vmem>>, vector<1x128x128xf32>
      %33 = vector.shape_cast %32 : vector<1x128x128xf32> to vector<128x128xf32>
      %cst_48 = arith.constant dense<0.000000e+00> : vector<256x128xf32>
      %34 = tpu.matmul %31, %33, %cst_48 {dimension_numbers = #tpu.dot_dimension_numbers<[1], [0], [0], [1], [0, 0, 1, 1], [], []>} : vector<256x128xf32>, vector<128x128xf32>, vector<256x128xf32> -> vector<256x128xf32>
      %35 = vector.shape_cast %34 : vector<256x128xf32> to vector<16x16x128xf32>
      %c0_49 = arith.constant 0 : index
      %c0_50 = arith.constant 0 : index
      %c0_51 = arith.constant 0 : index
      %c0_52 = arith.constant 0 : index
      %c0_53 = arith.constant 0 : index
      %36 = vector.load %arg4[%c0_49, %c0_50, %c0_51, %c0_52, %c0_53] : memref<1x1x16x16x128xf32, #tpu.memory_space<vmem>>, vector<1x1x16x16x128xf32>
      %37 = vector.shape_cast %36 : vector<1x1x16x16x128xf32> to vector<16x16x128xf32>
      %38 = vector.shape_cast %35 : vector<16x16x128xf32> to vector<1x1x16x16x128xf32>
      tpu.vector_store %arg4[%c0_49, %c0_50, %c0_51, %c0_52, %c0_53], %38 {strides = array<i32>} : memref<1x1x16x16x128xf32, #tpu.memory_space<vmem>>, vector<1x1x16x16x128xf32>,
    } else {
    }
    %c1_i32 = arith.constant 1 : i32
    %14 = arith.cmpi eq, %arg1, %c1_i32 : i32
    %15 = arith.extui %14 : i1 to i32
    %c0_i32_19 = arith.constant 0 : i32
    %16 = arith.cmpi ne, %15, %c0_i32_19 : i32
    scf.if %16 {
      %c1 = arith.constant 1 : index
      %c6 = arith.constant 6 : index
      %c0_21 = arith.constant 0 : index
      %20 = vector.load %arg5[%c1, %c6, %c0_21] : memref<22x27x4xf32, #tpu.memory_space<vmem>>, vector<16x16x4xf32>
      %c1_22 = arith.constant 1 : index
      %c8_23 = arith.constant 8 : index
      %c0_24 = arith.constant 0 : index
      %21 = vector.load %arg5[%c1_22, %c8_23, %c0_24] : memref<22x27x4xf32, #tpu.memory_space<vmem>>, vector<16x16x4xf32>
      %c1_25 = arith.constant 1 : index
      %c10 = arith.constant 10 : index
      %c0_26 = arith.constant 0 : index
      %22 = vector.load %arg5[%c1_25, %c10, %c0_26] : memref<22x27x4xf32, #tpu.memory_space<vmem>>, vector<16x16x4xf32>
      %c3_27 = arith.constant 3 : index
      %c6_28 = arith.constant 6 : index
      %c0_29 = arith.constant 0 : index
      %23 = vector.load %arg5[%c3_27, %c6_28, %c0_29] : memref<22x27x4xf32, #tpu.memory_space<vmem>>, vector<16x16x4xf32>
      %c3_30 = arith.constant 3 : index
      %c8_31 = arith.constant 8 : index
      %c0_32 = arith.constant 0 : index
      %24 = vector.load %arg5[%c3_30, %c8_31, %c0_32] : memref<22x27x4xf32, #tpu.memory_space<vmem>>, vector<16x16x4xf32>
      %c3_33 = arith.constant 3 : index
      %c10_34 = arith.constant 10 : index
      %c0_35 = arith.constant 0 : index
      %25 = vector.load %arg5[%c3_33, %c10_34, %c0_35] : memref<22x27x4xf32, #tpu.memory_space<vmem>>, vector<16x16x4xf32>
      %c5 = arith.constant 5 : index
      %c6_36 = arith.constant 6 : index
      %c0_37 = arith.constant 0 : index
      %26 = vector.load %arg5[%c5, %c6_36, %c0_37] : memref<22x27x4xf32, #tpu.memory_space<vmem>>, vector<16x16x4xf32>
      %c5_38 = arith.constant 5 : index
      %c8_39 = arith.constant 8 : index
      %c0_40 = arith.constant 0 : index
      %27 = vector.load %arg5[%c5_38, %c8_39, %c0_40] : memref<22x27x4xf32, #tpu.memory_space<vmem>>, vector<16x16x4xf32>
      %c5_41 = arith.constant 5 : index
      %c10_42 = arith.constant 10 : index
      %c0_43 = arith.constant 0 : index
      %28 = vector.load %arg5[%c5_41, %c10_42, %c0_43] : memref<22x27x4xf32, #tpu.memory_space<vmem>>, vector<16x16x4xf32>
      %cst_44 = arith.constant 0.000000e+00 : f32
      %29 = vector.broadcast %cst_44 : f32 to vector<16x16x92xf32>
      %30 = tpu.concatenate %20, %21, %22, %23, %24, %25, %26, %27, %28, %29 in 2 : vector<16x16x4xf32>, vector<16x16x4xf32>, vector<16x16x4xf32>, vector<16x16x4xf32>, vector<16x16x4xf32>, vector<16x16x4xf32>, vector<16x16x4xf32>, vector<16x16x4xf32>, vector<16x16x4xf32>, vector<16x16x92xf32> -> vector<16x16x128xf32>
      %31 = vector.shape_cast %30 : vector<16x16x128xf32> to vector<256x128xf32>
      %c0_45 = arith.constant 0 : index
      %c0_46 = arith.constant 0 : index
      %c0_47 = arith.constant 0 : index
      %32 = vector.load %arg3[%c0_45, %c0_46, %c0_47] : memref<1x128x128xf32, #tpu.memory_space<vmem>>, vector<1x128x128xf32>
      %33 = vector.shape_cast %32 : vector<1x128x128xf32> to vector<128x128xf32>
      %cst_48 = arith.constant dense<0.000000e+00> : vector<256x128xf32>
      %34 = tpu.matmul %31, %33, %cst_48 {dimension_numbers = #tpu.dot_dimension_numbers<[1], [0], [0], [1], [0, 0, 1, 1], [], []>} : vector<256x128xf32>, vector<128x128xf32>, vector<256x128xf32> -> vector<256x128xf32>
      %35 = vector.shape_cast %34 : vector<256x128xf32> to vector<16x16x128xf32>
      %c0_49 = arith.constant 0 : index
      %c0_50 = arith.constant 0 : index
      %c0_51 = arith.constant 0 : index
      %c0_52 = arith.constant 0 : index
      %c0_53 = arith.constant 0 : index
      %36 = vector.load %arg4[%c0_49, %c0_50, %c0_51, %c0_52, %c0_53] : memref<1x1x16x16x128xf32, #tpu.memory_space<vmem>>, vector<1x1x16x16x128xf32>
      %37 = vector.shape_cast %36 : vector<1x1x16x16x128xf32> to vector<16x16x128xf32>
      %38 = vector.shape_cast %35 : vector<16x16x128xf32> to vector<1x1x16x16x128xf32>
      tpu.vector_store %arg4[%c0_49, %c0_50, %c0_51, %c0_52, %c0_53], %38 {strides = array<i32>} : memref<1x1x16x16x128xf32, #tpu.memory_space<vmem>>, vector<1x1x16x16x128xf32>,
    } else {
    }
    %c2_i32 = arith.constant 2 : i32
    %17 = arith.cmpi eq, %arg1, %c2_i32 : i32
    %18 = arith.extui %17 : i1 to i32
    %c0_i32_20 = arith.constant 0 : i32
    %19 = arith.cmpi ne, %18, %c0_i32_20 : i32
    scf.if %19 {
      %c0_21 = arith.constant 0 : index
      %c5 = arith.constant 5 : index
      %c0_22 = arith.constant 0 : index
      %20 = vector.load %arg5[%c0_21, %c5, %c0_22] : memref<22x27x4xf32, #tpu.memory_space<vmem>>, vector<16x16x4xf32>
      %c0_23 = arith.constant 0 : index
      %c8_24 = arith.constant 8 : index
      %c0_25 = arith.constant 0 : index
      %21 = vector.load %arg5[%c0_23, %c8_24, %c0_25] : memref<22x27x4xf32, #tpu.memory_space<vmem>>, vector<16x16x4xf32>
      %c0_26 = arith.constant 0 : index
      %c11 = arith.constant 11 : index
      %c0_27 = arith.constant 0 : index
      %22 = vector.load %arg5[%c0_26, %c11, %c0_27] : memref<22x27x4xf32, #tpu.memory_space<vmem>>, vector<16x16x4xf32>
      %c3_28 = arith.constant 3 : index
      %c5_29 = arith.constant 5 : index
      %c0_30 = arith.constant 0 : index
      %23 = vector.load %arg5[%c3_28, %c5_29, %c0_30] : memref<22x27x4xf32, #tpu.memory_space<vmem>>, vector<16x16x4xf32>
      %c3_31 = arith.constant 3 : index
      %c8_32 = arith.constant 8 : index
      %c0_33 = arith.constant 0 : index
      %24 = vector.load %arg5[%c3_31, %c8_32, %c0_33] : memref<22x27x4xf32, #tpu.memory_space<vmem>>, vector<16x16x4xf32>
      %c3_34 = arith.constant 3 : index
      %c11_35 = arith.constant 11 : index
      %c0_36 = arith.constant 0 : index
      %25 = vector.load %arg5[%c3_34, %c11_35, %c0_36] : memref<22x27x4xf32, #tpu.memory_space<vmem>>, vector<16x16x4xf32>
      %c6 = arith.constant 6 : index
      %c5_37 = arith.constant 5 : index
      %c0_38 = arith.constant 0 : index
      %26 = vector.load %arg5[%c6, %c5_37, %c0_38] : memref<22x27x4xf32, #tpu.memory_space<vmem>>, vector<16x16x4xf32>
      %c6_39 = arith.constant 6 : index
      %c8_40 = arith.constant 8 : index
      %c0_41 = arith.constant 0 : index
      %27 = vector.load %arg5[%c6_39, %c8_40, %c0_41] : memref<22x27x4xf32, #tpu.memory_space<vmem>>, vector<16x16x4xf32>
      %c6_42 = arith.constant 6 : index
      %c11_43 = arith.constant 11 : index
      %c0_44 = arith.constant 0 : index
      %28 = vector.load %arg5[%c6_42, %c11_43, %c0_44] : memref<22x27x4xf32, #tpu.memory_space<vmem>>, vector<16x16x4xf32>
      %cst_45 = arith.constant 0.000000e+00 : f32
      %29 = vector.broadcast %cst_45 : f32 to vector<16x16x92xf32>
      %30 = tpu.concatenate %20, %21, %22, %23, %24, %25, %26, %27, %28, %29 in 2 : vector<16x16x4xf32>, vector<16x16x4xf32>, vector<16x16x4xf32>, vector<16x16x4xf32>, vector<16x16x4xf32>, vector<16x16x4xf32>, vector<16x16x4xf32>, vector<16x16x4xf32>, vector<16x16x4xf32>, vector<16x16x92xf32> -> vector<16x16x128xf32>
      %31 = vector.shape_cast %30 : vector<16x16x128xf32> to vector<256x128xf32>
      %c0_46 = arith.constant 0 : index
      %c0_47 = arith.constant 0 : index
      %c0_48 = arith.constant 0 : index
      %32 = vector.load %arg3[%c0_46, %c0_47, %c0_48] : memref<1x128x128xf32, #tpu.memory_space<vmem>>, vector<1x128x128xf32>
      %33 = vector.shape_cast %32 : vector<1x128x128xf32> to vector<128x128xf32>
      %cst_49 = arith.constant dense<0.000000e+00> : vector<256x128xf32>
      %34 = tpu.matmul %31, %33, %cst_49 {dimension_numbers = #tpu.dot_dimension_numbers<[1], [0], [0], [1], [0, 0, 1, 1], [], []>} : vector<256x128xf32>, vector<128x128xf32>, vector<256x128xf32> -> vector<256x128xf32>
      %35 = vector.shape_cast %34 : vector<256x128xf32> to vector<16x16x128xf32>
      %c0_50 = arith.constant 0 : index
      %c0_51 = arith.constant 0 : index
      %c0_52 = arith.constant 0 : index
      %c0_53 = arith.constant 0 : index
      %c0_54 = arith.constant 0 : index
      %36 = vector.load %arg4[%c0_50, %c0_51, %c0_52, %c0_53, %c0_54] : memref<1x1x16x16x128xf32, #tpu.memory_space<vmem>>, vector<1x1x16x16x128xf32>
      %37 = vector.shape_cast %36 : vector<1x1x16x16x128xf32> to vector<16x16x128xf32>
      %38 = vector.shape_cast %35 : vector<16x16x128xf32> to vector<1x1x16x16x128xf32>
      tpu.vector_store %arg4[%c0_50, %c0_51, %c0_52, %c0_53, %c0_54], %38 {strides = array<i32>} : memref<1x1x16x16x128xf32, #tpu.memory_space<vmem>>, vector<1x1x16x16x128xf32>,
    } else {
    }
    return
  }
  func.func @transform_0(%arg0: i32, %arg1: i32) -> (i32, i32, i32, i32, i32) {
    %c0_i32 = arith.constant 0 : i32
    %c0_i32_0 = arith.constant 0 : i32
    %c0_i32_1 = arith.constant 0 : i32
    %c0_i32_2 = arith.constant 0 : i32
    return %arg1, %arg0, %c0_i32, %c0_i32_0, %c0_i32_1 : i32, i32, i32, i32, i32
  }
  func.func @transform_1(%arg0: i32, %arg1: i32) -> (i32, i32, i32) {
    %c0_i32 = arith.constant 0 : i32
    %c0_i32_0 = arith.constant 0 : i32
    %c0_i32_1 = arith.constant 0 : i32
    %c0_i32_2 = arith.constant 0 : i32
    return %c0_i32, %c0_i32_0, %c0_i32_1 : i32, i32, i32
  }
  func.func @transform_2(%arg0: i32, %arg1: i32) -> (i32, i32, i32, i32, i32) {
    %c0_i32 = arith.constant 0 : i32
    %c0_i32_0 = arith.constant 0 : i32
    %c0_i32_1 = arith.constant 0 : i32
    %c0_i32_2 = arith.constant 0 : i32
    return %arg0, %arg1, %c0_i32, %c0_i32_0, %c0_i32_1 : i32, i32, i32, i32, i32
  }
}

</mosaic_0001>

<llo_original>
// kernel: tpu_custom_call.1
$region0: #{tpu_custom_call.1}
  #allocation0 [shape = 'u32[]', space=smem, size = 0x4, offset = 0x4, fixed_abs, tag = 'smem constant byte address 0x4 - core index']
  #allocation1 [shape = 'u32[144,128]{1,0:T(1,128)}', space=vmem, size = 0x12000, scoped, tag = 'internal scratch']
  #allocation2 [shape = 'f32[22,27,4]{2,1,0:T(8,128)}', space=vmem, size = 0x58000, scoped, tag = 'scratch operand']
  %s0 = inlined_call_operand.vmem [shape: f32[3,2,16,16,4], index: 0, kind: input, shape index: {}]
  %s1 = inlined_call_operand.vmem [shape: f32[1,128,128], index: 1, kind: input, shape index: {}]
  %s2 = inlined_call_operand.hbm [shape: f32[2,3,16,16,128], index: 2, kind: output, shape index: {}]
  %s3 = sld [smem:[#allocation0]]
  $region53: #{tpu_custom_call.1} parent=0
    _
  %s5 = ssub.s32 1, %s3
  %s6 = scalar_select 0, %s5, %s3
  $region1: #{tpu_custom_call.1} parent=0
    #allocation3 [shape = 'u8[262144]{0}', space=vmem, size = 0x40000, scoped, tag = 'output window, operand 0']
    #allocation4 [shape = 's32[2]{0}', space=sflag, size = 0x8, scoped, tag = 'scoped memory for tpu_custom_call.1']
    %7 = vsyncpa [#allocation4], 0
    %s8 = scalar_lea.sflag [#allocation4], 1
    %9 = vsyncpa %s8, 0
    loop: start=0, step=1, limit=8
    $region2: #{tpu_custom_call.1} parent=1 // loop_pre_header
      _
    $region3: #{tpu_custom_call.1} parent=1 // loop_header
      %s11 = sphi 0, %s15
      %p12 = scmp.ge.s32.totalorder %s11, 8
      %s18 = sphi 0, %s30
      %s19 = sphi 0, %s26
      %s20 = sphi 0, %s18
      %s21 = sphi 0, %s19
      %s22 = sphi 0, %s20
      %s23 = sphi 0, %s21
      %s35 = sphi 0, %s37
      %s38 = sphi 0, %s35
      %s39 = sphi 0, %s38
      %s55 = sphi 0, %s39
      %s59 = sphi 0, %s59
      %s61 = sphi 0, %s59
      %s62 = sphi 0, %s61
      %s76 = sphi 0, %s62
      %s84 = sphi 0, %s86
      %s87 = sphi 0, %s84
      %s88 = sphi 0, %s87
      %s104 = sphi 0, %s88
    $region4: #{tpu_custom_call.1} parent=1 // loop_header_branch
      %14 = sbr.rel (%p12) target = $region8
    $region5: #{tpu_custom_call.1} parent=1 // loop_body
      %s16 = ssub.s32 %s11, 1
      %s17 = ssub.s32 %s11, 2
      %s24 = sadd.s32 1, %s19
      %p25 = scmp.ge.s32.totalorder %s24, 3
      %s26 = scalar_select %p25, 0, %s24
      %s27 = sadd.s32 1, %s18
      %s28 = scalar_select %p25, %s27, %s18
      %p29 = scmp.ge.s32.totalorder %s28, 2
      %s30 = scalar_select %p29, 0, %s28
      %s31 = ssub.s32 %s19, %s26
      %s32 = ssub.s32 %s18, %s30
      %s33 = sor.u32 %s31, %s32
      %p34 = scmp.eq.s32.totalorder %s33, 0
      %s36 = sadd.s32 %s35, 1
      %s37 = scalar_select %p34, %s35, %s36
      %p40 = pneg %p34
      %p41 = scmp.eq.s32.totalorder %s11, 5
      %p42 = por %p40, %p41
      %p43 = scmp.ne.s32.totalorder %s35, %s38
      %p44 = scmp.eq.s32.totalorder %s11, 0
      %p45 = por %p43, %p44
      %p46 = scmp.ne.s32.totalorder %s35, %s38
      %p47 = scmp.eq.s32.totalorder %s16, 5
      %p48 = por %p46, %p47
      %p49 = scmp.ne.s32.totalorder %s38, %s39
      %p50 = scmp.eq.s32.totalorder %s16, 0
      %p51 = por %p49, %p50
      %p52 = scmp.ne.s32.totalorder %s38, %s39
      %p53 = scmp.eq.s32.totalorder %s17, 5
      %p54 = por %p52, %p53
      %p56 = scmp.ne.s32.totalorder %s39, %s55
      %p57 = scmp.eq.s32.totalorder %s17, 0
      %p58 = por %p56, %p57
      %s60 = sadd.s32 %s59, 1
      %p63 = scmp.eq.s32.totalorder %s11, 5
      %p64 = scmp.ne.s32.totalorder %s59, %s61
      %p65 = scmp.eq.s32.totalorder %s11, 0
      %p66 = por %p64, %p65
      %p67 = scmp.ne.s32.totalorder %s59, %s61
      %p68 = scmp.eq.s32.totalorder %s16, 5
      %p69 = por %p67, %p68
      %p70 = scmp.ne.s32.totalorder %s61, %s62
      %p71 = scmp.eq.s32.totalorder %s16, 0
      %p72 = por %p70, %p71
      %p73 = scmp.ne.s32.totalorder %s61, %s62
      %p74 = scmp.eq.s32.totalorder %s17, 5
      %p75 = por %p73, %p74
      %p77 = scmp.ne.s32.totalorder %s62, %s76
      %p78 = scmp.eq.s32.totalorder %s17, 0
      %p79 = por %p77, %p78
      %s80 = ssub.s32 %s18, %s30
      %s81 = ssub.s32 %s19, %s26
      %s82 = sor.u32 %s80, %s81
      %p83 = scmp.eq.s32.totalorder %s82, 0
      %s85 = sadd.s32 %s84, 1
      %s86 = scalar_select %p83, %s84, %s85
      %p89 = pneg %p83
      %p90 = scmp.eq.s32.totalorder %s11, 5
      %p91 = por %p89, %p90
      %p92 = scmp.ne.s32.totalorder %s84, %s87
      %p93 = scmp.eq.s32.totalorder %s11, 0
      %p94 = por %p92, %p93
      %p95 = scmp.ne.s32.totalorder %s84, %s87
      %p96 = scmp.eq.s32.totalorder %s16, 5
      %p97 = por %p95, %p96
      %p98 = scmp.ne.s32.totalorder %s87, %s88
      %p99 = scmp.eq.s32.totalorder %s16, 0
      %p100 = por %p98, %p99
      %p101 = scmp.ne.s32.totalorder %s87, %s88
      %p102 = scmp.eq.s32.totalorder %s17, 5
      %p103 = por %p101, %p102
      %p105 = scmp.ne.s32.totalorder %s88, %s104
      %p106 = scmp.eq.s32.totalorder %s17, 0
      %p107 = por %p105, %p106
      %p108 = scmp.le.s32.totalorder 1, %s11
      %p109 = scmp.lt.s32.totalorder %s11, 7
      %p110 = pnand %p108, %p109
      %p111 = pneg %p110
      // Predicated region
      $region9: #{tpu_custom_call.1} parent=5 // pred_check
        _
      $region10: #{tpu_custom_call.1} parent=5 // pred_check_branch
        %113 = sbr.rel (%p110) target = $region12
      $region11: #{tpu_custom_call.1} parent=5 // pred_region
        %s114 = ssub.s32 %s11, 1
        // Predicated region
        $region13: #{tpu_custom_call.1} parent=11 // pred_check
          %p115 = pneg %p72
        $region14: #{tpu_custom_call.1} parent=11 // pred_check_branch
          %117 = sbr.rel (%p115) target = $region16
        $region15: #{tpu_custom_call.1} parent=11 // pred_region
          _
        $region16: #{tpu_custom_call.1} parent=11 // pred_fallthru
          _
      $region12: #{tpu_custom_call.1} parent=5 // pred_fallthru
        _
      %p118 = scmp.lt.s32.totalorder %s11, 6
      // Predicated region
      $region17: #{tpu_custom_call.1} parent=5 // pred_check
        %p119 = pneg %p118
      $region18: #{tpu_custom_call.1} parent=5 // pred_check_branch
        %121 = sbr.rel (%p119) target = $region20
      $region19: #{tpu_custom_call.1} parent=5 // pred_region
        // Predicated region
        $region21: #{tpu_custom_call.1} parent=19 // pred_check
          %p122 = pneg %p45
        $region22: #{tpu_custom_call.1} parent=19 // pred_check_branch
          %124 = sbr.rel (%p122) target = $region24
        $region23: #{tpu_custom_call.1} parent=19 // pred_region
          %p125 = scmp.lt.s32.totalorder %s19, 2
          %s126 = scalar_select %p125, %s19, 2
          %p127 = scmp.lt.s32.totalorder %s18, 1
          %s128 = scalar_select %p127, %s18, 1
          %s129 = smul.addr %s128, 32
          %s130 = smul.addr %s126, 64
          %s131 = sadd.s32 %s129, %s130
          %s132 = smul.addr %s131, 8
          %s133 = scalar_lea.vmem %s0, %s132
        $region24: #{tpu_custom_call.1} parent=19 // pred_fallthru
          _
      $region20: #{tpu_custom_call.1} parent=5 // pred_fallthru
        _
      %p134 = scmp.le.s32.totalorder 1, %s11
      %p135 = scmp.lt.s32.totalorder %s11, 7
      %p136 = pnand %p134, %p135
      %p137 = pneg %p136
      // Predicated region
      $region25: #{tpu_custom_call.1} parent=5 // pred_check
        _
      $region26: #{tpu_custom_call.1} parent=5 // pred_check_branch
        %139 = sbr.rel (%p136) target = $region28
      $region27: #{tpu_custom_call.1} parent=5 // pred_region
        %s140 = ssub.s32 %s11, 1
        %p141 = scmp.lt.s32.totalorder %s21, 2
        %s142 = scalar_select %p141, %s21, 2
        %p143 = scmp.lt.s32.totalorder %s20, 1
        %s144 = scalar_select %p143, %s20, 1
        %s145 = smul.addr %s144, 32
        %s146 = smul.addr %s142, 64
        %s147 = sadd.s32 %s145, %s146
        %s148 = smul.addr %s147, 8
        %s149 = scalar_lea.vmem %s0, %s148
        %p150 = pneg %p51
        %p151 = pneg %p48
        %p152 = pneg %p72
        %p153 = pneg %p69
        %p154 = pneg %p100
        %p155 = pneg %p97
        %s156 = sand.u32 %s87, 1
        %s157 = scalar_lea.sflag [#allocation4], %s156
        %s158 = sand.u32 %s87, 1
        %s159 = smul.addr %s158, 256
        %s160 = scalar_lea.vmem [#allocation3], %s159
        %p161 = scmp.lt.s32.totalorder %s21, 2
        %s162 = scalar_select %p161, %s21, 2
        %p163 = scmp.lt.s32.totalorder %s20, 1
        %s164 = scalar_select %p163, %s20, 1
        %s165 = smul.addr %s164, 32
        %s166 = smul.addr %s162, 64
        %s167 = sadd.s32 %s165, %s166
        %s168 = smul.addr %s167, 8
        %s169 = scalar_lea.vmem %s0, %s168
        %vm170 = vcmask 31744
        %171 = vst.msk [vmem:[#allocation2] sm:$0xff] %vm170, 0.0
        %172 = vst.msk [vmem:[#allocation2 + $0x8] sm:$0xff] %vm170, 0.0
        %173 = vst.msk [vmem:[#allocation2 + $0x10] sm:$0xff] %vm170, 0.0
        %vm174 = vcmask 26624
        %175 = vst.msk [vmem:[#allocation2 + $0x18] sm:$0x7] %vm174, 0.0
        %176 = vst.msk [vmem:[#allocation2 + $0x20] sm:$0xff] %vm170, 0.0
        %177 = vst.msk [vmem:[#allocation2 + $0x28] sm:$0xff] %vm170, 0.0
        %178 = vst.msk [vmem:[#allocation2 + $0x30] sm:$0xff] %vm170, 0.0
        %179 = vst.msk [vmem:[#allocation2 + $0x38] sm:$0x7] %vm174, 0.0
        %180 = vst.msk [vmem:[#allocation2 + $0x40] sm:$0xff] %vm170, 0.0
        %181 = vst.msk [vmem:[#allocation2 + $0x48] sm:$0xff] %vm170, 0.0
        %182 = vst.msk [vmem:[#allocation2 + $0x50] sm:$0xff] %vm170, 0.0
        %183 = vst.msk [vmem:[#allocation2 + $0x58] sm:$0x7] %vm174, 0.0
        %s184 = scalar_lea.vmem [#allocation2], 608
        %185 = vst.msk [vmem:[%s184] sm:$0xff] %vm170, 0.0
        %186 = vst.msk [vmem:[%s184 + $0x8] sm:$0xff] %vm170, 0.0
        %187 = vst.msk [vmem:[%s184 + $0x10] sm:$0xff] %vm170, 0.0
        %188 = vst.msk [vmem:[%s184 + $0x18] sm:$0x7] %vm174, 0.0
        %189 = vst.msk [vmem:[%s184 + $0x20] sm:$0xff] %vm170, 0.0
        %190 = vst.msk [vmem:[%s184 + $0x28] sm:$0xff] %vm170, 0.0
        %191 = vst.msk [vmem:[%s184 + $0x30] sm:$0xff] %vm170, 0.0
        %192 = vst.msk [vmem:[%s184 + $0x38] sm:$0x7] %vm174, 0.0
        %193 = vst.msk [vmem:[%s184 + $0x40] sm:$0xff] %vm170, 0.0
        %194 = vst.msk [vmem:[%s184 + $0x48] sm:$0xff] %vm170, 0.0
        %195 = vst.msk [vmem:[%s184 + $0x50] sm:$0xff] %vm170, 0.0
        %196 = vst.msk [vmem:[%s184 + $0x58] sm:$0x7] %vm174, 0.0
        %s197 = scalar_lea.vmem [#allocation2], 96
        %198 = vst.msk [vmem:[%s197] sm:$0xff] %vm170, 0.0
        %199 = vst.msk [vmem:[%s197 + $0x20] sm:$0xff] %vm170, 0.0
        %200 = vst.msk [vmem:[%s197 + $0x40] sm:$0xff] %vm170, 0.0
        %201 = vst.msk [vmem:[%s197 + $0x60] sm:$0xff] %vm170, 0.0
        %202 = vst.msk [vmem:[%s197 + $0x80] sm:$0xff] %vm170, 0.0
        %203 = vst.msk [vmem:[%s197 + $0xa0] sm:$0xff] %vm170, 0.0
        %204 = vst.msk [vmem:[%s197 + $0xc0] sm:$0xff] %vm170, 0.0
        %205 = vst.msk [vmem:[%s197 + $0xe0] sm:$0xff] %vm170, 0.0
        %206 = vst.msk [vmem:[%s197 + $0x100] sm:$0xff] %vm170, 0.0
        %207 = vst.msk [vmem:[%s197 + $0x120] sm:$0xff] %vm170, 0.0
        %208 = vst.msk [vmem:[%s197 + $0x140] sm:$0xff] %vm170, 0.0
        %209 = vst.msk [vmem:[%s197 + $0x160] sm:$0xff] %vm170, 0.0
        %210 = vst.msk [vmem:[%s197 + $0x180] sm:$0xff] %vm170, 0.0
        %211 = vst.msk [vmem:[%s197 + $0x1a0] sm:$0xff] %vm170, 0.0
        %212 = vst.msk [vmem:[%s197 + $0x1c0] sm:$0xff] %vm170, 0.0
        %213 = vst.msk [vmem:[%s197 + $0x1e0] sm:$0xff] %vm170, 0.0
        %214 = vst.msk [vmem:[%s197 + $0x18] sm:$0x7] %vm174, 0.0
        %215 = vst.msk [vmem:[%s197 + $0x38] sm:$0x7] %vm174, 0.0
        %216 = vst.msk [vmem:[%s197 + $0x58] sm:$0x7] %vm174, 0.0
        %217 = vst.msk [vmem:[%s197 + $0x78] sm:$0x7] %vm174, 0.0
        %218 = vst.msk [vmem:[%s197 + $0x98] sm:$0x7] %vm174, 0.0
        %219 = vst.msk [vmem:[%s197 + $0xb8] sm:$0x7] %vm174, 0.0
        %220 = vst.msk [vmem:[%s197 + $0xd8] sm:$0x7] %vm174, 0.0
        %221 = vst.msk [vmem:[%s197 + $0xf8] sm:$0x7] %vm174, 0.0
        %222 = vst.msk [vmem:[%s197 + $0x118] sm:$0x7] %vm174, 0.0
        %223 = vst.msk [vmem:[%s197 + $0x138] sm:$0x7] %vm174, 0.0
        %224 = vst.msk [vmem:[%s197 + $0x158] sm:$0x7] %vm174, 0.0
        %225 = vst.msk [vmem:[%s197 + $0x178] sm:$0x7] %vm174, 0.0
        %226 = vst.msk [vmem:[%s197 + $0x198] sm:$0x7] %vm174, 0.0
        %227 = vst.msk [vmem:[%s197 + $0x1b8] sm:$0x7] %vm174, 0.0
        %228 = vst.msk [vmem:[%s197 + $0x1d8] sm:$0x7] %vm174, 0.0
        %229 = vst.msk [vmem:[%s197 + $0x1f8] sm:$0x7] %vm174, 0.0
        %v230 = vld [vmem:[%s169] sm:$0xff]
        %v231 = vld [vmem:[%s169 + $0x8] sm:$0xff]
        %v232 = vld [vmem:[%s169 + $0x10] sm:$0xff]
        %v233 = vld [vmem:[%s169 + $0x18] sm:$0xff]
        %v234 = vld [vmem:[%s169 + $0x20] sm:$0xff]
        %v235 = vld [vmem:[%s169 + $0x28] sm:$0xff]
        %v236 = vld [vmem:[%s169 + $0x30] sm:$0xff]
        %v237 = vld [vmem:[%s169 + $0x38] sm:$0xff]
        %v238 = vld [vmem:[%s169 + $0x40] sm:$0xff]
        %v239 = vld [vmem:[%s169 + $0x48] sm:$0xff]
        %v240 = vld [vmem:[%s169 + $0x50] sm:$0xff]
        %v241 = vld [vmem:[%s169 + $0x58] sm:$0xff]
        %v242 = vld [vmem:[%s169 + $0x60] sm:$0xff]
        %v243 = vld [vmem:[%s169 + $0x68] sm:$0xff]
        %v244 = vld [vmem:[%s169 + $0x70] sm:$0xff]
        %v245 = vld [vmem:[%s169 + $0x78] sm:$0xff]
        %v246 = vld [vmem:[%s169 + $0x80] sm:$0xff]
        %v247 = vld [vmem:[%s169 + $0x88] sm:$0xff]
        %v248 = vld [vmem:[%s169 + $0x90] sm:$0xff]
        %v249 = vld [vmem:[%s169 + $0x98] sm:$0xff]
        %v250 = vld [vmem:[%s169 + $0xa0] sm:$0xff]
        %v251 = vld [vmem:[%s169 + $0xa8] sm:$0xff]
        %v252 = vld [vmem:[%s169 + $0xb0] sm:$0xff]
        %v253 = vld [vmem:[%s169 + $0xb8] sm:$0xff]
        %v254 = vld [vmem:[%s169 + $0xc0] sm:$0xff]
        %v255 = vld [vmem:[%s169 + $0xc8] sm:$0xff]
        %v256 = vld [vmem:[%s169 + $0xd0] sm:$0xff]
        %v257 = vld [vmem:[%s169 + $0xd8] sm:$0xff]
        %v258 = vld [vmem:[%s169 + $0xe0] sm:$0xff]
        %v259 = vld [vmem:[%s169 + $0xe8] sm:$0xff]
        %v260 = vld [vmem:[%s169 + $0xf0] sm:$0xff]
        %v261 = vld [vmem:[%s169 + $0xf8] sm:$0xff]
        %262 = vst.msk [vmem:[%s197 + $0x8] sm:$0xff] %vm170, %v230
        %263 = vst.msk [vmem:[%s197 + $0x10] sm:$0xff] %vm170, %v231
        %264 = vst.msk [vmem:[%s197 + $0x28] sm:$0xff] %vm170, %v232
        %265 = vst.msk [vmem:[%s197 + $0x30] sm:$0xff] %vm170, %v233
        %266 = vst.msk [vmem:[%s197 + $0x48] sm:$0xff] %vm170, %v234
        %267 = vst.msk [vmem:[%s197 + $0x50] sm:$0xff] %vm170, %v235
        %268 = vst.msk [vmem:[%s197 + $0x68] sm:$0xff] %vm170, %v236
        %269 = vst.msk [vmem:[%s197 + $0x70] sm:$0xff] %vm170, %v237
        %270 = vst.msk [vmem:[%s197 + $0x88] sm:$0xff] %vm170, %v238
        %271 = vst.msk [vmem:[%s197 + $0x90] sm:$0xff] %vm170, %v239
        %272 = vst.msk [vmem:[%s197 + $0xa8] sm:$0xff] %vm170, %v240
        %273 = vst.msk [vmem:[%s197 + $0xb0] sm:$0xff] %vm170, %v241
        %274 = vst.msk [vmem:[%s197 + $0xc8] sm:$0xff] %vm170, %v242
        %275 = vst.msk [vmem:[%s197 + $0xd0] sm:$0xff] %vm170, %v243
        %276 = vst.msk [vmem:[%s197 + $0xe8] sm:$0xff] %vm170, %v244
        %277 = vst.msk [vmem:[%s197 + $0xf0] sm:$0xff] %vm170, %v245
        %278 = vst.msk [vmem:[%s197 + $0x108] sm:$0xff] %vm170, %v246
        %279 = vst.msk [vmem:[%s197 + $0x110] sm:$0xff] %vm170, %v247
        %280 = vst.msk [vmem:[%s197 + $0x128] sm:$0xff] %vm170, %v248
        %281 = vst.msk [vmem:[%s197 + $0x130] sm:$0xff] %vm170, %v249
        %282 = vst.msk [vmem:[%s197 + $0x148] sm:$0xff] %vm170, %v250
        %283 = vst.msk [vmem:[%s197 + $0x150] sm:$0xff] %vm170, %v251
        %284 = vst.msk [vmem:[%s197 + $0x168] sm:$0xff] %vm170, %v252
        %285 = vst.msk [vmem:[%s197 + $0x170] sm:$0xff] %vm170, %v253
        %286 = vst.msk [vmem:[%s197 + $0x188] sm:$0xff] %vm170, %v254
        %287 = vst.msk [vmem:[%s197 + $0x190] sm:$0xff] %vm170, %v255
        %288 = vst.msk [vmem:[%s197 + $0x1a8] sm:$0xff] %vm170, %v256
        %289 = vst.msk [vmem:[%s197 + $0x1b0] sm:$0xff] %vm170, %v257
        %290 = vst.msk [vmem:[%s197 + $0x1c8] sm:$0xff] %vm170, %v258
        %291 = vst.msk [vmem:[%s197 + $0x1d0] sm:$0xff] %vm170, %v259
        %292 = vst.msk [vmem:[%s197 + $0x1e8] sm:$0xff] %vm170, %v260
        %293 = vst.msk [vmem:[%s197 + $0x1f0] sm:$0xff] %vm170, %v261
        %p294 = scmp.eq.s32.totalorder %s21, 0
        // Predicated region
        $region29: #{tpu_custom_call.1} parent=27 // pred_check
          %p295 = pneg %p294
        $region30: #{tpu_custom_call.1} parent=27 // pred_check_branch
          %297 = sbr.rel (%p295) target = $region32
        $region31: #{tpu_custom_call.1} parent=27 // pred_region
          %s298 = scalar_lea.vmem [#allocation2], 64
          %v299 = vld [vmem:[%s298 + $0x7] sm:$0xff]
          %v300 = vld [vmem:[%s298 + $0xf] sm:$0xff]
          %v301 = vld [vmem:[%s298 + $0x27] sm:$0xff]
          %v302 = vld [vmem:[%s298 + $0x2f] sm:$0xff]
          %v303 = vld [vmem:[%s298 + $0x47] sm:$0xff]
          %v304 = vld [vmem:[%s298 + $0x4f] sm:$0xff]
          %v305 = vld [vmem:[%s298 + $0x67] sm:$0xff]
          %v306 = vld [vmem:[%s298 + $0x6f] sm:$0xff]
          %v307 = vld [vmem:[%s298 + $0x87] sm:$0xff]
          %v308 = vld [vmem:[%s298 + $0x8f] sm:$0xff]
          %v309 = vld [vmem:[%s298 + $0xa7] sm:$0xff]
          %v310 = vld [vmem:[%s298 + $0xaf] sm:$0xff]
          %v311 = vld [vmem:[%s298 + $0xc7] sm:$0xff]
          %v312 = vld [vmem:[%s298 + $0xcf] sm:$0xff]
          %v313 = vld [vmem:[%s298 + $0xe7] sm:$0xff]
          %v314 = vld [vmem:[%s298 + $0xef] sm:$0xff]
          %v315 = vld [vmem:[%s298 + $0x107] sm:$0xff]
          %v316 = vld [vmem:[%s298 + $0x10f] sm:$0xff]
          %v317 = vld [vmem:[%s298 + $0x127] sm:$0xff]
          %v318 = vld [vmem:[%s298 + $0x12f] sm:$0xff]
          %v319 = vld [vmem:[%s298 + $0x147] sm:$0xff]
          %v320 = vld [vmem:[%s298 + $0x14f] sm:$0xff]
          %v321 = vld [vmem:[%s298 + $0x167] sm:$0xff]
          %v322 = vld [vmem:[%s298 + $0x16f] sm:$0xff]
          %v323 = vld [vmem:[%s298 + $0x187] sm:$0xff]
          %v324 = vld [vmem:[%s298 + $0x18f] sm:$0xff]
          %v325 = vld [vmem:[%s298 + $0x1a7] sm:$0xff]
          %v326 = vld [vmem:[%s298 + $0x1af] sm:$0xff]
          %v327 = vld [vmem:[%s298 + $0x1c7] sm:$0xff]
          %v328 = vld [vmem:[%s298 + $0x1cf] sm:$0xff]
          %v329 = vld [vmem:[%s298 + $0x1e7] sm:$0xff]
          %v330 = vld [vmem:[%s298 + $0x1ef] sm:$0xff]
          %v331 = vld [vmem:[%s298 + $0x8] sm:$0xff]
          %v332 = vld [vmem:[%s298 + $0x10] sm:$0xff]
          %v333 = vld [vmem:[%s298 + $0x28] sm:$0xff]
          %v334 = vld [vmem:[%s298 + $0x30] sm:$0xff]
          %v335 = vld [vmem:[%s298 + $0x48] sm:$0xff]
          %v336 = vld [vmem:[%s298 + $0x50] sm:$0xff]
          %v337 = vld [vmem:[%s298 + $0x68] sm:$0xff]
          %v338 = vld [vmem:[%s298 + $0x70] sm:$0xff]
          %v339 = vld [vmem:[%s298 + $0x88] sm:$0xff]
          %v340 = vld [vmem:[%s298 + $0x90] sm:$0xff]
          %v341 = vld [vmem:[%s298 + $0xa8] sm:$0xff]
          %v342 = vld [vmem:[%s298 + $0xb0] sm:$0xff]
          %v343 = vld [vmem:[%s298 + $0xc8] sm:$0xff]
          %v344 = vld [vmem:[%s298 + $0xd0] sm:$0xff]
          %v345 = vld [vmem:[%s298 + $0xe8] sm:$0xff]
          %v346 = vld [vmem:[%s298 + $0xf0] sm:$0xff]
          %v347 = vld [vmem:[%s298 + $0x108] sm:$0xff]
          %v348 = vld [vmem:[%s298 + $0x110] sm:$0xff]
          %v349 = vld [vmem:[%s298 + $0x128] sm:$0xff]
          %v350 = vld [vmem:[%s298 + $0x130] sm:$0xff]
          %v351 = vld [vmem:[%s298 + $0x148] sm:$0xff]
          %v352 = vld [vmem:[%s298 + $0x150] sm:$0xff]
          %v353 = vld [vmem:[%s298 + $0x168] sm:$0xff]
          %v354 = vld [vmem:[%s298 + $0x170] sm:$0xff]
          %v355 = vld [vmem:[%s298 + $0x188] sm:$0xff]
          %v356 = vld [vmem:[%s298 + $0x190] sm:$0xff]
          %v357 = vld [vmem:[%s298 + $0x1a8] sm:$0xff]
          %v358 = vld [vmem:[%s298 + $0x1b0] sm:$0xff]
          %v359 = vld [vmem:[%s298 + $0x1c8] sm:$0xff]
          %v360 = vld [vmem:[%s298 + $0x1d0] sm:$0xff]
          %v361 = vld [vmem:[%s298 + $0x1e8] sm:$0xff]
          %v362 = vld [vmem:[%s298 + $0x1f0] sm:$0xff]
          %v363 = vld [vmem:[%s298 + $0x9] sm:$0xff]
          %v364 = vld [vmem:[%s298 + $0x11] sm:$0xff]
          %v365 = vld [vmem:[%s298 + $0x29] sm:$0xff]
          %v366 = vld [vmem:[%s298 + $0x31] sm:$0xff]
          %v367 = vld [vmem:[%s298 + $0x49] sm:$0xff]
          %v368 = vld [vmem:[%s298 + $0x51] sm:$0xff]
          %v369 = vld [vmem:[%s298 + $0x69] sm:$0xff]
          %v370 = vld [vmem:[%s298 + $0x71] sm:$0xff]
          %v371 = vld [vmem:[%s298 + $0x89] sm:$0xff]
          %v372 = vld [vmem:[%s298 + $0x91] sm:$0xff]
          %v373 = vld [vmem:[%s298 + $0xa9] sm:$0xff]
          %v374 = vld [vmem:[%s298 + $0xb1] sm:$0xff]
          %v375 = vld [vmem:[%s298 + $0xc9] sm:$0xff]
          %v376 = vld [vmem:[%s298 + $0xd1] sm:$0xff]
          %v377 = vld [vmem:[%s298 + $0xe9] sm:$0xff]
          %v378 = vld [vmem:[%s298 + $0xf1] sm:$0xff]
          %v379 = vld [vmem:[%s298 + $0x109] sm:$0xff]
          %v380 = vld [vmem:[%s298 + $0x111] sm:$0xff]
          %v381 = vld [vmem:[%s298 + $0x129] sm:$0xff]
          %v382 = vld [vmem:[%s298 + $0x131] sm:$0xff]
          %v383 = vld [vmem:[%s298 + $0x149] sm:$0xff]
          %v384 = vld [vmem:[%s298 + $0x151] sm:$0xff]
          %v385 = vld [vmem:[%s298 + $0x169] sm:$0xff]
          %v386 = vld [vmem:[%s298 + $0x171] sm:$0xff]
          %v387 = vld [vmem:[%s298 + $0x189] sm:$0xff]
          %v388 = vld [vmem:[%s298 + $0x191] sm:$0xff]
          %v389 = vld [vmem:[%s298 + $0x1a9] sm:$0xff]
          %v390 = vld [vmem:[%s298 + $0x1b1] sm:$0xff]
          %v391 = vld [vmem:[%s298 + $0x1c9] sm:$0xff]
          %v392 = vld [vmem:[%s298 + $0x1d1] sm:$0xff]
          %v393 = vld [vmem:[%s298 + $0x1e9] sm:$0xff]
          %v394 = vld [vmem:[%s298 + $0x1f1] sm:$0xff]
          %v395 = vld [vmem:[%s197 + $0x7] sm:$0xff]
          %v396 = vld [vmem:[%s197 + $0xf] sm:$0xff]
          %v397 = vld [vmem:[%s197 + $0x27] sm:$0xff]
          %v398 = vld [vmem:[%s197 + $0x2f] sm:$0xff]
          %v399 = vld [vmem:[%s197 + $0x47] sm:$0xff]
          %v400 = vld [vmem:[%s197 + $0x4f] sm:$0xff]
          %v401 = vld [vmem:[%s197 + $0x67] sm:$0xff]
          %v402 = vld [vmem:[%s197 + $0x6f] sm:$0xff]
          %v403 = vld [vmem:[%s197 + $0x87] sm:$0xff]
          %v404 = vld [vmem:[%s197 + $0x8f] sm:$0xff]
          %v405 = vld [vmem:[%s197 + $0xa7] sm:$0xff]
          %v406 = vld [vmem:[%s197 + $0xaf] sm:$0xff]
          %v407 = vld [vmem:[%s197 + $0xc7] sm:$0xff]
          %v408 = vld [vmem:[%s197 + $0xcf] sm:$0xff]
          %v409 = vld [vmem:[%s197 + $0xe7] sm:$0xff]
          %v410 = vld [vmem:[%s197 + $0xef] sm:$0xff]
          %v411 = vld [vmem:[%s197 + $0x107] sm:$0xff]
          %v412 = vld [vmem:[%s197 + $0x10f] sm:$0xff]
          %v413 = vld [vmem:[%s197 + $0x127] sm:$0xff]
          %v414 = vld [vmem:[%s197 + $0x12f] sm:$0xff]
          %v415 = vld [vmem:[%s197 + $0x147] sm:$0xff]
          %v416 = vld [vmem:[%s197 + $0x14f] sm:$0xff]
          %v417 = vld [vmem:[%s197 + $0x167] sm:$0xff]
          %v418 = vld [vmem:[%s197 + $0x16f] sm:$0xff]
          %v419 = vld [vmem:[%s197 + $0x187] sm:$0xff]
          %v420 = vld [vmem:[%s197 + $0x18f] sm:$0xff]
          %v421 = vld [vmem:[%s197 + $0x1a7] sm:$0xff]
          %v422 = vld [vmem:[%s197 + $0x1af] sm:$0xff]
          %v423 = vld [vmem:[%s197 + $0x1c7] sm:$0xff]
          %v424 = vld [vmem:[%s197 + $0x1cf] sm:$0xff]
          %v425 = vld [vmem:[%s197 + $0x1e7] sm:$0xff]
          %v426 = vld [vmem:[%s197 + $0x1ef] sm:$0xff]
          %v427 = vld [vmem:[%s197 + $0x8] sm:$0xff]
          %v428 = vld [vmem:[%s197 + $0x10] sm:$0xff]
          %v429 = vld [vmem:[%s197 + $0x28] sm:$0xff]
          %v430 = vld [vmem:[%s197 + $0x30] sm:$0xff]
          %v431 = vld [vmem:[%s197 + $0x48] sm:$0xff]
          %v432 = vld [vmem:[%s197 + $0x50] sm:$0xff]
          %v433 = vld [vmem:[%s197 + $0x68] sm:$0xff]
          %v434 = vld [vmem:[%s197 + $0x70] sm:$0xff]
          %v435 = vld [vmem:[%s197 + $0x88] sm:$0xff]
          %v436 = vld [vmem:[%s197 + $0x90] sm:$0xff]
          %v437 = vld [vmem:[%s197 + $0xa8] sm:$0xff]
          %v438 = vld [vmem:[%s197 + $0xb0] sm:$0xff]
          %v439 = vld [vmem:[%s197 + $0xc8] sm:$0xff]
          %v440 = vld [vmem:[%s197 + $0xd0] sm:$0xff]
          %v441 = vld [vmem:[%s197 + $0xe8] sm:$0xff]
          %v442 = vld [vmem:[%s197 + $0xf0] sm:$0xff]
          %v443 = vld [vmem:[%s197 + $0x108] sm:$0xff]
          %v444 = vld [vmem:[%s197 + $0x110] sm:$0xff]
          %v445 = vld [vmem:[%s197 + $0x128] sm:$0xff]
          %v446 = vld [vmem:[%s197 + $0x130] sm:$0xff]
          %v447 = vld [vmem:[%s197 + $0x148] sm:$0xff]
          %v448 = vld [vmem:[%s197 + $0x150] sm:$0xff]
          %v449 = vld [vmem:[%s197 + $0x168] sm:$0xff]
          %v450 = vld [vmem:[%s197 + $0x170] sm:$0xff]
          %v451 = vld [vmem:[%s197 + $0x188] sm:$0xff]
          %v452 = vld [vmem:[%s197 + $0x190] sm:$0xff]
          %v453 = vld [vmem:[%s197 + $0x1a8] sm:$0xff]
          %v454 = vld [vmem:[%s197 + $0x1b0] sm:$0xff]
          %v455 = vld [vmem:[%s197 + $0x1c8] sm:$0xff]
          %v456 = vld [vmem:[%s197 + $0x1d0] sm:$0xff]
          %v457 = vld [vmem:[%s197 + $0x1e8] sm:$0xff]
          %v458 = vld [vmem:[%s197 + $0x1f0] sm:$0xff]
          %v459 = vld [vmem:[%s197 + $0x9] sm:$0xff]
          %v460 = vld [vmem:[%s197 + $0x11] sm:$0xff]
          %v461 = vld [vmem:[%s197 + $0x29] sm:$0xff]
          %v462 = vld [vmem:[%s197 + $0x31] sm:$0xff]
          %v463 = vld [vmem:[%s197 + $0x49] sm:$0xff]
          %v464 = vld [vmem:[%s197 + $0x51] sm:$0xff]
          %v465 = vld [vmem:[%s197 + $0x69] sm:$0xff]
          %v466 = vld [vmem:[%s197 + $0x71] sm:$0xff]
          %v467 = vld [vmem:[%s197 + $0x89] sm:$0xff]
          %v468 = vld [vmem:[%s197 + $0x91] sm:$0xff]
          %v469 = vld [vmem:[%s197 + $0xa9] sm:$0xff]
          %v470 = vld [vmem:[%s197 + $0xb1] sm:$0xff]
          %v471 = vld [vmem:[%s197 + $0xc9] sm:$0xff]
          %v472 = vld [vmem:[%s197 + $0xd1] sm:$0xff]
          %v473 = vld [vmem:[%s197 + $0xe9] sm:$0xff]
          %v474 = vld [vmem:[%s197 + $0xf1] sm:$0xff]
          %v475 = vld [vmem:[%s197 + $0x109] sm:$0xff]
          %v476 = vld [vmem:[%s197 + $0x111] sm:$0xff]
          %v477 = vld [vmem:[%s197 + $0x129] sm:$0xff]
          %v478 = vld [vmem:[%s197 + $0x131] sm:$0xff]
          %v479 = vld [vmem:[%s197 + $0x149] sm:$0xff]
          %v480 = vld [vmem:[%s197 + $0x151] sm:$0xff]
          %v481 = vld [vmem:[%s197 + $0x169] sm:$0xff]
          %v482 = vld [vmem:[%s197 + $0x171] sm:$0xff]
          %v483 = vld [vmem:[%s197 + $0x189] sm:$0xff]
          %v484 = vld [vmem:[%s197 + $0x191] sm:$0xff]
          %v485 = vld [vmem:[%s197 + $0x1a9] sm:$0xff]
          %v486 = vld [vmem:[%s197 + $0x1b1] sm:$0xff]
          %v487 = vld [vmem:[%s197 + $0x1c9] sm:$0xff]
          %v488 = vld [vmem:[%s197 + $0x1d1] sm:$0xff]
          %v489 = vld [vmem:[%s197 + $0x1e9] sm:$0xff]
          %v490 = vld [vmem:[%s197 + $0x1f1] sm:$0xff]
          %s491 = scalar_lea.vmem [#allocation2], 128
          %v492 = vld [vmem:[%s491 + $0x7] sm:$0xff]
          %v493 = vld [vmem:[%s491 + $0xf] sm:$0xff]
          %v494 = vld [vmem:[%s491 + $0x27] sm:$0xff]
          %v495 = vld [vmem:[%s491 + $0x2f] sm:$0xff]
          %v496 = vld [vmem:[%s491 + $0x47] sm:$0xff]
          %v497 = vld [vmem:[%s491 + $0x4f] sm:$0xff]
          %v498 = vld [vmem:[%s491 + $0x67] sm:$0xff]
          %v499 = vld [vmem:[%s491 + $0x6f] sm:$0xff]
          %v500 = vld [vmem:[%s491 + $0x87] sm:$0xff]
          %v501 = vld [vmem:[%s491 + $0x8f] sm:$0xff]
          %v502 = vld [vmem:[%s491 + $0xa7] sm:$0xff]
          %v503 = vld [vmem:[%s491 + $0xaf] sm:$0xff]
          %v504 = vld [vmem:[%s491 + $0xc7] sm:$0xff]
          %v505 = vld [vmem:[%s491 + $0xcf] sm:$0xff]
          %v506 = vld [vmem:[%s491 + $0xe7] sm:$0xff]
          %v507 = vld [vmem:[%s491 + $0xef] sm:$0xff]
          %v508 = vld [vmem:[%s491 + $0x107] sm:$0xff]
          %v509 = vld [vmem:[%s491 + $0x10f] sm:$0xff]
          %v510 = vld [vmem:[%s491 + $0x127] sm:$0xff]
          %v511 = vld [vmem:[%s491 + $0x12f] sm:$0xff]
          %v512 = vld [vmem:[%s491 + $0x147] sm:$0xff]
          %v513 = vld [vmem:[%s491 + $0x14f] sm:$0xff]
          %v514 = vld [vmem:[%s491 + $0x167] sm:$0xff]
          %v515 = vld [vmem:[%s491 + $0x16f] sm:$0xff]
          %v516 = vld [vmem:[%s491 + $0x187] sm:$0xff]
          %v517 = vld [vmem:[%s491 + $0x18f] sm:$0xff]
          %v518 = vld [vmem:[%s491 + $0x1a7] sm:$0xff]
          %v519 = vld [vmem:[%s491 + $0x1af] sm:$0xff]
          %v520 = vld [vmem:[%s491 + $0x1c7] sm:$0xff]
          %v521 = vld [vmem:[%s491 + $0x1cf] sm:$0xff]
          %v522 = vld [vmem:[%s491 + $0x1e7] sm:$0xff]
          %v523 = vld [vmem:[%s491 + $0x1ef] sm:$0xff]
          %v524 = vld [vmem:[%s491 + $0x8] sm:$0xff]
          %v525 = vld [vmem:[%s491 + $0x10] sm:$0xff]
          %v526 = vld [vmem:[%s491 + $0x28] sm:$0xff]
          %v527 = vld [vmem:[%s491 + $0x30] sm:$0xff]
          %v528 = vld [vmem:[%s491 + $0x48] sm:$0xff]
          %v529 = vld [vmem:[%s491 + $0x50] sm:$0xff]
          %v530 = vld [vmem:[%s491 + $0x68] sm:$0xff]
          %v531 = vld [vmem:[%s491 + $0x70] sm:$0xff]
          %v532 = vld [vmem:[%s491 + $0x88] sm:$0xff]
          %v533 = vld [vmem:[%s491 + $0x90] sm:$0xff]
          %v534 = vld [vmem:[%s491 + $0xa8] sm:$0xff]
          %v535 = vld [vmem:[%s491 + $0xb0] sm:$0xff]
          %v536 = vld [vmem:[%s491 + $0xc8] sm:$0xff]
          %v537 = vld [vmem:[%s491 + $0xd0] sm:$0xff]
          %v538 = vld [vmem:[%s491 + $0xe8] sm:$0xff]
          %v539 = vld [vmem:[%s491 + $0xf0] sm:$0xff]
          %v540 = vld [vmem:[%s491 + $0x108] sm:$0xff]
          %v541 = vld [vmem:[%s491 + $0x110] sm:$0xff]
          %v542 = vld [vmem:[%s491 + $0x128] sm:$0xff]
          %v543 = vld [vmem:[%s491 + $0x130] sm:$0xff]
          %v544 = vld [vmem:[%s491 + $0x148] sm:$0xff]
          %v545 = vld [vmem:[%s491 + $0x150] sm:$0xff]
          %v546 = vld [vmem:[%s491 + $0x168] sm:$0xff]
          %v547 = vld [vmem:[%s491 + $0x170] sm:$0xff]
          %v548 = vld [vmem:[%s491 + $0x188] sm:$0xff]
          %v549 = vld [vmem:[%s491 + $0x190] sm:$0xff]
          %v550 = vld [vmem:[%s491 + $0x1a8] sm:$0xff]
          %v551 = vld [vmem:[%s491 + $0x1b0] sm:$0xff]
          %v552 = vld [vmem:[%s491 + $0x1c8] sm:$0xff]
          %v553 = vld [vmem:[%s491 + $0x1d0] sm:$0xff]
          %v554 = vld [vmem:[%s491 + $0x1e8] sm:$0xff]
          %v555 = vld [vmem:[%s491 + $0x1f0] sm:$0xff]
          %v556 = vld [vmem:[%s491 + $0x9] sm:$0xff]
          %v557 = vld [vmem:[%s491 + $0x11] sm:$0xff]
          %v558 = vld [vmem:[%s491 + $0x29] sm:$0xff]
          %v559 = vld [vmem:[%s491 + $0x31] sm:$0xff]
          %v560 = vld [vmem:[%s491 + $0x49] sm:$0xff]
          %v561 = vld [vmem:[%s491 + $0x51] sm:$0xff]
          %v562 = vld [vmem:[%s491 + $0x69] sm:$0xff]
          %v563 = vld [vmem:[%s491 + $0x71] sm:$0xff]
          %v564 = vld [vmem:[%s491 + $0x89] sm:$0xff]
          %v565 = vld [vmem:[%s491 + $0x91] sm:$0xff]
          %v566 = vld [vmem:[%s491 + $0xa9] sm:$0xff]
          %v567 = vld [vmem:[%s491 + $0xb1] sm:$0xff]
          %v568 = vld [vmem:[%s491 + $0xc9] sm:$0xff]
          %v569 = vld [vmem:[%s491 + $0xd1] sm:$0xff]
          %v570 = vld [vmem:[%s491 + $0xe9] sm:$0xff]
          %v571 = vld [vmem:[%s491 + $0xf1] sm:$0xff]
          %v572 = vld [vmem:[%s491 + $0x109] sm:$0xff]
          %v573 = vld [vmem:[%s491 + $0x111] sm:$0xff]
          %v574 = vld [vmem:[%s491 + $0x129] sm:$0xff]
          %v575 = vld [vmem:[%s491 + $0x131] sm:$0xff]
          %v576 = vld [vmem:[%s491 + $0x149] sm:$0xff]
          %v577 = vld [vmem:[%s491 + $0x151] sm:$0xff]
          %v578 = vld [vmem:[%s491 + $0x169] sm:$0xff]
          %v579 = vld [vmem:[%s491 + $0x171] sm:$0xff]
          %v580 = vld [vmem:[%s491 + $0x189] sm:$0xff]
          %v581 = vld [vmem:[%s491 + $0x191] sm:$0xff]
          %v582 = vld [vmem:[%s491 + $0x1a9] sm:$0xff]
          %v583 = vld [vmem:[%s491 + $0x1b1] sm:$0xff]
          %v584 = vld [vmem:[%s491 + $0x1c9] sm:$0xff]
          %v585 = vld [vmem:[%s491 + $0x1d1] sm:$0xff]
          %v586 = vld [vmem:[%s491 + $0x1e9] sm:$0xff]
          %v587 = vld [vmem:[%s491 + $0x1f1] sm:$0xff]
          %620 = vrot.lane.b32.xlu0 %v331, 4
          %v621 = vpop.permute.xlu0 %620
          %622 = vrot.lane.b32.xlu0 %v332, 4
          %v623 = vpop.permute.xlu0 %622
          %624 = vrot.lane.b32.xlu0 %v333, 4
          %v625 = vpop.permute.xlu0 %624
          %626 = vrot.lane.b32.xlu0 %v334, 4
          %v627 = vpop.permute.xlu0 %626
          %628 = vrot.lane.b32.xlu0 %v335, 4
          %v629 = vpop.permute.xlu0 %628
          %630 = vrot.lane.b32.xlu0 %v336, 4
          %v631 = vpop.permute.xlu0 %630
          %632 = vrot.lane.b32.xlu0 %v337, 4
          %v633 = vpop.permute.xlu0 %632
          %634 = vrot.lane.b32.xlu0 %v338, 4
          %v635 = vpop.permute.xlu0 %634
          %636 = vrot.lane.b32.xlu0 %v339, 4
          %v637 = vpop.permute.xlu0 %636
          %638 = vrot.lane.b32.xlu0 %v340, 4
          %v639 = vpop.permute.xlu0 %638
          %640 = vrot.lane.b32.xlu0 %v341, 4
          %v641 = vpop.permute.xlu0 %640
          %642 = vrot.lane.b32.xlu0 %v342, 4
          %v643 = vpop.permute.xlu0 %642
          %644 = vrot.lane.b32.xlu0 %v343, 4
          %v645 = vpop.permute.xlu0 %644
          %646 = vrot.lane.b32.xlu0 %v344, 4
          %v647 = vpop.permute.xlu0 %646
          %648 = vrot.lane.b32.xlu0 %v345, 4
          %v649 = vpop.permute.xlu0 %648
          %650 = vrot.lane.b32.xlu0 %v346, 4
          %v651 = vpop.permute.xlu0 %650
          %652 = vrot.lane.b32.xlu0 %v347, 4
          %v653 = vpop.permute.xlu0 %652
          %654 = vrot.lane.b32.xlu0 %v348, 4
          %v655 = vpop.permute.xlu0 %654
          %656 = vrot.lane.b32.xlu0 %v349, 4
          %v657 = vpop.permute.xlu0 %656
          %658 = vrot.lane.b32.xlu0 %v350, 4
          %v659 = vpop.permute.xlu0 %658
          %660 = vrot.lane.b32.xlu0 %v351, 4
          %v661 = vpop.permute.xlu0 %660
          %662 = vrot.lane.b32.xlu0 %v352, 4
          %v663 = vpop.permute.xlu0 %662
          %664 = vrot.lane.b32.xlu0 %v353, 4
          %v665 = vpop.permute.xlu0 %664
          %666 = vrot.lane.b32.xlu0 %v354, 4
          %v667 = vpop.permute.xlu0 %666
          %668 = vrot.lane.b32.xlu0 %v355, 4
          %v669 = vpop.permute.xlu0 %668
          %670 = vrot.lane.b32.xlu0 %v356, 4
          %v671 = vpop.permute.xlu0 %670
          %672 = vrot.lane.b32.xlu0 %v357, 4
          %v673 = vpop.permute.xlu0 %672
          %674 = vrot.lane.b32.xlu0 %v358, 4
          %v675 = vpop.permute.xlu0 %674
          %676 = vrot.lane.b32.xlu0 %v359, 4
          %v677 = vpop.permute.xlu0 %676
          %678 = vrot.lane.b32.xlu0 %v360, 4
          %v679 = vpop.permute.xlu0 %678
          %680 = vrot.lane.b32.xlu0 %v361, 4
          %v681 = vpop.permute.xlu0 %680
          %682 = vrot.lane.b32.xlu0 %v362, 4
          %v683 = vpop.permute.xlu0 %682
          %748 = vrot.lane.b32.xlu0 %v363, 8
          %v749 = vpop.permute.xlu0 %748
          %750 = vrot.lane.b32.xlu0 %v364, 8
          %v751 = vpop.permute.xlu0 %750
          %752 = vrot.lane.b32.xlu0 %v365, 8
          %v753 = vpop.permute.xlu0 %752
          %754 = vrot.lane.b32.xlu0 %v366, 8
          %v755 = vpop.permute.xlu0 %754
          %756 = vrot.lane.b32.xlu0 %v367, 8
          %v757 = vpop.permute.xlu0 %756
          %758 = vrot.lane.b32.xlu0 %v368, 8
          %v759 = vpop.permute.xlu0 %758
          %760 = vrot.lane.b32.xlu0 %v369, 8
          %v761 = vpop.permute.xlu0 %760
          %762 = vrot.lane.b32.xlu0 %v370, 8
          %v763 = vpop.permute.xlu0 %762
          %764 = vrot.lane.b32.xlu0 %v371, 8
          %v765 = vpop.permute.xlu0 %764
          %766 = vrot.lane.b32.xlu0 %v372, 8
          %v767 = vpop.permute.xlu0 %766
          %768 = vrot.lane.b32.xlu0 %v373, 8
          %v769 = vpop.permute.xlu0 %768
          %770 = vrot.lane.b32.xlu0 %v374, 8
          %v771 = vpop.permute.xlu0 %770
          %772 = vrot.lane.b32.xlu0 %v375, 8
          %v773 = vpop.permute.xlu0 %772
          %774 = vrot.lane.b32.xlu0 %v376, 8
          %v775 = vpop.permute.xlu0 %774
          %776 = vrot.lane.b32.xlu0 %v377, 8
          %v777 = vpop.permute.xlu0 %776
          %778 = vrot.lane.b32.xlu0 %v378, 8
          %v779 = vpop.permute.xlu0 %778
          %780 = vrot.lane.b32.xlu0 %v379, 8
          %v781 = vpop.permute.xlu0 %780
          %782 = vrot.lane.b32.xlu0 %v380, 8
          %v783 = vpop.permute.xlu0 %782
          %784 = vrot.lane.b32.xlu0 %v381, 8
          %v785 = vpop.permute.xlu0 %784
          %786 = vrot.lane.b32.xlu0 %v382, 8
          %v787 = vpop.permute.xlu0 %786
          %788 = vrot.lane.b32.xlu0 %v383, 8
          %v789 = vpop.permute.xlu0 %788
          %790 = vrot.lane.b32.xlu0 %v384, 8
          %v791 = vpop.permute.xlu0 %790
          %792 = vrot.lane.b32.xlu0 %v385, 8
          %v793 = vpop.permute.xlu0 %792
          %794 = vrot.lane.b32.xlu0 %v386, 8
          %v795 = vpop.permute.xlu0 %794
          %796 = vrot.lane.b32.xlu0 %v387, 8
          %v797 = vpop.permute.xlu0 %796
          %798 = vrot.lane.b32.xlu0 %v388, 8
          %v799 = vpop.permute.xlu0 %798
          %800 = vrot.lane.b32.xlu0 %v389, 8
          %v801 = vpop.permute.xlu0 %800
          %802 = vrot.lane.b32.xlu0 %v390, 8
          %v803 = vpop.permute.xlu0 %802
          %804 = vrot.lane.b32.xlu0 %v391, 8
          %v805 = vpop.permute.xlu0 %804
          %806 = vrot.lane.b32.xlu0 %v392, 8
          %v807 = vpop.permute.xlu0 %806
          %808 = vrot.lane.b32.xlu0 %v393, 8
          %v809 = vpop.permute.xlu0 %808
          %810 = vrot.lane.b32.xlu0 %v394, 8
          %v811 = vpop.permute.xlu0 %810
          %876 = vrot.lane.b32.xlu0 %v395, 12
          %v877 = vpop.permute.xlu0 %876
          %878 = vrot.lane.b32.xlu0 %v396, 12
          %v879 = vpop.permute.xlu0 %878
          %880 = vrot.lane.b32.xlu0 %v397, 12
          %v881 = vpop.permute.xlu0 %880
          %882 = vrot.lane.b32.xlu0 %v398, 12
          %v883 = vpop.permute.xlu0 %882
          %884 = vrot.lane.b32.xlu0 %v399, 12
          %v885 = vpop.permute.xlu0 %884
          %886 = vrot.lane.b32.xlu0 %v400, 12
          %v887 = vpop.permute.xlu0 %886
          %888 = vrot.lane.b32.xlu0 %v401, 12
          %v889 = vpop.permute.xlu0 %888
          %890 = vrot.lane.b32.xlu0 %v402, 12
          %v891 = vpop.permute.xlu0 %890
          %892 = vrot.lane.b32.xlu0 %v403, 12
          %v893 = vpop.permute.xlu0 %892
          %894 = vrot.lane.b32.xlu0 %v404, 12
          %v895 = vpop.permute.xlu0 %894
          %896 = vrot.lane.b32.xlu0 %v405, 12
          %v897 = vpop.permute.xlu0 %896
          %898 = vrot.lane.b32.xlu0 %v406, 12
          %v899 = vpop.permute.xlu0 %898
          %900 = vrot.lane.b32.xlu0 %v407, 12
          %v901 = vpop.permute.xlu0 %900
          %902 = vrot.lane.b32.xlu0 %v408, 12
          %v903 = vpop.permute.xlu0 %902
          %904 = vrot.lane.b32.xlu0 %v409, 12
          %v905 = vpop.permute.xlu0 %904
          %906 = vrot.lane.b32.xlu0 %v410, 12
          %v907 = vpop.permute.xlu0 %906
          %908 = vrot.lane.b32.xlu0 %v411, 12
          %v909 = vpop.permute.xlu0 %908
          %910 = vrot.lane.b32.xlu0 %v412, 12
          %v911 = vpop.permute.xlu0 %910
          %912 = vrot.lane.b32.xlu0 %v413, 12
          %v913 = vpop.permute.xlu0 %912
          %914 = vrot.lane.b32.xlu0 %v414, 12
          %v915 = vpop.permute.xlu0 %914
          %916 = vrot.lane.b32.xlu0 %v415, 12
          %v917 = vpop.permute.xlu0 %916
          %918 = vrot.lane.b32.xlu0 %v416, 12
          %v919 = vpop.permute.xlu0 %918
          %920 = vrot.lane.b32.xlu0 %v417, 12
          %v921 = vpop.permute.xlu0 %920
          %922 = vrot.lane.b32.xlu0 %v418, 12
          %v923 = vpop.permute.xlu0 %922
          %924 = vrot.lane.b32.xlu0 %v419, 12
          %v925 = vpop.permute.xlu0 %924
          %926 = vrot.lane.b32.xlu0 %v420, 12
          %v927 = vpop.permute.xlu0 %926
          %928 = vrot.lane.b32.xlu0 %v421, 12
          %v929 = vpop.permute.xlu0 %928
          %930 = vrot.lane.b32.xlu0 %v422, 12
          %v931 = vpop.permute.xlu0 %930
          %932 = vrot.lane.b32.xlu0 %v423, 12
          %v933 = vpop.permute.xlu0 %932
          %934 = vrot.lane.b32.xlu0 %v424, 12
          %v935 = vpop.permute.xlu0 %934
          %936 = vrot.lane.b32.xlu0 %v425, 12
          %v937 = vpop.permute.xlu0 %936
          %938 = vrot.lane.b32.xlu0 %v426, 12
          %v939 = vpop.permute.xlu0 %938
          %1004 = vrot.lane.b32.xlu0 %v427, 16
          %v1005 = vpop.permute.xlu0 %1004
          %1006 = vrot.lane.b32.xlu0 %v428, 16
          %v1007 = vpop.permute.xlu0 %1006
          %1008 = vrot.lane.b32.xlu0 %v429, 16
          %v1009 = vpop.permute.xlu0 %1008
          %1010 = vrot.lane.b32.xlu0 %v430, 16
          %v1011 = vpop.permute.xlu0 %1010
          %1012 = vrot.lane.b32.xlu0 %v431, 16
          %v1013 = vpop.permute.xlu0 %1012
          %1014 = vrot.lane.b32.xlu0 %v432, 16
          %v1015 = vpop.permute.xlu0 %1014
          %1016 = vrot.lane.b32.xlu0 %v433, 16
          %v1017 = vpop.permute.xlu0 %1016
          %1018 = vrot.lane.b32.xlu0 %v434, 16
          %v1019 = vpop.permute.xlu0 %1018
          %1020 = vrot.lane.b32.xlu0 %v435, 16
          %v1021 = vpop.permute.xlu0 %1020
          %1022 = vrot.lane.b32.xlu0 %v436, 16
          %v1023 = vpop.permute.xlu0 %1022
          %1024 = vrot.lane.b32.xlu0 %v437, 16
          %v1025 = vpop.permute.xlu0 %1024
          %1026 = vrot.lane.b32.xlu0 %v438, 16
          %v1027 = vpop.permute.xlu0 %1026
          %1028 = vrot.lane.b32.xlu0 %v439, 16
          %v1029 = vpop.permute.xlu0 %1028
          %1030 = vrot.lane.b32.xlu0 %v440, 16
          %v1031 = vpop.permute.xlu0 %1030
          %1032 = vrot.lane.b32.xlu0 %v441, 16
          %v1033 = vpop.permute.xlu0 %1032
          %1034 = vrot.lane.b32.xlu0 %v442, 16
          %v1035 = vpop.permute.xlu0 %1034
          %1036 = vrot.lane.b32.xlu0 %v443, 16
          %v1037 = vpop.permute.xlu0 %1036
          %1038 = vrot.lane.b32.xlu0 %v444, 16
          %v1039 = vpop.permute.xlu0 %1038
          %1040 = vrot.lane.b32.xlu0 %v445, 16
          %v1041 = vpop.permute.xlu0 %1040
          %1042 = vrot.lane.b32.xlu0 %v446, 16
          %v1043 = vpop.permute.xlu0 %1042
          %1044 = vrot.lane.b32.xlu0 %v447, 16
          %v1045 = vpop.permute.xlu0 %1044
          %1046 = vrot.lane.b32.xlu0 %v448, 16
          %v1047 = vpop.permute.xlu0 %1046
          %1048 = vrot.lane.b32.xlu0 %v449, 16
          %v1049 = vpop.permute.xlu0 %1048
          %1050 = vrot.lane.b32.xlu0 %v450, 16
          %v1051 = vpop.permute.xlu0 %1050
          %1052 = vrot.lane.b32.xlu0 %v451, 16
          %v1053 = vpop.permute.xlu0 %1052
          %1054 = vrot.lane.b32.xlu0 %v452, 16
          %v1055 = vpop.permute.xlu0 %1054
          %1056 = vrot.lane.b32.xlu0 %v453, 16
          %v1057 = vpop.permute.xlu0 %1056
          %1058 = vrot.lane.b32.xlu0 %v454, 16
          %v1059 = vpop.permute.xlu0 %1058
          %1060 = vrot.lane.b32.xlu0 %v455, 16
          %v1061 = vpop.permute.xlu0 %1060
          %1062 = vrot.lane.b32.xlu0 %v456, 16
          %v1063 = vpop.permute.xlu0 %1062
          %1064 = vrot.lane.b32.xlu0 %v457, 16
          %v1065 = vpop.permute.xlu0 %1064
          %1066 = vrot.lane.b32.xlu0 %v458, 16
          %v1067 = vpop.permute.xlu0 %1066
          %1132 = vrot.lane.b32.xlu0 %v459, 20
          %v1133 = vpop.permute.xlu0 %1132
          %1134 = vrot.lane.b32.xlu0 %v460, 20
          %v1135 = vpop.permute.xlu0 %1134
          %1136 = vrot.lane.b32.xlu0 %v461, 20
          %v1137 = vpop.permute.xlu0 %1136
          %1138 = vrot.lane.b32.xlu0 %v462, 20
          %v1139 = vpop.permute.xlu0 %1138
          %1140 = vrot.lane.b32.xlu0 %v463, 20
          %v1141 = vpop.permute.xlu0 %1140
          %1142 = vrot.lane.b32.xlu0 %v464, 20
          %v1143 = vpop.permute.xlu0 %1142
          %1144 = vrot.lane.b32.xlu0 %v465, 20
          %v1145 = vpop.permute.xlu0 %1144
          %1146 = vrot.lane.b32.xlu0 %v466, 20
          %v1147 = vpop.permute.xlu0 %1146
          %1148 = vrot.lane.b32.xlu0 %v467, 20
          %v1149 = vpop.permute.xlu0 %1148
          %1150 = vrot.lane.b32.xlu0 %v468, 20
          %v1151 = vpop.permute.xlu0 %1150
          %1152 = vrot.lane.b32.xlu0 %v469, 20
          %v1153 = vpop.permute.xlu0 %1152
          %1154 = vrot.lane.b32.xlu0 %v470, 20
          %v1155 = vpop.permute.xlu0 %1154
          %1156 = vrot.lane.b32.xlu0 %v471, 20
          %v1157 = vpop.permute.xlu0 %1156
          %1158 = vrot.lane.b32.xlu0 %v472, 20
          %v1159 = vpop.permute.xlu0 %1158
          %1160 = vrot.lane.b32.xlu0 %v473, 20
          %v1161 = vpop.permute.xlu0 %1160
          %1162 = vrot.lane.b32.xlu0 %v474, 20
          %v1163 = vpop.permute.xlu0 %1162
          %1164 = vrot.lane.b32.xlu0 %v475, 20
          %v1165 = vpop.permute.xlu0 %1164
          %1166 = vrot.lane.b32.xlu0 %v476, 20
          %v1167 = vpop.permute.xlu0 %1166
          %1168 = vrot.lane.b32.xlu0 %v477, 20
          %v1169 = vpop.permute.xlu0 %1168
          %1170 = vrot.lane.b32.xlu0 %v478, 20
          %v1171 = vpop.permute.xlu0 %1170
          %1172 = vrot.lane.b32.xlu0 %v479, 20
          %v1173 = vpop.permute.xlu0 %1172
          %1174 = vrot.lane.b32.xlu0 %v480, 20
          %v1175 = vpop.permute.xlu0 %1174
          %1176 = vrot.lane.b32.xlu0 %v481, 20
          %v1177 = vpop.permute.xlu0 %1176
          %1178 = vrot.lane.b32.xlu0 %v482, 20
          %v1179 = vpop.permute.xlu0 %1178
          %1180 = vrot.lane.b32.xlu0 %v483, 20
          %v1181 = vpop.permute.xlu0 %1180
          %1182 = vrot.lane.b32.xlu0 %v484, 20
          %v1183 = vpop.permute.xlu0 %1182
          %1184 = vrot.lane.b32.xlu0 %v485, 20
          %v1185 = vpop.permute.xlu0 %1184
          %1186 = vrot.lane.b32.xlu0 %v486, 20
          %v1187 = vpop.permute.xlu0 %1186
          %1188 = vrot.lane.b32.xlu0 %v487, 20
          %v1189 = vpop.permute.xlu0 %1188
          %1190 = vrot.lane.b32.xlu0 %v488, 20
          %v1191 = vpop.permute.xlu0 %1190
          %1192 = vrot.lane.b32.xlu0 %v489, 20
          %v1193 = vpop.permute.xlu0 %1192
          %1194 = vrot.lane.b32.xlu0 %v490, 20
          %v1195 = vpop.permute.xlu0 %1194
          %1260 = vrot.lane.b32.xlu0 %v492, 24
          %v1261 = vpop.permute.xlu0 %1260
          %1262 = vrot.lane.b32.xlu0 %v493, 24
          %v1263 = vpop.permute.xlu0 %1262
          %1264 = vrot.lane.b32.xlu0 %v494, 24
          %v1265 = vpop.permute.xlu0 %1264
          %1266 = vrot.lane.b32.xlu0 %v495, 24
          %v1267 = vpop.permute.xlu0 %1266
          %1268 = vrot.lane.b32.xlu0 %v496, 24
          %v1269 = vpop.permute.xlu0 %1268
          %1270 = vrot.lane.b32.xlu0 %v497, 24
          %v1271 = vpop.permute.xlu0 %1270
          %1272 = vrot.lane.b32.xlu0 %v498, 24
          %v1273 = vpop.permute.xlu0 %1272
          %1274 = vrot.lane.b32.xlu0 %v499, 24
          %v1275 = vpop.permute.xlu0 %1274
          %1276 = vrot.lane.b32.xlu0 %v500, 24
          %v1277 = vpop.permute.xlu0 %1276
          %1278 = vrot.lane.b32.xlu0 %v501, 24
          %v1279 = vpop.permute.xlu0 %1278
          %1280 = vrot.lane.b32.xlu0 %v502, 24
          %v1281 = vpop.permute.xlu0 %1280
          %1282 = vrot.lane.b32.xlu0 %v503, 24
          %v1283 = vpop.permute.xlu0 %1282
          %1284 = vrot.lane.b32.xlu0 %v504, 24
          %v1285 = vpop.permute.xlu0 %1284
          %1286 = vrot.lane.b32.xlu0 %v505, 24
          %v1287 = vpop.permute.xlu0 %1286
          %1288 = vrot.lane.b32.xlu0 %v506, 24
          %v1289 = vpop.permute.xlu0 %1288
          %1290 = vrot.lane.b32.xlu0 %v507, 24
          %v1291 = vpop.permute.xlu0 %1290
          %1292 = vrot.lane.b32.xlu0 %v508, 24
          %v1293 = vpop.permute.xlu0 %1292
          %1294 = vrot.lane.b32.xlu0 %v509, 24
          %v1295 = vpop.permute.xlu0 %1294
          %1296 = vrot.lane.b32.xlu0 %v510, 24
          %v1297 = vpop.permute.xlu0 %1296
          %1298 = vrot.lane.b32.xlu0 %v511, 24
          %v1299 = vpop.permute.xlu0 %1298
          %1300 = vrot.lane.b32.xlu0 %v512, 24
          %v1301 = vpop.permute.xlu0 %1300
          %1302 = vrot.lane.b32.xlu0 %v513, 24
          %v1303 = vpop.permute.xlu0 %1302
          %1304 = vrot.lane.b32.xlu0 %v514, 24
          %v1305 = vpop.permute.xlu0 %1304
          %1306 = vrot.lane.b32.xlu0 %v515, 24
          %v1307 = vpop.permute.xlu0 %1306
          %1308 = vrot.lane.b32.xlu0 %v516, 24
          %v1309 = vpop.permute.xlu0 %1308
          %1310 = vrot.lane.b32.xlu0 %v517, 24
          %v1311 = vpop.permute.xlu0 %1310
          %1312 = vrot.lane.b32.xlu0 %v518, 24
          %v1313 = vpop.permute.xlu0 %1312
          %1314 = vrot.lane.b32.xlu0 %v519, 24
          %v1315 = vpop.permute.xlu0 %1314
          %1316 = vrot.lane.b32.xlu0 %v520, 24
          %v1317 = vpop.permute.xlu0 %1316
          %1318 = vrot.lane.b32.xlu0 %v521, 24
          %v1319 = vpop.permute.xlu0 %1318
          %1320 = vrot.lane.b32.xlu0 %v522, 24
          %v1321 = vpop.permute.xlu0 %1320
          %1322 = vrot.lane.b32.xlu0 %v523, 24
          %v1323 = vpop.permute.xlu0 %1322
          %1388 = vrot.lane.b32.xlu0 %v524, 28
          %v1389 = vpop.permute.xlu0 %1388
          %1390 = vrot.lane.b32.xlu0 %v525, 28
          %v1391 = vpop.permute.xlu0 %1390
          %1392 = vrot.lane.b32.xlu0 %v526, 28
          %v1393 = vpop.permute.xlu0 %1392
          %1394 = vrot.lane.b32.xlu0 %v527, 28
          %v1395 = vpop.permute.xlu0 %1394
          %1396 = vrot.lane.b32.xlu0 %v528, 28
          %v1397 = vpop.permute.xlu0 %1396
          %1398 = vrot.lane.b32.xlu0 %v529, 28
          %v1399 = vpop.permute.xlu0 %1398
          %1400 = vrot.lane.b32.xlu0 %v530, 28
          %v1401 = vpop.permute.xlu0 %1400
          %1402 = vrot.lane.b32.xlu0 %v531, 28
          %v1403 = vpop.permute.xlu0 %1402
          %1404 = vrot.lane.b32.xlu0 %v532, 28
          %v1405 = vpop.permute.xlu0 %1404
          %1406 = vrot.lane.b32.xlu0 %v533, 28
          %v1407 = vpop.permute.xlu0 %1406
          %1408 = vrot.lane.b32.xlu0 %v534, 28
          %v1409 = vpop.permute.xlu0 %1408
          %1410 = vrot.lane.b32.xlu0 %v535, 28
          %v1411 = vpop.permute.xlu0 %1410
          %1412 = vrot.lane.b32.xlu0 %v536, 28
          %v1413 = vpop.permute.xlu0 %1412
          %1414 = vrot.lane.b32.xlu0 %v537, 28
          %v1415 = vpop.permute.xlu0 %1414
          %1416 = vrot.lane.b32.xlu0 %v538, 28
          %v1417 = vpop.permute.xlu0 %1416
          %1418 = vrot.lane.b32.xlu0 %v539, 28
          %v1419 = vpop.permute.xlu0 %1418
          %1420 = vrot.lane.b32.xlu0 %v540, 28
          %v1421 = vpop.permute.xlu0 %1420
          %1422 = vrot.lane.b32.xlu0 %v541, 28
          %v1423 = vpop.permute.xlu0 %1422
          %1424 = vrot.lane.b32.xlu0 %v542, 28
          %v1425 = vpop.permute.xlu0 %1424
          %1426 = vrot.lane.b32.xlu0 %v543, 28
          %v1427 = vpop.permute.xlu0 %1426
          %1428 = vrot.lane.b32.xlu0 %v544, 28
          %v1429 = vpop.permute.xlu0 %1428
          %1430 = vrot.lane.b32.xlu0 %v545, 28
          %v1431 = vpop.permute.xlu0 %1430
          %1432 = vrot.lane.b32.xlu0 %v546, 28
          %v1433 = vpop.permute.xlu0 %1432
          %1434 = vrot.lane.b32.xlu0 %v547, 28
          %v1435 = vpop.permute.xlu0 %1434
          %1436 = vrot.lane.b32.xlu0 %v548, 28
          %v1437 = vpop.permute.xlu0 %1436
          %1438 = vrot.lane.b32.xlu0 %v549, 28
          %v1439 = vpop.permute.xlu0 %1438
          %1440 = vrot.lane.b32.xlu0 %v550, 28
          %v1441 = vpop.permute.xlu0 %1440
          %1442 = vrot.lane.b32.xlu0 %v551, 28
          %v1443 = vpop.permute.xlu0 %1442
          %1444 = vrot.lane.b32.xlu0 %v552, 28
          %v1445 = vpop.permute.xlu0 %1444
          %1446 = vrot.lane.b32.xlu0 %v553, 28
          %v1447 = vpop.permute.xlu0 %1446
          %1448 = vrot.lane.b32.xlu0 %v554, 28
          %v1449 = vpop.permute.xlu0 %1448
          %1450 = vrot.lane.b32.xlu0 %v555, 28
          %v1451 = vpop.permute.xlu0 %1450
          %1516 = vrot.lane.b32.xlu0 %v556, 32
          %v1517 = vpop.permute.xlu0 %1516
          %1518 = vrot.lane.b32.xlu0 %v557, 32
          %v1519 = vpop.permute.xlu0 %1518
          %1520 = vrot.lane.b32.xlu0 %v558, 32
          %v1521 = vpop.permute.xlu0 %1520
          %1522 = vrot.lane.b32.xlu0 %v559, 32
          %v1523 = vpop.permute.xlu0 %1522
          %1524 = vrot.lane.b32.xlu0 %v560, 32
          %v1525 = vpop.permute.xlu0 %1524
          %1526 = vrot.lane.b32.xlu0 %v561, 32
          %v1527 = vpop.permute.xlu0 %1526
          %1528 = vrot.lane.b32.xlu0 %v562, 32
          %v1529 = vpop.permute.xlu0 %1528
          %1530 = vrot.lane.b32.xlu0 %v563, 32
          %v1531 = vpop.permute.xlu0 %1530
          %1532 = vrot.lane.b32.xlu0 %v564, 32
          %v1533 = vpop.permute.xlu0 %1532
          %1534 = vrot.lane.b32.xlu0 %v565, 32
          %v1535 = vpop.permute.xlu0 %1534
          %1536 = vrot.lane.b32.xlu0 %v566, 32
          %v1537 = vpop.permute.xlu0 %1536
          %1538 = vrot.lane.b32.xlu0 %v567, 32
          %v1539 = vpop.permute.xlu0 %1538
          %1540 = vrot.lane.b32.xlu0 %v568, 32
          %v1541 = vpop.permute.xlu0 %1540
          %1542 = vrot.lane.b32.xlu0 %v569, 32
          %v1543 = vpop.permute.xlu0 %1542
          %1544 = vrot.lane.b32.xlu0 %v570, 32
          %v1545 = vpop.permute.xlu0 %1544
          %1546 = vrot.lane.b32.xlu0 %v571, 32
          %v1547 = vpop.permute.xlu0 %1546
          %1548 = vrot.lane.b32.xlu0 %v572, 32
          %v1549 = vpop.permute.xlu0 %1548
          %1550 = vrot.lane.b32.xlu0 %v573, 32
          %v1551 = vpop.permute.xlu0 %1550
          %1552 = vrot.lane.b32.xlu0 %v574, 32
          %v1553 = vpop.permute.xlu0 %1552
          %1554 = vrot.lane.b32.xlu0 %v575, 32
          %v1555 = vpop.permute.xlu0 %1554
          %1556 = vrot.lane.b32.xlu0 %v576, 32
          %v1557 = vpop.permute.xlu0 %1556
          %1558 = vrot.lane.b32.xlu0 %v577, 32
          %v1559 = vpop.permute.xlu0 %1558
          %1560 = vrot.lane.b32.xlu0 %v578, 32
          %v1561 = vpop.permute.xlu0 %1560
          %1562 = vrot.lane.b32.xlu0 %v579, 32
          %v1563 = vpop.permute.xlu0 %1562
          %1564 = vrot.lane.b32.xlu0 %v580, 32
          %v1565 = vpop.permute.xlu0 %1564
          %1566 = vrot.lane.b32.xlu0 %v581, 32
          %v1567 = vpop.permute.xlu0 %1566
          %1568 = vrot.lane.b32.xlu0 %v582, 32
          %v1569 = vpop.permute.xlu0 %1568
          %1570 = vrot.lane.b32.xlu0 %v583, 32
          %v1571 = vpop.permute.xlu0 %1570
          %1572 = vrot.lane.b32.xlu0 %v584, 32
          %v1573 = vpop.permute.xlu0 %1572
          %1574 = vrot.lane.b32.xlu0 %v585, 32
          %v1575 = vpop.permute.xlu0 %1574
          %1576 = vrot.lane.b32.xlu0 %v586, 32
          %v1577 = vpop.permute.xlu0 %1576
          %1578 = vrot.lane.b32.xlu0 %v587, 32
          %v1579 = vpop.permute.xlu0 %1578
          %v1612 = vsel %vm170, %v299, %v621
          %v1613 = vsel %vm170, %v300, %v623
          %v1614 = vsel %vm170, %v301, %v625
          %v1615 = vsel %vm170, %v302, %v627
          %v1616 = vsel %vm170, %v303, %v629
          %v1617 = vsel %vm170, %v304, %v631
          %v1618 = vsel %vm170, %v305, %v633
          %v1619 = vsel %vm170, %v306, %v635
          %v1620 = vsel %vm170, %v307, %v637
          %v1621 = vsel %vm170, %v308, %v639
          %v1622 = vsel %vm170, %v309, %v641
          %v1623 = vsel %vm170, %v310, %v643
          %v1624 = vsel %vm170, %v311, %v645
          %v1625 = vsel %vm170, %v312, %v647
          %v1626 = vsel %vm170, %v313, %v649
          %v1627 = vsel %vm170, %v314, %v651
          %v1628 = vsel %vm170, %v315, %v653
          %v1629 = vsel %vm170, %v316, %v655
          %v1630 = vsel %vm170, %v317, %v657
          %v1631 = vsel %vm170, %v318, %v659
          %v1632 = vsel %vm170, %v319, %v661
          %v1633 = vsel %vm170, %v320, %v663
          %v1634 = vsel %vm170, %v321, %v665
          %v1635 = vsel %vm170, %v322, %v667
          %v1636 = vsel %vm170, %v323, %v669
          %v1637 = vsel %vm170, %v324, %v671
          %v1638 = vsel %vm170, %v325, %v673
          %v1639 = vsel %vm170, %v326, %v675
          %v1640 = vsel %vm170, %v327, %v677
          %v1641 = vsel %vm170, %v328, %v679
          %v1642 = vsel %vm170, %v329, %v681
          %v1643 = vsel %vm170, %v330, %v683
          %vm1644 = vcmask 64512
          %v1645 = vsel %vm1644, %v1612, %v749
          %v1646 = vsel %vm1644, %v1613, %v751
          %v1647 = vsel %vm1644, %v1614, %v753
          %v1648 = vsel %vm1644, %v1615, %v755
          %v1649 = vsel %vm1644, %v1616, %v757
          %v1650 = vsel %vm1644, %v1617, %v759
          %v1651 = vsel %vm1644, %v1618, %v761
          %v1652 = vsel %vm1644, %v1619, %v763
          %v1653 = vsel %vm1644, %v1620, %v765
          %v1654 = vsel %vm1644, %v1621, %v767
          %v1655 = vsel %vm1644, %v1622, %v769
          %v1656 = vsel %vm1644, %v1623, %v771
          %v1657 = vsel %vm1644, %v1624, %v773
          %v1658 = vsel %vm1644, %v1625, %v775
          %v1659 = vsel %vm1644, %v1626, %v777
          %v1660 = vsel %vm1644, %v1627, %v779
          %v1661 = vsel %vm1644, %v1628, %v781
          %v1662 = vsel %vm1644, %v1629, %v783
          %v1663 = vsel %vm1644, %v1630, %v785
          %v1664 = vsel %vm1644, %v1631, %v787
          %v1665 = vsel %vm1644, %v1632, %v789
          %v1666 = vsel %vm1644, %v1633, %v791
          %v1667 = vsel %vm1644, %v1634, %v793
          %v1668 = vsel %vm1644, %v1635, %v795
          %v1669 = vsel %vm1644, %v1636, %v797
          %v1670 = vsel %vm1644, %v1637, %v799
          %v1671 = vsel %vm1644, %v1638, %v801
          %v1672 = vsel %vm1644, %v1639, %v803
          %v1673 = vsel %vm1644, %v1640, %v805
          %v1674 = vsel %vm1644, %v1641, %v807
          %v1675 = vsel %vm1644, %v1642, %v809
          %v1676 = vsel %vm1644, %v1643, %v811
          %vm1677 = vcmask 97280
          %v1678 = vsel %vm1677, %v1645, %v877
          %v1679 = vsel %vm1677, %v1646, %v879
          %v1680 = vsel %vm1677, %v1647, %v881
          %v1681 = vsel %vm1677, %v1648, %v883
          %v1682 = vsel %vm1677, %v1649, %v885
          %v1683 = vsel %vm1677, %v1650, %v887
          %v1684 = vsel %vm1677, %v1651, %v889
          %v1685 = vsel %vm1677, %v1652, %v891
          %v1686 = vsel %vm1677, %v1653, %v893
          %v1687 = vsel %vm1677, %v1654, %v895
          %v1688 = vsel %vm1677, %v1655, %v897
          %v1689 = vsel %vm1677, %v1656, %v899
          %v1690 = vsel %vm1677, %v1657, %v901
          %v1691 = vsel %vm1677, %v1658, %v903
          %v1692 = vsel %vm1677, %v1659, %v905
          %v1693 = vsel %vm1677, %v1660, %v907
          %v1694 = vsel %vm1677, %v1661, %v909
          %v1695 = vsel %vm1677, %v1662, %v911
          %v1696 = vsel %vm1677, %v1663, %v913
          %v1697 = vsel %vm1677, %v1664, %v915
          %v1698 = vsel %vm1677, %v1665, %v917
          %v1699 = vsel %vm1677, %v1666, %v919
          %v1700 = vsel %vm1677, %v1667, %v921
          %v1701 = vsel %vm1677, %v1668, %v923
          %v1702 = vsel %vm1677, %v1669, %v925
          %v1703 = vsel %vm1677, %v1670, %v927
          %v1704 = vsel %vm1677, %v1671, %v929
          %v1705 = vsel %vm1677, %v1672, %v931
          %v1706 = vsel %vm1677, %v1673, %v933
          %v1707 = vsel %vm1677, %v1674, %v935
          %v1708 = vsel %vm1677, %v1675, %v937
          %v1709 = vsel %vm1677, %v1676, %v939
          %vm1710 = vcmask 130048
          %v1711 = vsel %vm1710, %v1678, %v1005
          %v1712 = vsel %vm1710, %v1679, %v1007
          %v1713 = vsel %vm1710, %v1680, %v1009
          %v1714 = vsel %vm1710, %v1681, %v1011
          %v1715 = vsel %vm1710, %v1682, %v1013
          %v1716 = vsel %vm1710, %v1683, %v1015
          %v1717 = vsel %vm1710, %v1684, %v1017
          %v1718 = vsel %vm1710, %v1685, %v1019
          %v1719 = vsel %vm1710, %v1686, %v1021
          %v1720 = vsel %vm1710, %v1687, %v1023
          %v1721 = vsel %vm1710, %v1688, %v1025
          %v1722 = vsel %vm1710, %v1689, %v1027
          %v1723 = vsel %vm1710, %v1690, %v1029
          %v1724 = vsel %vm1710, %v1691, %v1031
          %v1725 = vsel %vm1710, %v1692, %v1033
          %v1726 = vsel %vm1710, %v1693, %v1035
          %v1727 = vsel %vm1710, %v1694, %v1037
          %v1728 = vsel %vm1710, %v1695, %v1039
          %v1729 = vsel %vm1710, %v1696, %v1041
          %v1730 = vsel %vm1710, %v1697, %v1043
          %v1731 = vsel %vm1710, %v1698, %v1045
          %v1732 = vsel %vm1710, %v1699, %v1047
          %v1733 = vsel %vm1710, %v1700, %v1049
          %v1734 = vsel %vm1710, %v1701, %v1051
          %v1735 = vsel %vm1710, %v1702, %v1053
          %v1736 = vsel %vm1710, %v1703, %v1055
          %v1737 = vsel %vm1710, %v1704, %v1057
          %v1738 = vsel %vm1710, %v1705, %v1059
          %v1739 = vsel %vm1710, %v1706, %v1061
          %v1740 = vsel %vm1710, %v1707, %v1063
          %v1741 = vsel %vm1710, %v1708, %v1065
          %v1742 = vsel %vm1710, %v1709, %v1067
          %vm1743 = vcmask 162816
          %v1744 = vsel %vm1743, %v1711, %v1133
          %v1745 = vsel %vm1743, %v1712, %v1135
          %v1746 = vsel %vm1743, %v1713, %v1137
          %v1747 = vsel %vm1743, %v1714, %v1139
          %v1748 = vsel %vm1743, %v1715, %v1141
          %v1749 = vsel %vm1743, %v1716, %v1143
          %v1750 = vsel %vm1743, %v1717, %v1145
          %v1751 = vsel %vm1743, %v1718, %v1147
          %v1752 = vsel %vm1743, %v1719, %v1149
          %v1753 = vsel %vm1743, %v1720, %v1151
          %v1754 = vsel %vm1743, %v1721, %v1153
          %v1755 = vsel %vm1743, %v1722, %v1155
          %v1756 = vsel %vm1743, %v1723, %v1157
          %v1757 = vsel %vm1743, %v1724, %v1159
          %v1758 = vsel %vm1743, %v1725, %v1161
          %v1759 = vsel %vm1743, %v1726, %v1163
          %v1760 = vsel %vm1743, %v1727, %v1165
          %v1761 = vsel %vm1743, %v1728, %v1167
          %v1762 = vsel %vm1743, %v1729, %v1169
          %v1763 = vsel %vm1743, %v1730, %v1171
          %v1764 = vsel %vm1743, %v1731, %v1173
          %v1765 = vsel %vm1743, %v1732, %v1175
          %v1766 = vsel %vm1743, %v1733, %v1177
          %v1767 = vsel %vm1743, %v1734, %v1179
          %v1768 = vsel %vm1743, %v1735, %v1181
          %v1769 = vsel %vm1743, %v1736, %v1183
          %v1770 = vsel %vm1743, %v1737, %v1185
          %v1771 = vsel %vm1743, %v1738, %v1187
          %v1772 = vsel %vm1743, %v1739, %v1189
          %v1773 = vsel %vm1743, %v1740, %v1191
          %v1774 = vsel %vm1743, %v1741, %v1193
          %v1775 = vsel %vm1743, %v1742, %v1195
          %vm1776 = vcmask 195584
          %v1777 = vsel %vm1776, %v1744, %v1261
          %v1778 = vsel %vm1776, %v1745, %v1263
          %v1779 = vsel %vm1776, %v1746, %v1265
          %v1780 = vsel %vm1776, %v1747, %v1267
          %v1781 = vsel %vm1776, %v1748, %v1269
          %v1782 = vsel %vm1776, %v1749, %v1271
          %v1783 = vsel %vm1776, %v1750, %v1273
          %v1784 = vsel %vm1776, %v1751, %v1275
          %v1785 = vsel %vm1776, %v1752, %v1277
          %v1786 = vsel %vm1776, %v1753, %v1279
          %v1787 = vsel %vm1776, %v1754, %v1281
          %v1788 = vsel %vm1776, %v1755, %v1283
          %v1789 = vsel %vm1776, %v1756, %v1285
          %v1790 = vsel %vm1776, %v1757, %v1287
          %v1791 = vsel %vm1776, %v1758, %v1289
          %v1792 = vsel %vm1776, %v1759, %v1291
          %v1793 = vsel %vm1776, %v1760, %v1293
          %v1794 = vsel %vm1776, %v1761, %v1295
          %v1795 = vsel %vm1776, %v1762, %v1297
          %v1796 = vsel %vm1776, %v1763, %v1299
          %v1797 = vsel %vm1776, %v1764, %v1301
          %v1798 = vsel %vm1776, %v1765, %v1303
          %v1799 = vsel %vm1776, %v1766, %v1305
          %v1800 = vsel %vm1776, %v1767, %v1307
          %v1801 = vsel %vm1776, %v1768, %v1309
          %v1802 = vsel %vm1776, %v1769, %v1311
          %v1803 = vsel %vm1776, %v1770, %v1313
          %v1804 = vsel %vm1776, %v1771, %v1315
          %v1805 = vsel %vm1776, %v1772, %v1317
          %v1806 = vsel %vm1776, %v1773, %v1319
          %v1807 = vsel %vm1776, %v1774, %v1321
          %v1808 = vsel %vm1776, %v1775, %v1323
          %vm1809 = vcmask 228352
          %v1810 = vsel %vm1809, %v1777, %v1389
          %v1811 = vsel %vm1809, %v1778, %v1391
          %v1812 = vsel %vm1809, %v1779, %v1393
          %v1813 = vsel %vm1809, %v1780, %v1395
          %v1814 = vsel %vm1809, %v1781, %v1397
          %v1815 = vsel %vm1809, %v1782, %v1399
          %v1816 = vsel %vm1809, %v1783, %v1401
          %v1817 = vsel %vm1809, %v1784, %v1403
          %v1818 = vsel %vm1809, %v1785, %v1405
          %v1819 = vsel %vm1809, %v1786, %v1407
          %v1820 = vsel %vm1809, %v1787, %v1409
          %v1821 = vsel %vm1809, %v1788, %v1411
          %v1822 = vsel %vm1809, %v1789, %v1413
          %v1823 = vsel %vm1809, %v1790, %v1415
          %v1824 = vsel %vm1809, %v1791, %v1417
          %v1825 = vsel %vm1809, %v1792, %v1419
          %v1826 = vsel %vm1809, %v1793, %v1421
          %v1827 = vsel %vm1809, %v1794, %v1423
          %v1828 = vsel %vm1809, %v1795, %v1425
          %v1829 = vsel %vm1809, %v1796, %v1427
          %v1830 = vsel %vm1809, %v1797, %v1429
          %v1831 = vsel %vm1809, %v1798, %v1431
          %v1832 = vsel %vm1809, %v1799, %v1433
          %v1833 = vsel %vm1809, %v1800, %v1435
          %v1834 = vsel %vm1809, %v1801, %v1437
          %v1835 = vsel %vm1809, %v1802, %v1439
          %v1836 = vsel %vm1809, %v1803, %v1441
          %v1837 = vsel %vm1809, %v1804, %v1443
          %v1838 = vsel %vm1809, %v1805, %v1445
          %v1839 = vsel %vm1809, %v1806, %v1447
          %v1840 = vsel %vm1809, %v1807, %v1449
          %v1841 = vsel %vm1809, %v1808, %v1451
          %vm1842 = vcmask 261120
          %v1843 = vsel %vm1842, %v1810, %v1517
          %v1844 = vsel %vm1842, %v1811, %v1519
          %v1845 = vsel %vm1842, %v1812, %v1521
          %v1846 = vsel %vm1842, %v1813, %v1523
          %v1847 = vsel %vm1842, %v1814, %v1525
          %v1848 = vsel %vm1842, %v1815, %v1527
          %v1849 = vsel %vm1842, %v1816, %v1529
          %v1850 = vsel %vm1842, %v1817, %v1531
          %v1851 = vsel %vm1842, %v1818, %v1533
          %v1852 = vsel %vm1842, %v1819, %v1535
          %v1853 = vsel %vm1842, %v1820, %v1537
          %v1854 = vsel %vm1842, %v1821, %v1539
          %v1855 = vsel %vm1842, %v1822, %v1541
          %v1856 = vsel %vm1842, %v1823, %v1543
          %v1857 = vsel %vm1842, %v1824, %v1545
          %v1858 = vsel %vm1842, %v1825, %v1547
          %v1859 = vsel %vm1842, %v1826, %v1549
          %v1860 = vsel %vm1842, %v1827, %v1551
          %v1861 = vsel %vm1842, %v1828, %v1553
          %v1862 = vsel %vm1842, %v1829, %v1555
          %v1863 = vsel %vm1842, %v1830, %v1557
          %v1864 = vsel %vm1842, %v1831, %v1559
          %v1865 = vsel %vm1842, %v1832, %v1561
          %v1866 = vsel %vm1842, %v1833, %v1563
          %v1867 = vsel %vm1842, %v1834, %v1565
          %v1868 = vsel %vm1842, %v1835, %v1567
          %v1869 = vsel %vm1842, %v1836, %v1569
          %v1870 = vsel %vm1842, %v1837, %v1571
          %v1871 = vsel %vm1842, %v1838, %v1573
          %v1872 = vsel %vm1842, %v1839, %v1575
          %v1873 = vsel %vm1842, %v1840, %v1577
          %v1874 = vsel %vm1842, %v1841, %v1579
          %vm1875 = vcmask 293888
          %v1876 = vsel %vm1875, %v1843, 0.0
          %v1877 = vsel %vm1875, %v1844, 0.0
          %v1878 = vsel %vm1875, %v1845, 0.0
          %v1879 = vsel %vm1875, %v1846, 0.0
          %v1880 = vsel %vm1875, %v1847, 0.0
          %v1881 = vsel %vm1875, %v1848, 0.0
          %v1882 = vsel %vm1875, %v1849, 0.0
          %v1883 = vsel %vm1875, %v1850, 0.0
          %v1884 = vsel %vm1875, %v1851, 0.0
          %v1885 = vsel %vm1875, %v1852, 0.0
          %v1886 = vsel %vm1875, %v1853, 0.0
          %v1887 = vsel %vm1875, %v1854, 0.0
          %v1888 = vsel %vm1875, %v1855, 0.0
          %v1889 = vsel %vm1875, %v1856, 0.0
          %v1890 = vsel %vm1875, %v1857, 0.0
          %v1891 = vsel %vm1875, %v1858, 0.0
          %v1892 = vsel %vm1875, %v1859, 0.0
          %v1893 = vsel %vm1875, %v1860, 0.0
          %v1894 = vsel %vm1875, %v1861, 0.0
          %v1895 = vsel %vm1875, %v1862, 0.0
          %v1896 = vsel %vm1875, %v1863, 0.0
          %v1897 = vsel %vm1875, %v1864, 0.0
          %v1898 = vsel %vm1875, %v1865, 0.0
          %v1899 = vsel %vm1875, %v1866, 0.0
          %v1900 = vsel %vm1875, %v1867, 0.0
          %v1901 = vsel %vm1875, %v1868, 0.0
          %v1902 = vsel %vm1875, %v1869, 0.0
          %v1903 = vsel %vm1875, %v1870, 0.0
          %v1904 = vsel %vm1875, %v1871, 0.0
          %v1905 = vsel %vm1875, %v1872, 0.0
          %v1906 = vsel %vm1875, %v1873, 0.0
          %v1907 = vsel %vm1875, %v1874, 0.0
          %v1908 = vld [vmem:[%s1] sm:$0xff]
          %v1909 = vld [vmem:[%s1 + $0x8] sm:$0xff]
          %v1910 = vld [vmem:[%s1 + $0x10] sm:$0xff]
          %v1911 = vld [vmem:[%s1 + $0x18] sm:$0xff]
          %v1912 = vld [vmem:[%s1 + $0x20] sm:$0xff]
          %v1913 = vld [vmem:[%s1 + $0x28] sm:$0xff]
          %v1914 = vld [vmem:[%s1 + $0x30] sm:$0xff]
          %v1915 = vld [vmem:[%s1 + $0x38] sm:$0xff]
          %v1916 = vld [vmem:[%s1 + $0x40] sm:$0xff]
          %v1917 = vld [vmem:[%s1 + $0x48] sm:$0xff]
          %v1918 = vld [vmem:[%s1 + $0x50] sm:$0xff]
          %v1919 = vld [vmem:[%s1 + $0x58] sm:$0xff]
          %v1920 = vld [vmem:[%s1 + $0x60] sm:$0xff]
          %v1921 = vld [vmem:[%s1 + $0x68] sm:$0xff]
          %v1922 = vld [vmem:[%s1 + $0x70] sm:$0xff]
          %v1923 = vld [vmem:[%s1 + $0x78] sm:$0xff]
          %1924 = vmatprep.subr.mxu0 0.0
          %1925 = vmatpush1.msra.mxu0 %v1923
          %1926 = vmatprep.subr.mxu0 0.0
          %1927 = vmatpush1.msra.mxu0 %v1922
          %1928 = vmatprep.subr.mxu0 0.0
          %1929 = vmatpush1.msra.mxu0 %v1921
          %1930 = vmatprep.subr.mxu0 0.0
          %1931 = vmatpush1.msra.mxu0 %v1920
          %1932 = vmatprep.subr.mxu0 0.0
          %1933 = vmatpush1.msra.mxu0 %v1919
          %1934 = vmatprep.subr.mxu0 0.0
          %1935 = vmatpush1.msra.mxu0 %v1918
          %1936 = vmatprep.subr.mxu0 0.0
          %1937 = vmatpush1.msra.mxu0 %v1917
          %1938 = vmatprep.subr.mxu0 0.0
          %1939 = vmatpush1.msra.mxu0 %v1916
          %1940 = vmatprep.subr.mxu0 0.0
          %1941 = vmatpush1.msra.mxu0 %v1915
          %1942 = vmatprep.subr.mxu0 0.0
          %1943 = vmatpush1.msra.mxu0 %v1914
          %1944 = vmatprep.subr.mxu0 0.0
          %1945 = vmatpush1.msra.mxu0 %v1913
          %1946 = vmatprep.subr.mxu0 0.0
          %1947 = vmatpush1.msra.mxu0 %v1912
          %1948 = vmatprep.subr.mxu0 0.0
          %1949 = vmatpush1.msra.mxu0 %v1911
          %1950 = vmatprep.subr.mxu0 0.0
          %1951 = vmatpush1.msra.mxu0 %v1910
          %1952 = vmatprep.subr.mxu0 0.0
          %1953 = vmatpush1.msra.mxu0 %v1909
          %1954 = vmatprep.subr.mxu0 0.0
          %1955 = vmatpush1.msra.mxu0 %v1908
          %1956 = vmatprep.subr.mxu0 0.0
          %1957 = vmatpush2.msra.mxu0 0.0
          %1958 = vmatprep.subr.mxu0 0.0
          %1959 = vmatpush2.msra.mxu0 0.0
          %1960 = vmatprep.subr.mxu0 0.0
          %1961 = vmatpush2.msra.mxu0 0.0
          %1962 = vmatprep.subr.mxu0 0.0
          %1963 = vmatpush2.msra.mxu0 0.0
          %1964 = vmatprep.subr.mxu0 0.0
          %1965 = vmatpush2.msra.mxu0 0.0
          %1966 = vmatprep.subr.mxu0 0.0
          %1967 = vmatpush2.msra.mxu0 0.0
          %1968 = vmatprep.subr.mxu0 0.0
          %1969 = vmatpush2.msra.mxu0 0.0
          %1970 = vmatprep.subr.mxu0 0.0
          %1971 = vmatpush2.msra.mxu0 0.0
          %1972 = vmatprep.subr.mxu0 0.0
          %1973 = vmatpush2.msra.mxu0 0.0
          %1974 = vmatprep.subr.mxu0 0.0
          %1975 = vmatpush2.msra.mxu0 0.0
          %1976 = vmatprep.subr.mxu0 0.0
          %1977 = vmatpush2.msra.mxu0 0.0
          %1978 = vmatprep.subr.mxu0 0.0
          %1979 = vmatpush2.msra.mxu0 0.0
          %1980 = vmatprep.subr.mxu0 0.0
          %1981 = vmatpush2.msra.mxu0 0.0
          %1982 = vmatprep.subr.mxu0 0.0
          %1983 = vmatpush2.msra.mxu0 0.0
          %1984 = vmatprep.subr.mxu0 0.0
          %1985 = vmatpush2.msra.mxu0 0.0
          %1986 = vmatprep.subr.mxu0 0.0
          %1987 = vmatpush2.msra.mxu0 0.0
          %1988 = vmatprep.mubr.f32.mxu0 0.0
          %1989 = vmatmul.mubr.f32.gmra.mxu0 %v1876
          %v1990 = vpop.f32.mrf.mxu0
          %v1991 = vadd.f32 0.0, %v1990
          %v1992 = vpop.f32.mrf.mxu0
          %1993 = vmatprep.mubr.f32.mxu0 0.0
          %1994 = vmatmul.mubr.f32.gmra.mxu0 %v1877
          %v1995 = vpop.f32.mrf.mxu0
          %v1996 = vadd.f32 0.0, %v1995
          %v1997 = vpop.f32.mrf.mxu0
          %1998 = vmatprep.mubr.f32.mxu0 0.0
          %1999 = vmatmul.mubr.f32.gmra.mxu0 %v1878
          %v2000 = vpop.f32.mrf.mxu0
          %v2001 = vadd.f32 0.0, %v2000
          %v2002 = vpop.f32.mrf.mxu0
          %2003 = vmatprep.mubr.f32.mxu0 0.0
          %2004 = vmatmul.mubr.f32.gmra.mxu0 %v1879
          %v2005 = vpop.f32.mrf.mxu0
          %v2006 = vadd.f32 0.0, %v2005
          %v2007 = vpop.f32.mrf.mxu0
          %2008 = vmatprep.mubr.f32.mxu0 0.0
          %2009 = vmatmul.mubr.f32.gmra.mxu0 %v1880
          %v2010 = vpop.f32.mrf.mxu0
          %v2011 = vadd.f32 0.0, %v2010
          %v2012 = vpop.f32.mrf.mxu0
          %2013 = vmatprep.mubr.f32.mxu0 0.0
          %2014 = vmatmul.mubr.f32.gmra.mxu0 %v1881
          %v2015 = vpop.f32.mrf.mxu0
          %v2016 = vadd.f32 0.0, %v2015
          %v2017 = vpop.f32.mrf.mxu0
          %2018 = vmatprep.mubr.f32.mxu0 0.0
          %2019 = vmatmul.mubr.f32.gmra.mxu0 %v1882
          %v2020 = vpop.f32.mrf.mxu0
          %v2021 = vadd.f32 0.0, %v2020
          %v2022 = vpop.f32.mrf.mxu0
          %2023 = vmatprep.mubr.f32.mxu0 0.0
          %2024 = vmatmul.mubr.f32.gmra.mxu0 %v1883
          %v2025 = vpop.f32.mrf.mxu0
          %v2026 = vadd.f32 0.0, %v2025
          %v2027 = vpop.f32.mrf.mxu0
          %2028 = vmatprep.mubr.f32.mxu0 0.0
          %2029 = vmatmul.mubr.f32.gmra.mxu0 %v1884
          %v2030 = vpop.f32.mrf.mxu0
          %v2031 = vadd.f32 0.0, %v2030
          %v2032 = vpop.f32.mrf.mxu0
          %2033 = vmatprep.mubr.f32.mxu0 0.0
          %2034 = vmatmul.mubr.f32.gmra.mxu0 %v1885
          %v2035 = vpop.f32.mrf.mxu0
          %v2036 = vadd.f32 0.0, %v2035
          %v2037 = vpop.f32.mrf.mxu0
          %2038 = vmatprep.mubr.f32.mxu0 0.0
          %2039 = vmatmul.mubr.f32.gmra.mxu0 %v1886
          %v2040 = vpop.f32.mrf.mxu0
          %v2041 = vadd.f32 0.0, %v2040
          %v2042 = vpop.f32.mrf.mxu0
          %2043 = vmatprep.mubr.f32.mxu0 0.0
          %2044 = vmatmul.mubr.f32.gmra.mxu0 %v1887
          %v2045 = vpop.f32.mrf.mxu0
          %v2046 = vadd.f32 0.0, %v2045
          %v2047 = vpop.f32.mrf.mxu0
          %2048 = vmatprep.mubr.f32.mxu0 0.0
          %2049 = vmatmul.mubr.f32.gmra.mxu0 %v1888
          %v2050 = vpop.f32.mrf.mxu0
          %v2051 = vadd.f32 0.0, %v2050
          %v2052 = vpop.f32.mrf.mxu0
          %2053 = vmatprep.mubr.f32.mxu0 0.0
          %2054 = vmatmul.mubr.f32.gmra.mxu0 %v1889
          %v2055 = vpop.f32.mrf.mxu0
          %v2056 = vadd.f32 0.0, %v2055
          %v2057 = vpop.f32.mrf.mxu0
          %2058 = vmatprep.mubr.f32.mxu0 0.0
          %2059 = vmatmul.mubr.f32.gmra.mxu0 %v1890
          %v2060 = vpop.f32.mrf.mxu0
          %v2061 = vadd.f32 0.0, %v2060
          %v2062 = vpop.f32.mrf.mxu0
          %2063 = vmatprep.mubr.f32.mxu0 0.0
          %2064 = vmatmul.mubr.f32.gmra.mxu0 %v1891
          %v2065 = vpop.f32.mrf.mxu0
          %v2066 = vadd.f32 0.0, %v2065
          %v2067 = vpop.f32.mrf.mxu0
          %2068 = vmatprep.mubr.f32.mxu0 0.0
          %2069 = vmatmul.mubr.f32.gmra.mxu0 %v1892
          %v2070 = vpop.f32.mrf.mxu0
          %v2071 = vadd.f32 0.0, %v2070
          %v2072 = vpop.f32.mrf.mxu0
          %2073 = vmatprep.mubr.f32.mxu0 0.0
          %2074 = vmatmul.mubr.f32.gmra.mxu0 %v1893
          %v2075 = vpop.f32.mrf.mxu0
          %v2076 = vadd.f32 0.0, %v2075
          %v2077 = vpop.f32.mrf.mxu0
          %2078 = vmatprep.mubr.f32.mxu0 0.0
          %2079 = vmatmul.mubr.f32.gmra.mxu0 %v1894
          %v2080 = vpop.f32.mrf.mxu0
          %v2081 = vadd.f32 0.0, %v2080
          %v2082 = vpop.f32.mrf.mxu0
          %2083 = vmatprep.mubr.f32.mxu0 0.0
          %2084 = vmatmul.mubr.f32.gmra.mxu0 %v1895
          %v2085 = vpop.f32.mrf.mxu0
          %v2086 = vadd.f32 0.0, %v2085
          %v2087 = vpop.f32.mrf.mxu0
          %2088 = vmatprep.mubr.f32.mxu0 0.0
          %2089 = vmatmul.mubr.f32.gmra.mxu0 %v1896
          %v2090 = vpop.f32.mrf.mxu0
          %v2091 = vadd.f32 0.0, %v2090
          %v2092 = vpop.f32.mrf.mxu0
          %2093 = vmatprep.mubr.f32.mxu0 0.0
          %2094 = vmatmul.mubr.f32.gmra.mxu0 %v1897
          %v2095 = vpop.f32.mrf.mxu0
          %v2096 = vadd.f32 0.0, %v2095
          %v2097 = vpop.f32.mrf.mxu0
          %2098 = vmatprep.mubr.f32.mxu0 0.0
          %2099 = vmatmul.mubr.f32.gmra.mxu0 %v1898
          %v2100 = vpop.f32.mrf.mxu0
          %v2101 = vadd.f32 0.0, %v2100
          %v2102 = vpop.f32.mrf.mxu0
          %2103 = vmatprep.mubr.f32.mxu0 0.0
          %2104 = vmatmul.mubr.f32.gmra.mxu0 %v1899
          %v2105 = vpop.f32.mrf.mxu0
          %v2106 = vadd.f32 0.0, %v2105
          %v2107 = vpop.f32.mrf.mxu0
          %2108 = vmatprep.mubr.f32.mxu0 0.0
          %2109 = vmatmul.mubr.f32.gmra.mxu0 %v1900
          %v2110 = vpop.f32.mrf.mxu0
          %v2111 = vadd.f32 0.0, %v2110
          %v2112 = vpop.f32.mrf.mxu0
          %2113 = vmatprep.mubr.f32.mxu0 0.0
          %2114 = vmatmul.mubr.f32.gmra.mxu0 %v1901
          %v2115 = vpop.f32.mrf.mxu0
          %v2116 = vadd.f32 0.0, %v2115
          %v2117 = vpop.f32.mrf.mxu0
          %2118 = vmatprep.mubr.f32.mxu0 0.0
          %2119 = vmatmul.mubr.f32.gmra.mxu0 %v1902
          %v2120 = vpop.f32.mrf.mxu0
          %v2121 = vadd.f32 0.0, %v2120
          %v2122 = vpop.f32.mrf.mxu0
          %2123 = vmatprep.mubr.f32.mxu0 0.0
          %2124 = vmatmul.mubr.f32.gmra.mxu0 %v1903
          %v2125 = vpop.f32.mrf.mxu0
          %v2126 = vadd.f32 0.0, %v2125
          %v2127 = vpop.f32.mrf.mxu0
          %2128 = vmatprep.mubr.f32.mxu0 0.0
          %2129 = vmatmul.mubr.f32.gmra.mxu0 %v1904
          %v2130 = vpop.f32.mrf.mxu0
          %v2131 = vadd.f32 0.0, %v2130
          %v2132 = vpop.f32.mrf.mxu0
          %2133 = vmatprep.mubr.f32.mxu0 0.0
          %2134 = vmatmul.mubr.f32.gmra.mxu0 %v1905
          %v2135 = vpop.f32.mrf.mxu0
          %v2136 = vadd.f32 0.0, %v2135
          %v2137 = vpop.f32.mrf.mxu0
          %2138 = vmatprep.mubr.f32.mxu0 0.0
          %2139 = vmatmul.mubr.f32.gmra.mxu0 %v1906
          %v2140 = vpop.f32.mrf.mxu0
          %v2141 = vadd.f32 0.0, %v2140
          %v2142 = vpop.f32.mrf.mxu0
          %2143 = vmatprep.mubr.f32.mxu0 0.0
          %2144 = vmatmul.mubr.f32.gmra.mxu0 %v1907
          %v2145 = vpop.f32.mrf.mxu0
          %v2146 = vadd.f32 0.0, %v2145
          %v2147 = vpop.f32.mrf.mxu0
          %2148 = vdwg.mxu0
          %2149 = vst [vmem:[%s160] sm:$0xff] %v1991
          %2150 = vst [vmem:[%s160 + $0x8] sm:$0xff] %v1996
          %2151 = vst [vmem:[%s160 + $0x10] sm:$0xff] %v2001
          %2152 = vst [vmem:[%s160 + $0x18] sm:$0xff] %v2006
          %2153 = vst [vmem:[%s160 + $0x20] sm:$0xff] %v2011
          %2154 = vst [vmem:[%s160 + $0x28] sm:$0xff] %v2016
          %2155 = vst [vmem:[%s160 + $0x30] sm:$0xff] %v2021
          %2156 = vst [vmem:[%s160 + $0x38] sm:$0xff] %v2026
          %2157 = vst [vmem:[%s160 + $0x40] sm:$0xff] %v2031
          %2158 = vst [vmem:[%s160 + $0x48] sm:$0xff] %v2036
          %2159 = vst [vmem:[%s160 + $0x50] sm:$0xff] %v2041
          %2160 = vst [vmem:[%s160 + $0x58] sm:$0xff] %v2046
          %2161 = vst [vmem:[%s160 + $0x60] sm:$0xff] %v2051
          %2162 = vst [vmem:[%s160 + $0x68] sm:$0xff] %v2056
          %2163 = vst [vmem:[%s160 + $0x70] sm:$0xff] %v2061
          %2164 = vst [vmem:[%s160 + $0x78] sm:$0xff] %v2066
          %2165 = vst [vmem:[%s160 + $0x80] sm:$0xff] %v2071
          %2166 = vst [vmem:[%s160 + $0x88] sm:$0xff] %v2076
          %2167 = vst [vmem:[%s160 + $0x90] sm:$0xff] %v2081
          %2168 = vst [vmem:[%s160 + $0x98] sm:$0xff] %v2086
          %2169 = vst [vmem:[%s160 + $0xa0] sm:$0xff] %v2091
          %2170 = vst [vmem:[%s160 + $0xa8] sm:$0xff] %v2096
          %2171 = vst [vmem:[%s160 + $0xb0] sm:$0xff] %v2101
          %2172 = vst [vmem:[%s160 + $0xb8] sm:$0xff] %v2106
          %2173 = vst [vmem:[%s160 + $0xc0] sm:$0xff] %v2111
          %2174 = vst [vmem:[%s160 + $0xc8] sm:$0xff] %v2116
          %2175 = vst [vmem:[%s160 + $0xd0] sm:$0xff] %v2121
          %2176 = vst [vmem:[%s160 + $0xd8] sm:$0xff] %v2126
          %2177 = vst [vmem:[%s160 + $0xe0] sm:$0xff] %v2131
          %2178 = vst [vmem:[%s160 + $0xe8] sm:$0xff] %v2136
          %2179 = vst [vmem:[%s160 + $0xf0] sm:$0xff] %v2141
          %2180 = vst [vmem:[%s160 + $0xf8] sm:$0xff] %v2146
        $region32: #{tpu_custom_call.1} parent=27 // pred_fallthru
          _
        %p2181 = scmp.eq.s32.totalorder %s21, 1
        // Predicated region
        $region33: #{tpu_custom_call.1} parent=27 // pred_check
          %p2182 = pneg %p2181
        $region34: #{tpu_custom_call.1} parent=27 // pred_check_branch
          %2184 = sbr.rel (%p2182) target = $region36
        $region35: #{tpu_custom_call.1} parent=27 // pred_region
          %s2185 = scalar_lea.vmem [#allocation2], 32
          %v2186 = vld [vmem:[%s2185 + $0x6] sm:$0xff]
          %v2187 = vld [vmem:[%s2185 + $0xe] sm:$0xff]
          %v2188 = vld [vmem:[%s2185 + $0x26] sm:$0xff]
          %v2189 = vld [vmem:[%s2185 + $0x2e] sm:$0xff]
          %v2190 = vld [vmem:[%s2185 + $0x46] sm:$0xff]
          %v2191 = vld [vmem:[%s2185 + $0x4e] sm:$0xff]
          %v2192 = vld [vmem:[%s2185 + $0x66] sm:$0xff]
          %v2193 = vld [vmem:[%s2185 + $0x6e] sm:$0xff]
          %v2194 = vld [vmem:[%s2185 + $0x86] sm:$0xff]
          %v2195 = vld [vmem:[%s2185 + $0x8e] sm:$0xff]
          %v2196 = vld [vmem:[%s2185 + $0xa6] sm:$0xff]
          %v2197 = vld [vmem:[%s2185 + $0xae] sm:$0xff]
          %v2198 = vld [vmem:[%s2185 + $0xc6] sm:$0xff]
          %v2199 = vld [vmem:[%s2185 + $0xce] sm:$0xff]
          %v2200 = vld [vmem:[%s2185 + $0xe6] sm:$0xff]
          %v2201 = vld [vmem:[%s2185 + $0xee] sm:$0xff]
          %v2202 = vld [vmem:[%s2185 + $0x106] sm:$0xff]
          %v2203 = vld [vmem:[%s2185 + $0x10e] sm:$0xff]
          %v2204 = vld [vmem:[%s2185 + $0x126] sm:$0xff]
          %v2205 = vld [vmem:[%s2185 + $0x12e] sm:$0xff]
          %v2206 = vld [vmem:[%s2185 + $0x146] sm:$0xff]
          %v2207 = vld [vmem:[%s2185 + $0x14e] sm:$0xff]
          %v2208 = vld [vmem:[%s2185 + $0x166] sm:$0xff]
          %v2209 = vld [vmem:[%s2185 + $0x16e] sm:$0xff]
          %v2210 = vld [vmem:[%s2185 + $0x186] sm:$0xff]
          %v2211 = vld [vmem:[%s2185 + $0x18e] sm:$0xff]
          %v2212 = vld [vmem:[%s2185 + $0x1a6] sm:$0xff]
          %v2213 = vld [vmem:[%s2185 + $0x1ae] sm:$0xff]
          %v2214 = vld [vmem:[%s2185 + $0x1c6] sm:$0xff]
          %v2215 = vld [vmem:[%s2185 + $0x1ce] sm:$0xff]
          %v2216 = vld [vmem:[%s2185 + $0x1e6] sm:$0xff]
          %v2217 = vld [vmem:[%s2185 + $0x1ee] sm:$0xff]
          %v2218 = vld [vmem:[%s2185 + $0x8] sm:$0xff]
          %v2219 = vld [vmem:[%s2185 + $0x10] sm:$0xff]
          %v2220 = vld [vmem:[%s2185 + $0x28] sm:$0xff]
          %v2221 = vld [vmem:[%s2185 + $0x30] sm:$0xff]
          %v2222 = vld [vmem:[%s2185 + $0x48] sm:$0xff]
          %v2223 = vld [vmem:[%s2185 + $0x50] sm:$0xff]
          %v2224 = vld [vmem:[%s2185 + $0x68] sm:$0xff]
          %v2225 = vld [vmem:[%s2185 + $0x70] sm:$0xff]
          %v2226 = vld [vmem:[%s2185 + $0x88] sm:$0xff]
          %v2227 = vld [vmem:[%s2185 + $0x90] sm:$0xff]
          %v2228 = vld [vmem:[%s2185 + $0xa8] sm:$0xff]
          %v2229 = vld [vmem:[%s2185 + $0xb0] sm:$0xff]
          %v2230 = vld [vmem:[%s2185 + $0xc8] sm:$0xff]
          %v2231 = vld [vmem:[%s2185 + $0xd0] sm:$0xff]
          %v2232 = vld [vmem:[%s2185 + $0xe8] sm:$0xff]
          %v2233 = vld [vmem:[%s2185 + $0xf0] sm:$0xff]
          %v2234 = vld [vmem:[%s2185 + $0x108] sm:$0xff]
          %v2235 = vld [vmem:[%s2185 + $0x110] sm:$0xff]
          %v2236 = vld [vmem:[%s2185 + $0x128] sm:$0xff]
          %v2237 = vld [vmem:[%s2185 + $0x130] sm:$0xff]
          %v2238 = vld [vmem:[%s2185 + $0x148] sm:$0xff]
          %v2239 = vld [vmem:[%s2185 + $0x150] sm:$0xff]
          %v2240 = vld [vmem:[%s2185 + $0x168] sm:$0xff]
          %v2241 = vld [vmem:[%s2185 + $0x170] sm:$0xff]
          %v2242 = vld [vmem:[%s2185 + $0x188] sm:$0xff]
          %v2243 = vld [vmem:[%s2185 + $0x190] sm:$0xff]
          %v2244 = vld [vmem:[%s2185 + $0x1a8] sm:$0xff]
          %v2245 = vld [vmem:[%s2185 + $0x1b0] sm:$0xff]
          %v2246 = vld [vmem:[%s2185 + $0x1c8] sm:$0xff]
          %v2247 = vld [vmem:[%s2185 + $0x1d0] sm:$0xff]
          %v2248 = vld [vmem:[%s2185 + $0x1e8] sm:$0xff]
          %v2249 = vld [vmem:[%s2185 + $0x1f0] sm:$0xff]
          %v2250 = vld [vmem:[%s2185 + $0xa] sm:$0xff]
          %v2251 = vld [vmem:[%s2185 + $0x12] sm:$0xff]
          %v2252 = vld [vmem:[%s2185 + $0x2a] sm:$0xff]
          %v2253 = vld [vmem:[%s2185 + $0x32] sm:$0xff]
          %v2254 = vld [vmem:[%s2185 + $0x4a] sm:$0xff]
          %v2255 = vld [vmem:[%s2185 + $0x52] sm:$0xff]
          %v2256 = vld [vmem:[%s2185 + $0x6a] sm:$0xff]
          %v2257 = vld [vmem:[%s2185 + $0x72] sm:$0xff]
          %v2258 = vld [vmem:[%s2185 + $0x8a] sm:$0xff]
          %v2259 = vld [vmem:[%s2185 + $0x92] sm:$0xff]
          %v2260 = vld [vmem:[%s2185 + $0xaa] sm:$0xff]
          %v2261 = vld [vmem:[%s2185 + $0xb2] sm:$0xff]
          %v2262 = vld [vmem:[%s2185 + $0xca] sm:$0xff]
          %v2263 = vld [vmem:[%s2185 + $0xd2] sm:$0xff]
          %v2264 = vld [vmem:[%s2185 + $0xea] sm:$0xff]
          %v2265 = vld [vmem:[%s2185 + $0xf2] sm:$0xff]
          %v2266 = vld [vmem:[%s2185 + $0x10a] sm:$0xff]
          %v2267 = vld [vmem:[%s2185 + $0x112] sm:$0xff]
          %v2268 = vld [vmem:[%s2185 + $0x12a] sm:$0xff]
          %v2269 = vld [vmem:[%s2185 + $0x132] sm:$0xff]
          %v2270 = vld [vmem:[%s2185 + $0x14a] sm:$0xff]
          %v2271 = vld [vmem:[%s2185 + $0x152] sm:$0xff]
          %v2272 = vld [vmem:[%s2185 + $0x16a] sm:$0xff]
          %v2273 = vld [vmem:[%s2185 + $0x172] sm:$0xff]
          %v2274 = vld [vmem:[%s2185 + $0x18a] sm:$0xff]
          %v2275 = vld [vmem:[%s2185 + $0x192] sm:$0xff]
          %v2276 = vld [vmem:[%s2185 + $0x1aa] sm:$0xff]
          %v2277 = vld [vmem:[%s2185 + $0x1b2] sm:$0xff]
          %v2278 = vld [vmem:[%s2185 + $0x1ca] sm:$0xff]
          %v2279 = vld [vmem:[%s2185 + $0x1d2] sm:$0xff]
          %v2280 = vld [vmem:[%s2185 + $0x1ea] sm:$0xff]
          %v2281 = vld [vmem:[%s2185 + $0x1f2] sm:$0xff]
          %v2282 = vld [vmem:[%s197 + $0x6] sm:$0xff]
          %v2283 = vld [vmem:[%s197 + $0xe] sm:$0xff]
          %v2284 = vld [vmem:[%s197 + $0x26] sm:$0xff]
          %v2285 = vld [vmem:[%s197 + $0x2e] sm:$0xff]
          %v2286 = vld [vmem:[%s197 + $0x46] sm:$0xff]
          %v2287 = vld [vmem:[%s197 + $0x4e] sm:$0xff]
          %v2288 = vld [vmem:[%s197 + $0x66] sm:$0xff]
          %v2289 = vld [vmem:[%s197 + $0x6e] sm:$0xff]
          %v2290 = vld [vmem:[%s197 + $0x86] sm:$0xff]
          %v2291 = vld [vmem:[%s197 + $0x8e] sm:$0xff]
          %v2292 = vld [vmem:[%s197 + $0xa6] sm:$0xff]
          %v2293 = vld [vmem:[%s197 + $0xae] sm:$0xff]
          %v2294 = vld [vmem:[%s197 + $0xc6] sm:$0xff]
          %v2295 = vld [vmem:[%s197 + $0xce] sm:$0xff]
          %v2296 = vld [vmem:[%s197 + $0xe6] sm:$0xff]
          %v2297 = vld [vmem:[%s197 + $0xee] sm:$0xff]
          %v2298 = vld [vmem:[%s197 + $0x106] sm:$0xff]
          %v2299 = vld [vmem:[%s197 + $0x10e] sm:$0xff]
          %v2300 = vld [vmem:[%s197 + $0x126] sm:$0xff]
          %v2301 = vld [vmem:[%s197 + $0x12e] sm:$0xff]
          %v2302 = vld [vmem:[%s197 + $0x146] sm:$0xff]
          %v2303 = vld [vmem:[%s197 + $0x14e] sm:$0xff]
          %v2304 = vld [vmem:[%s197 + $0x166] sm:$0xff]
          %v2305 = vld [vmem:[%s197 + $0x16e] sm:$0xff]
          %v2306 = vld [vmem:[%s197 + $0x186] sm:$0xff]
          %v2307 = vld [vmem:[%s197 + $0x18e] sm:$0xff]
          %v2308 = vld [vmem:[%s197 + $0x1a6] sm:$0xff]
          %v2309 = vld [vmem:[%s197 + $0x1ae] sm:$0xff]
          %v2310 = vld [vmem:[%s197 + $0x1c6] sm:$0xff]
          %v2311 = vld [vmem:[%s197 + $0x1ce] sm:$0xff]
          %v2312 = vld [vmem:[%s197 + $0x1e6] sm:$0xff]
          %v2313 = vld [vmem:[%s197 + $0x1ee] sm:$0xff]
          %v2314 = vld [vmem:[%s197 + $0x8] sm:$0xff]
          %v2315 = vld [vmem:[%s197 + $0x10] sm:$0xff]
          %v2316 = vld [vmem:[%s197 + $0x28] sm:$0xff]
          %v2317 = vld [vmem:[%s197 + $0x30] sm:$0xff]
          %v2318 = vld [vmem:[%s197 + $0x48] sm:$0xff]
          %v2319 = vld [vmem:[%s197 + $0x50] sm:$0xff]
          %v2320 = vld [vmem:[%s197 + $0x68] sm:$0xff]
          %v2321 = vld [vmem:[%s197 + $0x70] sm:$0xff]
          %v2322 = vld [vmem:[%s197 + $0x88] sm:$0xff]
          %v2323 = vld [vmem:[%s197 + $0x90] sm:$0xff]
          %v2324 = vld [vmem:[%s197 + $0xa8] sm:$0xff]
          %v2325 = vld [vmem:[%s197 + $0xb0] sm:$0xff]
          %v2326 = vld [vmem:[%s197 + $0xc8] sm:$0xff]
          %v2327 = vld [vmem:[%s197 + $0xd0] sm:$0xff]
          %v2328 = vld [vmem:[%s197 + $0xe8] sm:$0xff]
          %v2329 = vld [vmem:[%s197 + $0xf0] sm:$0xff]
          %v2330 = vld [vmem:[%s197 + $0x108] sm:$0xff]
          %v2331 = vld [vmem:[%s197 + $0x110] sm:$0xff]
          %v2332 = vld [vmem:[%s197 + $0x128] sm:$0xff]
          %v2333 = vld [vmem:[%s197 + $0x130] sm:$0xff]
          %v2334 = vld [vmem:[%s197 + $0x148] sm:$0xff]
          %v2335 = vld [vmem:[%s197 + $0x150] sm:$0xff]
          %v2336 = vld [vmem:[%s197 + $0x168] sm:$0xff]
          %v2337 = vld [vmem:[%s197 + $0x170] sm:$0xff]
          %v2338 = vld [vmem:[%s197 + $0x188] sm:$0xff]
          %v2339 = vld [vmem:[%s197 + $0x190] sm:$0xff]
          %v2340 = vld [vmem:[%s197 + $0x1a8] sm:$0xff]
          %v2341 = vld [vmem:[%s197 + $0x1b0] sm:$0xff]
          %v2342 = vld [vmem:[%s197 + $0x1c8] sm:$0xff]
          %v2343 = vld [vmem:[%s197 + $0x1d0] sm:$0xff]
          %v2344 = vld [vmem:[%s197 + $0x1e8] sm:$0xff]
          %v2345 = vld [vmem:[%s197 + $0x1f0] sm:$0xff]
          %v2346 = vld [vmem:[%s197 + $0xa] sm:$0xff]
          %v2347 = vld [vmem:[%s197 + $0x12] sm:$0xff]
          %v2348 = vld [vmem:[%s197 + $0x2a] sm:$0xff]
          %v2349 = vld [vmem:[%s197 + $0x32] sm:$0xff]
          %v2350 = vld [vmem:[%s197 + $0x4a] sm:$0xff]
          %v2351 = vld [vmem:[%s197 + $0x52] sm:$0xff]
          %v2352 = vld [vmem:[%s197 + $0x6a] sm:$0xff]
          %v2353 = vld [vmem:[%s197 + $0x72] sm:$0xff]
          %v2354 = vld [vmem:[%s197 + $0x8a] sm:$0xff]
          %v2355 = vld [vmem:[%s197 + $0x92] sm:$0xff]
          %v2356 = vld [vmem:[%s197 + $0xaa] sm:$0xff]
          %v2357 = vld [vmem:[%s197 + $0xb2] sm:$0xff]
          %v2358 = vld [vmem:[%s197 + $0xca] sm:$0xff]
          %v2359 = vld [vmem:[%s197 + $0xd2] sm:$0xff]
          %v2360 = vld [vmem:[%s197 + $0xea] sm:$0xff]
          %v2361 = vld [vmem:[%s197 + $0xf2] sm:$0xff]
          %v2362 = vld [vmem:[%s197 + $0x10a] sm:$0xff]
          %v2363 = vld [vmem:[%s197 + $0x112] sm:$0xff]
          %v2364 = vld [vmem:[%s197 + $0x12a] sm:$0xff]
          %v2365 = vld [vmem:[%s197 + $0x132] sm:$0xff]
          %v2366 = vld [vmem:[%s197 + $0x14a] sm:$0xff]
          %v2367 = vld [vmem:[%s197 + $0x152] sm:$0xff]
          %v2368 = vld [vmem:[%s197 + $0x16a] sm:$0xff]
          %v2369 = vld [vmem:[%s197 + $0x172] sm:$0xff]
          %v2370 = vld [vmem:[%s197 + $0x18a] sm:$0xff]
          %v2371 = vld [vmem:[%s197 + $0x192] sm:$0xff]
          %v2372 = vld [vmem:[%s197 + $0x1aa] sm:$0xff]
          %v2373 = vld [vmem:[%s197 + $0x1b2] sm:$0xff]
          %v2374 = vld [vmem:[%s197 + $0x1ca] sm:$0xff]
          %v2375 = vld [vmem:[%s197 + $0x1d2] sm:$0xff]
          %v2376 = vld [vmem:[%s197 + $0x1ea] sm:$0xff]
          %v2377 = vld [vmem:[%s197 + $0x1f2] sm:$0xff]
          %s2378 = scalar_lea.vmem [#allocation2], 160
          %v2379 = vld [vmem:[%s2378 + $0x6] sm:$0xff]
          %v2380 = vld [vmem:[%s2378 + $0xe] sm:$0xff]
          %v2381 = vld [vmem:[%s2378 + $0x26] sm:$0xff]
          %v2382 = vld [vmem:[%s2378 + $0x2e] sm:$0xff]
          %v2383 = vld [vmem:[%s2378 + $0x46] sm:$0xff]
          %v2384 = vld [vmem:[%s2378 + $0x4e] sm:$0xff]
          %v2385 = vld [vmem:[%s2378 + $0x66] sm:$0xff]
          %v2386 = vld [vmem:[%s2378 + $0x6e] sm:$0xff]
          %v2387 = vld [vmem:[%s2378 + $0x86] sm:$0xff]
          %v2388 = vld [vmem:[%s2378 + $0x8e] sm:$0xff]
          %v2389 = vld [vmem:[%s2378 + $0xa6] sm:$0xff]
          %v2390 = vld [vmem:[%s2378 + $0xae] sm:$0xff]
          %v2391 = vld [vmem:[%s2378 + $0xc6] sm:$0xff]
          %v2392 = vld [vmem:[%s2378 + $0xce] sm:$0xff]
          %v2393 = vld [vmem:[%s2378 + $0xe6] sm:$0xff]
          %v2394 = vld [vmem:[%s2378 + $0xee] sm:$0xff]
          %v2395 = vld [vmem:[%s2378 + $0x106] sm:$0xff]
          %v2396 = vld [vmem:[%s2378 + $0x10e] sm:$0xff]
          %v2397 = vld [vmem:[%s2378 + $0x126] sm:$0xff]
          %v2398 = vld [vmem:[%s2378 + $0x12e] sm:$0xff]
          %v2399 = vld [vmem:[%s2378 + $0x146] sm:$0xff]
          %v2400 = vld [vmem:[%s2378 + $0x14e] sm:$0xff]
          %v2401 = vld [vmem:[%s2378 + $0x166] sm:$0xff]
          %v2402 = vld [vmem:[%s2378 + $0x16e] sm:$0xff]
          %v2403 = vld [vmem:[%s2378 + $0x186] sm:$0xff]
          %v2404 = vld [vmem:[%s2378 + $0x18e] sm:$0xff]
          %v2405 = vld [vmem:[%s2378 + $0x1a6] sm:$0xff]
          %v2406 = vld [vmem:[%s2378 + $0x1ae] sm:$0xff]
          %v2407 = vld [vmem:[%s2378 + $0x1c6] sm:$0xff]
          %v2408 = vld [vmem:[%s2378 + $0x1ce] sm:$0xff]
          %v2409 = vld [vmem:[%s2378 + $0x1e6] sm:$0xff]
          %v2410 = vld [vmem:[%s2378 + $0x1ee] sm:$0xff]
          %v2411 = vld [vmem:[%s2378 + $0x8] sm:$0xff]
          %v2412 = vld [vmem:[%s2378 + $0x10] sm:$0xff]
          %v2413 = vld [vmem:[%s2378 + $0x28] sm:$0xff]
          %v2414 = vld [vmem:[%s2378 + $0x30] sm:$0xff]
          %v2415 = vld [vmem:[%s2378 + $0x48] sm:$0xff]
          %v2416 = vld [vmem:[%s2378 + $0x50] sm:$0xff]
          %v2417 = vld [vmem:[%s2378 + $0x68] sm:$0xff]
          %v2418 = vld [vmem:[%s2378 + $0x70] sm:$0xff]
          %v2419 = vld [vmem:[%s2378 + $0x88] sm:$0xff]
          %v2420 = vld [vmem:[%s2378 + $0x90] sm:$0xff]
          %v2421 = vld [vmem:[%s2378 + $0xa8] sm:$0xff]
          %v2422 = vld [vmem:[%s2378 + $0xb0] sm:$0xff]
          %v2423 = vld [vmem:[%s2378 + $0xc8] sm:$0xff]
          %v2424 = vld [vmem:[%s2378 + $0xd0] sm:$0xff]
          %v2425 = vld [vmem:[%s2378 + $0xe8] sm:$0xff]
          %v2426 = vld [vmem:[%s2378 + $0xf0] sm:$0xff]
          %v2427 = vld [vmem:[%s2378 + $0x108] sm:$0xff]
          %v2428 = vld [vmem:[%s2378 + $0x110] sm:$0xff]
          %v2429 = vld [vmem:[%s2378 + $0x128] sm:$0xff]
          %v2430 = vld [vmem:[%s2378 + $0x130] sm:$0xff]
          %v2431 = vld [vmem:[%s2378 + $0x148] sm:$0xff]
          %v2432 = vld [vmem:[%s2378 + $0x150] sm:$0xff]
          %v2433 = vld [vmem:[%s2378 + $0x168] sm:$0xff]
          %v2434 = vld [vmem:[%s2378 + $0x170] sm:$0xff]
          %v2435 = vld [vmem:[%s2378 + $0x188] sm:$0xff]
          %v2436 = vld [vmem:[%s2378 + $0x190] sm:$0xff]
          %v2437 = vld [vmem:[%s2378 + $0x1a8] sm:$0xff]
          %v2438 = vld [vmem:[%s2378 + $0x1b0] sm:$0xff]
          %v2439 = vld [vmem:[%s2378 + $0x1c8] sm:$0xff]
          %v2440 = vld [vmem:[%s2378 + $0x1d0] sm:$0xff]
          %v2441 = vld [vmem:[%s2378 + $0x1e8] sm:$0xff]
          %v2442 = vld [vmem:[%s2378 + $0x1f0] sm:$0xff]
          %v2443 = vld [vmem:[%s2378 + $0xa] sm:$0xff]
          %v2444 = vld [vmem:[%s2378 + $0x12] sm:$0xff]
          %v2445 = vld [vmem:[%s2378 + $0x2a] sm:$0xff]
          %v2446 = vld [vmem:[%s2378 + $0x32] sm:$0xff]
          %v2447 = vld [vmem:[%s2378 + $0x4a] sm:$0xff]
          %v2448 = vld [vmem:[%s2378 + $0x52] sm:$0xff]
          %v2449 = vld [vmem:[%s2378 + $0x6a] sm:$0xff]
          %v2450 = vld [vmem:[%s2378 + $0x72] sm:$0xff]
          %v2451 = vld [vmem:[%s2378 + $0x8a] sm:$0xff]
          %v2452 = vld [vmem:[%s2378 + $0x92] sm:$0xff]
          %v2453 = vld [vmem:[%s2378 + $0xaa] sm:$0xff]
          %v2454 = vld [vmem:[%s2378 + $0xb2] sm:$0xff]
          %v2455 = vld [vmem:[%s2378 + $0xca] sm:$0xff]
          %v2456 = vld [vmem:[%s2378 + $0xd2] sm:$0xff]
          %v2457 = vld [vmem:[%s2378 + $0xea] sm:$0xff]
          %v2458 = vld [vmem:[%s2378 + $0xf2] sm:$0xff]
          %v2459 = vld [vmem:[%s2378 + $0x10a] sm:$0xff]
          %v2460 = vld [vmem:[%s2378 + $0x112] sm:$0xff]
          %v2461 = vld [vmem:[%s2378 + $0x12a] sm:$0xff]
          %v2462 = vld [vmem:[%s2378 + $0x132] sm:$0xff]
          %v2463 = vld [vmem:[%s2378 + $0x14a] sm:$0xff]
          %v2464 = vld [vmem:[%s2378 + $0x152] sm:$0xff]
          %v2465 = vld [vmem:[%s2378 + $0x16a] sm:$0xff]
          %v2466 = vld [vmem:[%s2378 + $0x172] sm:$0xff]
          %v2467 = vld [vmem:[%s2378 + $0x18a] sm:$0xff]
          %v2468 = vld [vmem:[%s2378 + $0x192] sm:$0xff]
          %v2469 = vld [vmem:[%s2378 + $0x1aa] sm:$0xff]
          %v2470 = vld [vmem:[%s2378 + $0x1b2] sm:$0xff]
          %v2471 = vld [vmem:[%s2378 + $0x1ca] sm:$0xff]
          %v2472 = vld [vmem:[%s2378 + $0x1d2] sm:$0xff]
          %v2473 = vld [vmem:[%s2378 + $0x1ea] sm:$0xff]
          %v2474 = vld [vmem:[%s2378 + $0x1f2] sm:$0xff]
          %2507 = vrot.lane.b32.xlu0 %v2218, 4
          %v2508 = vpop.permute.xlu0 %2507
          %2509 = vrot.lane.b32.xlu0 %v2219, 4
          %v2510 = vpop.permute.xlu0 %2509
          %2511 = vrot.lane.b32.xlu0 %v2220, 4
          %v2512 = vpop.permute.xlu0 %2511
          %2513 = vrot.lane.b32.xlu0 %v2221, 4
          %v2514 = vpop.permute.xlu0 %2513
          %2515 = vrot.lane.b32.xlu0 %v2222, 4
          %v2516 = vpop.permute.xlu0 %2515
          %2517 = vrot.lane.b32.xlu0 %v2223, 4
          %v2518 = vpop.permute.xlu0 %2517
          %2519 = vrot.lane.b32.xlu0 %v2224, 4
          %v2520 = vpop.permute.xlu0 %2519
          %2521 = vrot.lane.b32.xlu0 %v2225, 4
          %v2522 = vpop.permute.xlu0 %2521
          %2523 = vrot.lane.b32.xlu0 %v2226, 4
          %v2524 = vpop.permute.xlu0 %2523
          %2525 = vrot.lane.b32.xlu0 %v2227, 4
          %v2526 = vpop.permute.xlu0 %2525
          %2527 = vrot.lane.b32.xlu0 %v2228, 4
          %v2528 = vpop.permute.xlu0 %2527
          %2529 = vrot.lane.b32.xlu0 %v2229, 4
          %v2530 = vpop.permute.xlu0 %2529
          %2531 = vrot.lane.b32.xlu0 %v2230, 4
          %v2532 = vpop.permute.xlu0 %2531
          %2533 = vrot.lane.b32.xlu0 %v2231, 4
          %v2534 = vpop.permute.xlu0 %2533
          %2535 = vrot.lane.b32.xlu0 %v2232, 4
          %v2536 = vpop.permute.xlu0 %2535
          %2537 = vrot.lane.b32.xlu0 %v2233, 4
          %v2538 = vpop.permute.xlu0 %2537
          %2539 = vrot.lane.b32.xlu0 %v2234, 4
          %v2540 = vpop.permute.xlu0 %2539
          %2541 = vrot.lane.b32.xlu0 %v2235, 4
          %v2542 = vpop.permute.xlu0 %2541
          %2543 = vrot.lane.b32.xlu0 %v2236, 4
          %v2544 = vpop.permute.xlu0 %2543
          %2545 = vrot.lane.b32.xlu0 %v2237, 4
          %v2546 = vpop.permute.xlu0 %2545
          %2547 = vrot.lane.b32.xlu0 %v2238, 4
          %v2548 = vpop.permute.xlu0 %2547
          %2549 = vrot.lane.b32.xlu0 %v2239, 4
          %v2550 = vpop.permute.xlu0 %2549
          %2551 = vrot.lane.b32.xlu0 %v2240, 4
          %v2552 = vpop.permute.xlu0 %2551
          %2553 = vrot.lane.b32.xlu0 %v2241, 4
          %v2554 = vpop.permute.xlu0 %2553
          %2555 = vrot.lane.b32.xlu0 %v2242, 4
          %v2556 = vpop.permute.xlu0 %2555
          %2557 = vrot.lane.b32.xlu0 %v2243, 4
          %v2558 = vpop.permute.xlu0 %2557
          %2559 = vrot.lane.b32.xlu0 %v2244, 4
          %v2560 = vpop.permute.xlu0 %2559
          %2561 = vrot.lane.b32.xlu0 %v2245, 4
          %v2562 = vpop.permute.xlu0 %2561
          %2563 = vrot.lane.b32.xlu0 %v2246, 4
          %v2564 = vpop.permute.xlu0 %2563
          %2565 = vrot.lane.b32.xlu0 %v2247, 4
          %v2566 = vpop.permute.xlu0 %2565
          %2567 = vrot.lane.b32.xlu0 %v2248, 4
          %v2568 = vpop.permute.xlu0 %2567
          %2569 = vrot.lane.b32.xlu0 %v2249, 4
          %v2570 = vpop.permute.xlu0 %2569
          %2635 = vrot.lane.b32.xlu0 %v2250, 8
          %v2636 = vpop.permute.xlu0 %2635
          %2637 = vrot.lane.b32.xlu0 %v2251, 8
          %v2638 = vpop.permute.xlu0 %2637
          %2639 = vrot.lane.b32.xlu0 %v2252, 8
          %v2640 = vpop.permute.xlu0 %2639
          %2641 = vrot.lane.b32.xlu0 %v2253, 8
          %v2642 = vpop.permute.xlu0 %2641
          %2643 = vrot.lane.b32.xlu0 %v2254, 8
          %v2644 = vpop.permute.xlu0 %2643
          %2645 = vrot.lane.b32.xlu0 %v2255, 8
          %v2646 = vpop.permute.xlu0 %2645
          %2647 = vrot.lane.b32.xlu0 %v2256, 8
          %v2648 = vpop.permute.xlu0 %2647
          %2649 = vrot.lane.b32.xlu0 %v2257, 8
          %v2650 = vpop.permute.xlu0 %2649
          %2651 = vrot.lane.b32.xlu0 %v2258, 8
          %v2652 = vpop.permute.xlu0 %2651
          %2653 = vrot.lane.b32.xlu0 %v2259, 8
          %v2654 = vpop.permute.xlu0 %2653
          %2655 = vrot.lane.b32.xlu0 %v2260, 8
          %v2656 = vpop.permute.xlu0 %2655
          %2657 = vrot.lane.b32.xlu0 %v2261, 8
          %v2658 = vpop.permute.xlu0 %2657
          %2659 = vrot.lane.b32.xlu0 %v2262, 8
          %v2660 = vpop.permute.xlu0 %2659
          %2661 = vrot.lane.b32.xlu0 %v2263, 8
          %v2662 = vpop.permute.xlu0 %2661
          %2663 = vrot.lane.b32.xlu0 %v2264, 8
          %v2664 = vpop.permute.xlu0 %2663
          %2665 = vrot.lane.b32.xlu0 %v2265, 8
          %v2666 = vpop.permute.xlu0 %2665
          %2667 = vrot.lane.b32.xlu0 %v2266, 8
          %v2668 = vpop.permute.xlu0 %2667
          %2669 = vrot.lane.b32.xlu0 %v2267, 8
          %v2670 = vpop.permute.xlu0 %2669
          %2671 = vrot.lane.b32.xlu0 %v2268, 8
          %v2672 = vpop.permute.xlu0 %2671
          %2673 = vrot.lane.b32.xlu0 %v2269, 8
          %v2674 = vpop.permute.xlu0 %2673
          %2675 = vrot.lane.b32.xlu0 %v2270, 8
          %v2676 = vpop.permute.xlu0 %2675
          %2677 = vrot.lane.b32.xlu0 %v2271, 8
          %v2678 = vpop.permute.xlu0 %2677
          %2679 = vrot.lane.b32.xlu0 %v2272, 8
          %v2680 = vpop.permute.xlu0 %2679
          %2681 = vrot.lane.b32.xlu0 %v2273, 8
          %v2682 = vpop.permute.xlu0 %2681
          %2683 = vrot.lane.b32.xlu0 %v2274, 8
          %v2684 = vpop.permute.xlu0 %2683
          %2685 = vrot.lane.b32.xlu0 %v2275, 8
          %v2686 = vpop.permute.xlu0 %2685
          %2687 = vrot.lane.b32.xlu0 %v2276, 8
          %v2688 = vpop.permute.xlu0 %2687
          %2689 = vrot.lane.b32.xlu0 %v2277, 8
          %v2690 = vpop.permute.xlu0 %2689
          %2691 = vrot.lane.b32.xlu0 %v2278, 8
          %v2692 = vpop.permute.xlu0 %2691
          %2693 = vrot.lane.b32.xlu0 %v2279, 8
          %v2694 = vpop.permute.xlu0 %2693
          %2695 = vrot.lane.b32.xlu0 %v2280, 8
          %v2696 = vpop.permute.xlu0 %2695
          %2697 = vrot.lane.b32.xlu0 %v2281, 8
          %v2698 = vpop.permute.xlu0 %2697
          %2763 = vrot.lane.b32.xlu0 %v2282, 12
          %v2764 = vpop.permute.xlu0 %2763
          %2765 = vrot.lane.b32.xlu0 %v2283, 12
          %v2766 = vpop.permute.xlu0 %2765
          %2767 = vrot.lane.b32.xlu0 %v2284, 12
          %v2768 = vpop.permute.xlu0 %2767
          %2769 = vrot.lane.b32.xlu0 %v2285, 12
          %v2770 = vpop.permute.xlu0 %2769
          %2771 = vrot.lane.b32.xlu0 %v2286, 12
          %v2772 = vpop.permute.xlu0 %2771
          %2773 = vrot.lane.b32.xlu0 %v2287, 12
          %v2774 = vpop.permute.xlu0 %2773
          %2775 = vrot.lane.b32.xlu0 %v2288, 12
          %v2776 = vpop.permute.xlu0 %2775
          %2777 = vrot.lane.b32.xlu0 %v2289, 12
          %v2778 = vpop.permute.xlu0 %2777
          %2779 = vrot.lane.b32.xlu0 %v2290, 12
          %v2780 = vpop.permute.xlu0 %2779
          %2781 = vrot.lane.b32.xlu0 %v2291, 12
          %v2782 = vpop.permute.xlu0 %2781
          %2783 = vrot.lane.b32.xlu0 %v2292, 12
          %v2784 = vpop.permute.xlu0 %2783
          %2785 = vrot.lane.b32.xlu0 %v2293, 12
          %v2786 = vpop.permute.xlu0 %2785
          %2787 = vrot.lane.b32.xlu0 %v2294, 12
          %v2788 = vpop.permute.xlu0 %2787
          %2789 = vrot.lane.b32.xlu0 %v2295, 12
          %v2790 = vpop.permute.xlu0 %2789
          %2791 = vrot.lane.b32.xlu0 %v2296, 12
          %v2792 = vpop.permute.xlu0 %2791
          %2793 = vrot.lane.b32.xlu0 %v2297, 12
          %v2794 = vpop.permute.xlu0 %2793
          %2795 = vrot.lane.b32.xlu0 %v2298, 12
          %v2796 = vpop.permute.xlu0 %2795
          %2797 = vrot.lane.b32.xlu0 %v2299, 12
          %v2798 = vpop.permute.xlu0 %2797
          %2799 = vrot.lane.b32.xlu0 %v2300, 12
          %v2800 = vpop.permute.xlu0 %2799
          %2801 = vrot.lane.b32.xlu0 %v2301, 12
          %v2802 = vpop.permute.xlu0 %2801
          %2803 = vrot.lane.b32.xlu0 %v2302, 12
          %v2804 = vpop.permute.xlu0 %2803
          %2805 = vrot.lane.b32.xlu0 %v2303, 12
          %v2806 = vpop.permute.xlu0 %2805
          %2807 = vrot.lane.b32.xlu0 %v2304, 12
          %v2808 = vpop.permute.xlu0 %2807
          %2809 = vrot.lane.b32.xlu0 %v2305, 12
          %v2810 = vpop.permute.xlu0 %2809
          %2811 = vrot.lane.b32.xlu0 %v2306, 12
          %v2812 = vpop.permute.xlu0 %2811
          %2813 = vrot.lane.b32.xlu0 %v2307, 12
          %v2814 = vpop.permute.xlu0 %2813
          %2815 = vrot.lane.b32.xlu0 %v2308, 12
          %v2816 = vpop.permute.xlu0 %2815
          %2817 = vrot.lane.b32.xlu0 %v2309, 12
          %v2818 = vpop.permute.xlu0 %2817
          %2819 = vrot.lane.b32.xlu0 %v2310, 12
          %v2820 = vpop.permute.xlu0 %2819
          %2821 = vrot.lane.b32.xlu0 %v2311, 12
          %v2822 = vpop.permute.xlu0 %2821
          %2823 = vrot.lane.b32.xlu0 %v2312, 12
          %v2824 = vpop.permute.xlu0 %2823
          %2825 = vrot.lane.b32.xlu0 %v2313, 12
          %v2826 = vpop.permute.xlu0 %2825
          %2891 = vrot.lane.b32.xlu0 %v2314, 16
          %v2892 = vpop.permute.xlu0 %2891
          %2893 = vrot.lane.b32.xlu0 %v2315, 16
          %v2894 = vpop.permute.xlu0 %2893
          %2895 = vrot.lane.b32.xlu0 %v2316, 16
          %v2896 = vpop.permute.xlu0 %2895
          %2897 = vrot.lane.b32.xlu0 %v2317, 16
          %v2898 = vpop.permute.xlu0 %2897
          %2899 = vrot.lane.b32.xlu0 %v2318, 16
          %v2900 = vpop.permute.xlu0 %2899
          %2901 = vrot.lane.b32.xlu0 %v2319, 16
          %v2902 = vpop.permute.xlu0 %2901
          %2903 = vrot.lane.b32.xlu0 %v2320, 16
          %v2904 = vpop.permute.xlu0 %2903
          %2905 = vrot.lane.b32.xlu0 %v2321, 16
          %v2906 = vpop.permute.xlu0 %2905
          %2907 = vrot.lane.b32.xlu0 %v2322, 16
          %v2908 = vpop.permute.xlu0 %2907
          %2909 = vrot.lane.b32.xlu0 %v2323, 16
          %v2910 = vpop.permute.xlu0 %2909
          %2911 = vrot.lane.b32.xlu0 %v2324, 16
          %v2912 = vpop.permute.xlu0 %2911
          %2913 = vrot.lane.b32.xlu0 %v2325, 16
          %v2914 = vpop.permute.xlu0 %2913
          %2915 = vrot.lane.b32.xlu0 %v2326, 16
          %v2916 = vpop.permute.xlu0 %2915
          %2917 = vrot.lane.b32.xlu0 %v2327, 16
          %v2918 = vpop.permute.xlu0 %2917
          %2919 = vrot.lane.b32.xlu0 %v2328, 16
          %v2920 = vpop.permute.xlu0 %2919
          %2921 = vrot.lane.b32.xlu0 %v2329, 16
          %v2922 = vpop.permute.xlu0 %2921
          %2923 = vrot.lane.b32.xlu0 %v2330, 16
          %v2924 = vpop.permute.xlu0 %2923
          %2925 = vrot.lane.b32.xlu0 %v2331, 16
          %v2926 = vpop.permute.xlu0 %2925
          %2927 = vrot.lane.b32.xlu0 %v2332, 16
          %v2928 = vpop.permute.xlu0 %2927
          %2929 = vrot.lane.b32.xlu0 %v2333, 16
          %v2930 = vpop.permute.xlu0 %2929
          %2931 = vrot.lane.b32.xlu0 %v2334, 16
          %v2932 = vpop.permute.xlu0 %2931
          %2933 = vrot.lane.b32.xlu0 %v2335, 16
          %v2934 = vpop.permute.xlu0 %2933
          %2935 = vrot.lane.b32.xlu0 %v2336, 16
          %v2936 = vpop.permute.xlu0 %2935
          %2937 = vrot.lane.b32.xlu0 %v2337, 16
          %v2938 = vpop.permute.xlu0 %2937
          %2939 = vrot.lane.b32.xlu0 %v2338, 16
          %v2940 = vpop.permute.xlu0 %2939
          %2941 = vrot.lane.b32.xlu0 %v2339, 16
          %v2942 = vpop.permute.xlu0 %2941
          %2943 = vrot.lane.b32.xlu0 %v2340, 16
          %v2944 = vpop.permute.xlu0 %2943
          %2945 = vrot.lane.b32.xlu0 %v2341, 16
          %v2946 = vpop.permute.xlu0 %2945
          %2947 = vrot.lane.b32.xlu0 %v2342, 16
          %v2948 = vpop.permute.xlu0 %2947
          %2949 = vrot.lane.b32.xlu0 %v2343, 16
          %v2950 = vpop.permute.xlu0 %2949
          %2951 = vrot.lane.b32.xlu0 %v2344, 16
          %v2952 = vpop.permute.xlu0 %2951
          %2953 = vrot.lane.b32.xlu0 %v2345, 16
          %v2954 = vpop.permute.xlu0 %2953
          %3019 = vrot.lane.b32.xlu0 %v2346, 20
          %v3020 = vpop.permute.xlu0 %3019
          %3021 = vrot.lane.b32.xlu0 %v2347, 20
          %v3022 = vpop.permute.xlu0 %3021
          %3023 = vrot.lane.b32.xlu0 %v2348, 20
          %v3024 = vpop.permute.xlu0 %3023
          %3025 = vrot.lane.b32.xlu0 %v2349, 20
          %v3026 = vpop.permute.xlu0 %3025
          %3027 = vrot.lane.b32.xlu0 %v2350, 20
          %v3028 = vpop.permute.xlu0 %3027
          %3029 = vrot.lane.b32.xlu0 %v2351, 20
          %v3030 = vpop.permute.xlu0 %3029
          %3031 = vrot.lane.b32.xlu0 %v2352, 20
          %v3032 = vpop.permute.xlu0 %3031
          %3033 = vrot.lane.b32.xlu0 %v2353, 20
          %v3034 = vpop.permute.xlu0 %3033
          %3035 = vrot.lane.b32.xlu0 %v2354, 20
          %v3036 = vpop.permute.xlu0 %3035
          %3037 = vrot.lane.b32.xlu0 %v2355, 20
          %v3038 = vpop.permute.xlu0 %3037
          %3039 = vrot.lane.b32.xlu0 %v2356, 20
          %v3040 = vpop.permute.xlu0 %3039
          %3041 = vrot.lane.b32.xlu0 %v2357, 20
          %v3042 = vpop.permute.xlu0 %3041
          %3043 = vrot.lane.b32.xlu0 %v2358, 20
          %v3044 = vpop.permute.xlu0 %3043
          %3045 = vrot.lane.b32.xlu0 %v2359, 20
          %v3046 = vpop.permute.xlu0 %3045
          %3047 = vrot.lane.b32.xlu0 %v2360, 20
          %v3048 = vpop.permute.xlu0 %3047
          %3049 = vrot.lane.b32.xlu0 %v2361, 20
          %v3050 = vpop.permute.xlu0 %3049
          %3051 = vrot.lane.b32.xlu0 %v2362, 20
          %v3052 = vpop.permute.xlu0 %3051
          %3053 = vrot.lane.b32.xlu0 %v2363, 20
          %v3054 = vpop.permute.xlu0 %3053
          %3055 = vrot.lane.b32.xlu0 %v2364, 20
          %v3056 = vpop.permute.xlu0 %3055
          %3057 = vrot.lane.b32.xlu0 %v2365, 20
          %v3058 = vpop.permute.xlu0 %3057
          %3059 = vrot.lane.b32.xlu0 %v2366, 20
          %v3060 = vpop.permute.xlu0 %3059
          %3061 = vrot.lane.b32.xlu0 %v2367, 20
          %v3062 = vpop.permute.xlu0 %3061
          %3063 = vrot.lane.b32.xlu0 %v2368, 20
          %v3064 = vpop.permute.xlu0 %3063
          %3065 = vrot.lane.b32.xlu0 %v2369, 20
          %v3066 = vpop.permute.xlu0 %3065
          %3067 = vrot.lane.b32.xlu0 %v2370, 20
          %v3068 = vpop.permute.xlu0 %3067
          %3069 = vrot.lane.b32.xlu0 %v2371, 20
          %v3070 = vpop.permute.xlu0 %3069
          %3071 = vrot.lane.b32.xlu0 %v2372, 20
          %v3072 = vpop.permute.xlu0 %3071
          %3073 = vrot.lane.b32.xlu0 %v2373, 20
          %v3074 = vpop.permute.xlu0 %3073
          %3075 = vrot.lane.b32.xlu0 %v2374, 20
          %v3076 = vpop.permute.xlu0 %3075
          %3077 = vrot.lane.b32.xlu0 %v2375, 20
          %v3078 = vpop.permute.xlu0 %3077
          %3079 = vrot.lane.b32.xlu0 %v2376, 20
          %v3080 = vpop.permute.xlu0 %3079
          %3081 = vrot.lane.b32.xlu0 %v2377, 20
          %v3082 = vpop.permute.xlu0 %3081
          %3147 = vrot.lane.b32.xlu0 %v2379, 24
          %v3148 = vpop.permute.xlu0 %3147
          %3149 = vrot.lane.b32.xlu0 %v2380, 24
          %v3150 = vpop.permute.xlu0 %3149
          %3151 = vrot.lane.b32.xlu0 %v2381, 24
          %v3152 = vpop.permute.xlu0 %3151
          %3153 = vrot.lane.b32.xlu0 %v2382, 24
          %v3154 = vpop.permute.xlu0 %3153
          %3155 = vrot.lane.b32.xlu0 %v2383, 24
          %v3156 = vpop.permute.xlu0 %3155
          %3157 = vrot.lane.b32.xlu0 %v2384, 24
          %v3158 = vpop.permute.xlu0 %3157
          %3159 = vrot.lane.b32.xlu0 %v2385, 24
          %v3160 = vpop.permute.xlu0 %3159
          %3161 = vrot.lane.b32.xlu0 %v2386, 24
          %v3162 = vpop.permute.xlu0 %3161
          %3163 = vrot.lane.b32.xlu0 %v2387, 24
          %v3164 = vpop.permute.xlu0 %3163
          %3165 = vrot.lane.b32.xlu0 %v2388, 24
          %v3166 = vpop.permute.xlu0 %3165
          %3167 = vrot.lane.b32.xlu0 %v2389, 24
          %v3168 = vpop.permute.xlu0 %3167
          %3169 = vrot.lane.b32.xlu0 %v2390, 24
          %v3170 = vpop.permute.xlu0 %3169
          %3171 = vrot.lane.b32.xlu0 %v2391, 24
          %v3172 = vpop.permute.xlu0 %3171
          %3173 = vrot.lane.b32.xlu0 %v2392, 24
          %v3174 = vpop.permute.xlu0 %3173
          %3175 = vrot.lane.b32.xlu0 %v2393, 24
          %v3176 = vpop.permute.xlu0 %3175
          %3177 = vrot.lane.b32.xlu0 %v2394, 24
          %v3178 = vpop.permute.xlu0 %3177
          %3179 = vrot.lane.b32.xlu0 %v2395, 24
          %v3180 = vpop.permute.xlu0 %3179
          %3181 = vrot.lane.b32.xlu0 %v2396, 24
          %v3182 = vpop.permute.xlu0 %3181
          %3183 = vrot.lane.b32.xlu0 %v2397, 24
          %v3184 = vpop.permute.xlu0 %3183
          %3185 = vrot.lane.b32.xlu0 %v2398, 24
          %v3186 = vpop.permute.xlu0 %3185
          %3187 = vrot.lane.b32.xlu0 %v2399, 24
          %v3188 = vpop.permute.xlu0 %3187
          %3189 = vrot.lane.b32.xlu0 %v2400, 24
          %v3190 = vpop.permute.xlu0 %3189
          %3191 = vrot.lane.b32.xlu0 %v2401, 24
          %v3192 = vpop.permute.xlu0 %3191
          %3193 = vrot.lane.b32.xlu0 %v2402, 24
          %v3194 = vpop.permute.xlu0 %3193
          %3195 = vrot.lane.b32.xlu0 %v2403, 24
          %v3196 = vpop.permute.xlu0 %3195
          %3197 = vrot.lane.b32.xlu0 %v2404, 24
          %v3198 = vpop.permute.xlu0 %3197
          %3199 = vrot.lane.b32.xlu0 %v2405, 24
          %v3200 = vpop.permute.xlu0 %3199
          %3201 = vrot.lane.b32.xlu0 %v2406, 24
          %v3202 = vpop.permute.xlu0 %3201
          %3203 = vrot.lane.b32.xlu0 %v2407, 24
          %v3204 = vpop.permute.xlu0 %3203
          %3205 = vrot.lane.b32.xlu0 %v2408, 24
          %v3206 = vpop.permute.xlu0 %3205
          %3207 = vrot.lane.b32.xlu0 %v2409, 24
          %v3208 = vpop.permute.xlu0 %3207
          %3209 = vrot.lane.b32.xlu0 %v2410, 24
          %v3210 = vpop.permute.xlu0 %3209
          %3275 = vrot.lane.b32.xlu0 %v2411, 28
          %v3276 = vpop.permute.xlu0 %3275
          %3277 = vrot.lane.b32.xlu0 %v2412, 28
          %v3278 = vpop.permute.xlu0 %3277
          %3279 = vrot.lane.b32.xlu0 %v2413, 28
          %v3280 = vpop.permute.xlu0 %3279
          %3281 = vrot.lane.b32.xlu0 %v2414, 28
          %v3282 = vpop.permute.xlu0 %3281
          %3283 = vrot.lane.b32.xlu0 %v2415, 28
          %v3284 = vpop.permute.xlu0 %3283
          %3285 = vrot.lane.b32.xlu0 %v2416, 28
          %v3286 = vpop.permute.xlu0 %3285
          %3287 = vrot.lane.b32.xlu0 %v2417, 28
          %v3288 = vpop.permute.xlu0 %3287
          %3289 = vrot.lane.b32.xlu0 %v2418, 28
          %v3290 = vpop.permute.xlu0 %3289
          %3291 = vrot.lane.b32.xlu0 %v2419, 28
          %v3292 = vpop.permute.xlu0 %3291
          %3293 = vrot.lane.b32.xlu0 %v2420, 28
          %v3294 = vpop.permute.xlu0 %3293
          %3295 = vrot.lane.b32.xlu0 %v2421, 28
          %v3296 = vpop.permute.xlu0 %3295
          %3297 = vrot.lane.b32.xlu0 %v2422, 28
          %v3298 = vpop.permute.xlu0 %3297
          %3299 = vrot.lane.b32.xlu0 %v2423, 28
          %v3300 = vpop.permute.xlu0 %3299
          %3301 = vrot.lane.b32.xlu0 %v2424, 28
          %v3302 = vpop.permute.xlu0 %3301
          %3303 = vrot.lane.b32.xlu0 %v2425, 28
          %v3304 = vpop.permute.xlu0 %3303
          %3305 = vrot.lane.b32.xlu0 %v2426, 28
          %v3306 = vpop.permute.xlu0 %3305
          %3307 = vrot.lane.b32.xlu0 %v2427, 28
          %v3308 = vpop.permute.xlu0 %3307
          %3309 = vrot.lane.b32.xlu0 %v2428, 28
          %v3310 = vpop.permute.xlu0 %3309
          %3311 = vrot.lane.b32.xlu0 %v2429, 28
          %v3312 = vpop.permute.xlu0 %3311
          %3313 = vrot.lane.b32.xlu0 %v2430, 28
          %v3314 = vpop.permute.xlu0 %3313
          %3315 = vrot.lane.b32.xlu0 %v2431, 28
          %v3316 = vpop.permute.xlu0 %3315
          %3317 = vrot.lane.b32.xlu0 %v2432, 28
          %v3318 = vpop.permute.xlu0 %3317
          %3319 = vrot.lane.b32.xlu0 %v2433, 28
          %v3320 = vpop.permute.xlu0 %3319
          %3321 = vrot.lane.b32.xlu0 %v2434, 28
          %v3322 = vpop.permute.xlu0 %3321
          %3323 = vrot.lane.b32.xlu0 %v2435, 28
          %v3324 = vpop.permute.xlu0 %3323
          %3325 = vrot.lane.b32.xlu0 %v2436, 28
          %v3326 = vpop.permute.xlu0 %3325
          %3327 = vrot.lane.b32.xlu0 %v2437, 28
          %v3328 = vpop.permute.xlu0 %3327
          %3329 = vrot.lane.b32.xlu0 %v2438, 28
          %v3330 = vpop.permute.xlu0 %3329
          %3331 = vrot.lane.b32.xlu0 %v2439, 28
          %v3332 = vpop.permute.xlu0 %3331
          %3333 = vrot.lane.b32.xlu0 %v2440, 28
          %v3334 = vpop.permute.xlu0 %3333
          %3335 = vrot.lane.b32.xlu0 %v2441, 28
          %v3336 = vpop.permute.xlu0 %3335
          %3337 = vrot.lane.b32.xlu0 %v2442, 28
          %v3338 = vpop.permute.xlu0 %3337
          %3403 = vrot.lane.b32.xlu0 %v2443, 32
          %v3404 = vpop.permute.xlu0 %3403
          %3405 = vrot.lane.b32.xlu0 %v2444, 32
          %v3406 = vpop.permute.xlu0 %3405
          %3407 = vrot.lane.b32.xlu0 %v2445, 32
          %v3408 = vpop.permute.xlu0 %3407
          %3409 = vrot.lane.b32.xlu0 %v2446, 32
          %v3410 = vpop.permute.xlu0 %3409
          %3411 = vrot.lane.b32.xlu0 %v2447, 32
          %v3412 = vpop.permute.xlu0 %3411
          %3413 = vrot.lane.b32.xlu0 %v2448, 32
          %v3414 = vpop.permute.xlu0 %3413
          %3415 = vrot.lane.b32.xlu0 %v2449, 32
          %v3416 = vpop.permute.xlu0 %3415
          %3417 = vrot.lane.b32.xlu0 %v2450, 32
          %v3418 = vpop.permute.xlu0 %3417
          %3419 = vrot.lane.b32.xlu0 %v2451, 32
          %v3420 = vpop.permute.xlu0 %3419
          %3421 = vrot.lane.b32.xlu0 %v2452, 32
          %v3422 = vpop.permute.xlu0 %3421
          %3423 = vrot.lane.b32.xlu0 %v2453, 32
          %v3424 = vpop.permute.xlu0 %3423
          %3425 = vrot.lane.b32.xlu0 %v2454, 32
          %v3426 = vpop.permute.xlu0 %3425
          %3427 = vrot.lane.b32.xlu0 %v2455, 32
          %v3428 = vpop.permute.xlu0 %3427
          %3429 = vrot.lane.b32.xlu0 %v2456, 32
          %v3430 = vpop.permute.xlu0 %3429
          %3431 = vrot.lane.b32.xlu0 %v2457, 32
          %v3432 = vpop.permute.xlu0 %3431
          %3433 = vrot.lane.b32.xlu0 %v2458, 32
          %v3434 = vpop.permute.xlu0 %3433
          %3435 = vrot.lane.b32.xlu0 %v2459, 32
          %v3436 = vpop.permute.xlu0 %3435
          %3437 = vrot.lane.b32.xlu0 %v2460, 32
          %v3438 = vpop.permute.xlu0 %3437
          %3439 = vrot.lane.b32.xlu0 %v2461, 32
          %v3440 = vpop.permute.xlu0 %3439
          %3441 = vrot.lane.b32.xlu0 %v2462, 32
          %v3442 = vpop.permute.xlu0 %3441
          %3443 = vrot.lane.b32.xlu0 %v2463, 32
          %v3444 = vpop.permute.xlu0 %3443
          %3445 = vrot.lane.b32.xlu0 %v2464, 32
          %v3446 = vpop.permute.xlu0 %3445
          %3447 = vrot.lane.b32.xlu0 %v2465, 32
          %v3448 = vpop.permute.xlu0 %3447
          %3449 = vrot.lane.b32.xlu0 %v2466, 32
          %v3450 = vpop.permute.xlu0 %3449
          %3451 = vrot.lane.b32.xlu0 %v2467, 32
          %v3452 = vpop.permute.xlu0 %3451
          %3453 = vrot.lane.b32.xlu0 %v2468, 32
          %v3454 = vpop.permute.xlu0 %3453
          %3455 = vrot.lane.b32.xlu0 %v2469, 32
          %v3456 = vpop.permute.xlu0 %3455
          %3457 = vrot.lane.b32.xlu0 %v2470, 32
          %v3458 = vpop.permute.xlu0 %3457
          %3459 = vrot.lane.b32.xlu0 %v2471, 32
          %v3460 = vpop.permute.xlu0 %3459
          %3461 = vrot.lane.b32.xlu0 %v2472, 32
          %v3462 = vpop.permute.xlu0 %3461
          %3463 = vrot.lane.b32.xlu0 %v2473, 32
          %v3464 = vpop.permute.xlu0 %3463
          %3465 = vrot.lane.b32.xlu0 %v2474, 32
          %v3466 = vpop.permute.xlu0 %3465
          %v3499 = vsel %vm170, %v2186, %v2508
          %v3500 = vsel %vm170, %v2187, %v2510
          %v3501 = vsel %vm170, %v2188, %v2512
          %v3502 = vsel %vm170, %v2189, %v2514
          %v3503 = vsel %vm170, %v2190, %v2516
          %v3504 = vsel %vm170, %v2191, %v2518
          %v3505 = vsel %vm170, %v2192, %v2520
          %v3506 = vsel %vm170, %v2193, %v2522
          %v3507 = vsel %vm170, %v2194, %v2524
          %v3508 = vsel %vm170, %v2195, %v2526
          %v3509 = vsel %vm170, %v2196, %v2528
          %v3510 = vsel %vm170, %v2197, %v2530
          %v3511 = vsel %vm170, %v2198, %v2532
          %v3512 = vsel %vm170, %v2199, %v2534
          %v3513 = vsel %vm170, %v2200, %v2536
          %v3514 = vsel %vm170, %v2201, %v2538
          %v3515 = vsel %vm170, %v2202, %v2540
          %v3516 = vsel %vm170, %v2203, %v2542
          %v3517 = vsel %vm170, %v2204, %v2544
          %v3518 = vsel %vm170, %v2205, %v2546
          %v3519 = vsel %vm170, %v2206, %v2548
          %v3520 = vsel %vm170, %v2207, %v2550
          %v3521 = vsel %vm170, %v2208, %v2552
          %v3522 = vsel %vm170, %v2209, %v2554
          %v3523 = vsel %vm170, %v2210, %v2556
          %v3524 = vsel %vm170, %v2211, %v2558
          %v3525 = vsel %vm170, %v2212, %v2560
          %v3526 = vsel %vm170, %v2213, %v2562
          %v3527 = vsel %vm170, %v2214, %v2564
          %v3528 = vsel %vm170, %v2215, %v2566
          %v3529 = vsel %vm170, %v2216, %v2568
          %v3530 = vsel %vm170, %v2217, %v2570
          %vm3531 = vcmask 64512
          %v3532 = vsel %vm3531, %v3499, %v2636
          %v3533 = vsel %vm3531, %v3500, %v2638
          %v3534 = vsel %vm3531, %v3501, %v2640
          %v3535 = vsel %vm3531, %v3502, %v2642
          %v3536 = vsel %vm3531, %v3503, %v2644
          %v3537 = vsel %vm3531, %v3504, %v2646
          %v3538 = vsel %vm3531, %v3505, %v2648
          %v3539 = vsel %vm3531, %v3506, %v2650
          %v3540 = vsel %vm3531, %v3507, %v2652
          %v3541 = vsel %vm3531, %v3508, %v2654
          %v3542 = vsel %vm3531, %v3509, %v2656
          %v3543 = vsel %vm3531, %v3510, %v2658
          %v3544 = vsel %vm3531, %v3511, %v2660
          %v3545 = vsel %vm3531, %v3512, %v2662
          %v3546 = vsel %vm3531, %v3513, %v2664
          %v3547 = vsel %vm3531, %v3514, %v2666
          %v3548 = vsel %vm3531, %v3515, %v2668
          %v3549 = vsel %vm3531, %v3516, %v2670
          %v3550 = vsel %vm3531, %v3517, %v2672
          %v3551 = vsel %vm3531, %v3518, %v2674
          %v3552 = vsel %vm3531, %v3519, %v2676
          %v3553 = vsel %vm3531, %v3520, %v2678
          %v3554 = vsel %vm3531, %v3521, %v2680
          %v3555 = vsel %vm3531, %v3522, %v2682
          %v3556 = vsel %vm3531, %v3523, %v2684
          %v3557 = vsel %vm3531, %v3524, %v2686
          %v3558 = vsel %vm3531, %v3525, %v2688
          %v3559 = vsel %vm3531, %v3526, %v2690
          %v3560 = vsel %vm3531, %v3527, %v2692
          %v3561 = vsel %vm3531, %v3528, %v2694
          %v3562 = vsel %vm3531, %v3529, %v2696
          %v3563 = vsel %vm3531, %v3530, %v2698
          %vm3564 = vcmask 97280
          %v3565 = vsel %vm3564, %v3532, %v2764
          %v3566 = vsel %vm3564, %v3533, %v2766
          %v3567 = vsel %vm3564, %v3534, %v2768
          %v3568 = vsel %vm3564, %v3535, %v2770
          %v3569 = vsel %vm3564, %v3536, %v2772
          %v3570 = vsel %vm3564, %v3537, %v2774
          %v3571 = vsel %vm3564, %v3538, %v2776
          %v3572 = vsel %vm3564, %v3539, %v2778
          %v3573 = vsel %vm3564, %v3540, %v2780
          %v3574 = vsel %vm3564, %v3541, %v2782
          %v3575 = vsel %vm3564, %v3542, %v2784
          %v3576 = vsel %vm3564, %v3543, %v2786
          %v3577 = vsel %vm3564, %v3544, %v2788
          %v3578 = vsel %vm3564, %v3545, %v2790
          %v3579 = vsel %vm3564, %v3546, %v2792
          %v3580 = vsel %vm3564, %v3547, %v2794
          %v3581 = vsel %vm3564, %v3548, %v2796
          %v3582 = vsel %vm3564, %v3549, %v2798
          %v3583 = vsel %vm3564, %v3550, %v2800
          %v3584 = vsel %vm3564, %v3551, %v2802
          %v3585 = vsel %vm3564, %v3552, %v2804
          %v3586 = vsel %vm3564, %v3553, %v2806
          %v3587 = vsel %vm3564, %v3554, %v2808
          %v3588 = vsel %vm3564, %v3555, %v2810
          %v3589 = vsel %vm3564, %v3556, %v2812
          %v3590 = vsel %vm3564, %v3557, %v2814
          %v3591 = vsel %vm3564, %v3558, %v2816
          %v3592 = vsel %vm3564, %v3559, %v2818
          %v3593 = vsel %vm3564, %v3560, %v2820
          %v3594 = vsel %vm3564, %v3561, %v2822
          %v3595 = vsel %vm3564, %v3562, %v2824
          %v3596 = vsel %vm3564, %v3563, %v2826
          %vm3597 = vcmask 130048
          %v3598 = vsel %vm3597, %v3565, %v2892
          %v3599 = vsel %vm3597, %v3566, %v2894
          %v3600 = vsel %vm3597, %v3567, %v2896
          %v3601 = vsel %vm3597, %v3568, %v2898
          %v3602 = vsel %vm3597, %v3569, %v2900
          %v3603 = vsel %vm3597, %v3570, %v2902
          %v3604 = vsel %vm3597, %v3571, %v2904
          %v3605 = vsel %vm3597, %v3572, %v2906
          %v3606 = vsel %vm3597, %v3573, %v2908
          %v3607 = vsel %vm3597, %v3574, %v2910
          %v3608 = vsel %vm3597, %v3575, %v2912
          %v3609 = vsel %vm3597, %v3576, %v2914
          %v3610 = vsel %vm3597, %v3577, %v2916
          %v3611 = vsel %vm3597, %v3578, %v2918
          %v3612 = vsel %vm3597, %v3579, %v2920
          %v3613 = vsel %vm3597, %v3580, %v2922
          %v3614 = vsel %vm3597, %v3581, %v2924
          %v3615 = vsel %vm3597, %v3582, %v2926
          %v3616 = vsel %vm3597, %v3583, %v2928
          %v3617 = vsel %vm3597, %v3584, %v2930
          %v3618 = vsel %vm3597, %v3585, %v2932
          %v3619 = vsel %vm3597, %v3586, %v2934
          %v3620 = vsel %vm3597, %v3587, %v2936
          %v3621 = vsel %vm3597, %v3588, %v2938
          %v3622 = vsel %vm3597, %v3589, %v2940
          %v3623 = vsel %vm3597, %v3590, %v2942
          %v3624 = vsel %vm3597, %v3591, %v2944
          %v3625 = vsel %vm3597, %v3592, %v2946
          %v3626 = vsel %vm3597, %v3593, %v2948
          %v3627 = vsel %vm3597, %v3594, %v2950
          %v3628 = vsel %vm3597, %v3595, %v2952
          %v3629 = vsel %vm3597, %v3596, %v2954
          %vm3630 = vcmask 162816
          %v3631 = vsel %vm3630, %v3598, %v3020
          %v3632 = vsel %vm3630, %v3599, %v3022
          %v3633 = vsel %vm3630, %v3600, %v3024
          %v3634 = vsel %vm3630, %v3601, %v3026
          %v3635 = vsel %vm3630, %v3602, %v3028
          %v3636 = vsel %vm3630, %v3603, %v3030
          %v3637 = vsel %vm3630, %v3604, %v3032
          %v3638 = vsel %vm3630, %v3605, %v3034
          %v3639 = vsel %vm3630, %v3606, %v3036
          %v3640 = vsel %vm3630, %v3607, %v3038
          %v3641 = vsel %vm3630, %v3608, %v3040
          %v3642 = vsel %vm3630, %v3609, %v3042
          %v3643 = vsel %vm3630, %v3610, %v3044
          %v3644 = vsel %vm3630, %v3611, %v3046
          %v3645 = vsel %vm3630, %v3612, %v3048
          %v3646 = vsel %vm3630, %v3613, %v3050
          %v3647 = vsel %vm3630, %v3614, %v3052
          %v3648 = vsel %vm3630, %v3615, %v3054
          %v3649 = vsel %vm3630, %v3616, %v3056
          %v3650 = vsel %vm3630, %v3617, %v3058
          %v3651 = vsel %vm3630, %v3618, %v3060
          %v3652 = vsel %vm3630, %v3619, %v3062
          %v3653 = vsel %vm3630, %v3620, %v3064
          %v3654 = vsel %vm3630, %v3621, %v3066
          %v3655 = vsel %vm3630, %v3622, %v3068
          %v3656 = vsel %vm3630, %v3623, %v3070
          %v3657 = vsel %vm3630, %v3624, %v3072
          %v3658 = vsel %vm3630, %v3625, %v3074
          %v3659 = vsel %vm3630, %v3626, %v3076
          %v3660 = vsel %vm3630, %v3627, %v3078
          %v3661 = vsel %vm3630, %v3628, %v3080
          %v3662 = vsel %vm3630, %v3629, %v3082
          %vm3663 = vcmask 195584
          %v3664 = vsel %vm3663, %v3631, %v3148
          %v3665 = vsel %vm3663, %v3632, %v3150
          %v3666 = vsel %vm3663, %v3633, %v3152
          %v3667 = vsel %vm3663, %v3634, %v3154
          %v3668 = vsel %vm3663, %v3635, %v3156
          %v3669 = vsel %vm3663, %v3636, %v3158
          %v3670 = vsel %vm3663, %v3637, %v3160
          %v3671 = vsel %vm3663, %v3638, %v3162
          %v3672 = vsel %vm3663, %v3639, %v3164
          %v3673 = vsel %vm3663, %v3640, %v3166
          %v3674 = vsel %vm3663, %v3641, %v3168
          %v3675 = vsel %vm3663, %v3642, %v3170
          %v3676 = vsel %vm3663, %v3643, %v3172
          %v3677 = vsel %vm3663, %v3644, %v3174
          %v3678 = vsel %vm3663, %v3645, %v3176
          %v3679 = vsel %vm3663, %v3646, %v3178
          %v3680 = vsel %vm3663, %v3647, %v3180
          %v3681 = vsel %vm3663, %v3648, %v3182
          %v3682 = vsel %vm3663, %v3649, %v3184
          %v3683 = vsel %vm3663, %v3650, %v3186
          %v3684 = vsel %vm3663, %v3651, %v3188
          %v3685 = vsel %vm3663, %v3652, %v3190
          %v3686 = vsel %vm3663, %v3653, %v3192
          %v3687 = vsel %vm3663, %v3654, %v3194
          %v3688 = vsel %vm3663, %v3655, %v3196
          %v3689 = vsel %vm3663, %v3656, %v3198
          %v3690 = vsel %vm3663, %v3657, %v3200
          %v3691 = vsel %vm3663, %v3658, %v3202
          %v3692 = vsel %vm3663, %v3659, %v3204
          %v3693 = vsel %vm3663, %v3660, %v3206
          %v3694 = vsel %vm3663, %v3661, %v3208
          %v3695 = vsel %vm3663, %v3662, %v3210
          %vm3696 = vcmask 228352
          %v3697 = vsel %vm3696, %v3664, %v3276
          %v3698 = vsel %vm3696, %v3665, %v3278
          %v3699 = vsel %vm3696, %v3666, %v3280
          %v3700 = vsel %vm3696, %v3667, %v3282
          %v3701 = vsel %vm3696, %v3668, %v3284
          %v3702 = vsel %vm3696, %v3669, %v3286
          %v3703 = vsel %vm3696, %v3670, %v3288
          %v3704 = vsel %vm3696, %v3671, %v3290
          %v3705 = vsel %vm3696, %v3672, %v3292
          %v3706 = vsel %vm3696, %v3673, %v3294
          %v3707 = vsel %vm3696, %v3674, %v3296
          %v3708 = vsel %vm3696, %v3675, %v3298
          %v3709 = vsel %vm3696, %v3676, %v3300
          %v3710 = vsel %vm3696, %v3677, %v3302
          %v3711 = vsel %vm3696, %v3678, %v3304
          %v3712 = vsel %vm3696, %v3679, %v3306
          %v3713 = vsel %vm3696, %v3680, %v3308
          %v3714 = vsel %vm3696, %v3681, %v3310
          %v3715 = vsel %vm3696, %v3682, %v3312
          %v3716 = vsel %vm3696, %v3683, %v3314
          %v3717 = vsel %vm3696, %v3684, %v3316
          %v3718 = vsel %vm3696, %v3685, %v3318
          %v3719 = vsel %vm3696, %v3686, %v3320
          %v3720 = vsel %vm3696, %v3687, %v3322
          %v3721 = vsel %vm3696, %v3688, %v3324
          %v3722 = vsel %vm3696, %v3689, %v3326
          %v3723 = vsel %vm3696, %v3690, %v3328
          %v3724 = vsel %vm3696, %v3691, %v3330
          %v3725 = vsel %vm3696, %v3692, %v3332
          %v3726 = vsel %vm3696, %v3693, %v3334
          %v3727 = vsel %vm3696, %v3694, %v3336
          %v3728 = vsel %vm3696, %v3695, %v3338
          %vm3729 = vcmask 261120
          %v3730 = vsel %vm3729, %v3697, %v3404
          %v3731 = vsel %vm3729, %v3698, %v3406
          %v3732 = vsel %vm3729, %v3699, %v3408
          %v3733 = vsel %vm3729, %v3700, %v3410
          %v3734 = vsel %vm3729, %v3701, %v3412
          %v3735 = vsel %vm3729, %v3702, %v3414
          %v3736 = vsel %vm3729, %v3703, %v3416
          %v3737 = vsel %vm3729, %v3704, %v3418
          %v3738 = vsel %vm3729, %v3705, %v3420
          %v3739 = vsel %vm3729, %v3706, %v3422
          %v3740 = vsel %vm3729, %v3707, %v3424
          %v3741 = vsel %vm3729, %v3708, %v3426
          %v3742 = vsel %vm3729, %v3709, %v3428
          %v3743 = vsel %vm3729, %v3710, %v3430
          %v3744 = vsel %vm3729, %v3711, %v3432
          %v3745 = vsel %vm3729, %v3712, %v3434
          %v3746 = vsel %vm3729, %v3713, %v3436
          %v3747 = vsel %vm3729, %v3714, %v3438
          %v3748 = vsel %vm3729, %v3715, %v3440
          %v3749 = vsel %vm3729, %v3716, %v3442
          %v3750 = vsel %vm3729, %v3717, %v3444
          %v3751 = vsel %vm3729, %v3718, %v3446
          %v3752 = vsel %vm3729, %v3719, %v3448
          %v3753 = vsel %vm3729, %v3720, %v3450
          %v3754 = vsel %vm3729, %v3721, %v3452
          %v3755 = vsel %vm3729, %v3722, %v3454
          %v3756 = vsel %vm3729, %v3723, %v3456
          %v3757 = vsel %vm3729, %v3724, %v3458
          %v3758 = vsel %vm3729, %v3725, %v3460
          %v3759 = vsel %vm3729, %v3726, %v3462
          %v3760 = vsel %vm3729, %v3727, %v3464
          %v3761 = vsel %vm3729, %v3728, %v3466
          %vm3762 = vcmask 293888
          %v3763 = vsel %vm3762, %v3730, 0.0
          %v3764 = vsel %vm3762, %v3731, 0.0
          %v3765 = vsel %vm3762, %v3732, 0.0
          %v3766 = vsel %vm3762, %v3733, 0.0
          %v3767 = vsel %vm3762, %v3734, 0.0
          %v3768 = vsel %vm3762, %v3735, 0.0
          %v3769 = vsel %vm3762, %v3736, 0.0
          %v3770 = vsel %vm3762, %v3737, 0.0
          %v3771 = vsel %vm3762, %v3738, 0.0
          %v3772 = vsel %vm3762, %v3739, 0.0
          %v3773 = vsel %vm3762, %v3740, 0.0
          %v3774 = vsel %vm3762, %v3741, 0.0
          %v3775 = vsel %vm3762, %v3742, 0.0
          %v3776 = vsel %vm3762, %v3743, 0.0
          %v3777 = vsel %vm3762, %v3744, 0.0
          %v3778 = vsel %vm3762, %v3745, 0.0
          %v3779 = vsel %vm3762, %v3746, 0.0
          %v3780 = vsel %vm3762, %v3747, 0.0
          %v3781 = vsel %vm3762, %v3748, 0.0
          %v3782 = vsel %vm3762, %v3749, 0.0
          %v3783 = vsel %vm3762, %v3750, 0.0
          %v3784 = vsel %vm3762, %v3751, 0.0
          %v3785 = vsel %vm3762, %v3752, 0.0
          %v3786 = vsel %vm3762, %v3753, 0.0
          %v3787 = vsel %vm3762, %v3754, 0.0
          %v3788 = vsel %vm3762, %v3755, 0.0
          %v3789 = vsel %vm3762, %v3756, 0.0
          %v3790 = vsel %vm3762, %v3757, 0.0
          %v3791 = vsel %vm3762, %v3758, 0.0
          %v3792 = vsel %vm3762, %v3759, 0.0
          %v3793 = vsel %vm3762, %v3760, 0.0
          %v3794 = vsel %vm3762, %v3761, 0.0
          %v3795 = vld [vmem:[%s1] sm:$0xff]
          %v3796 = vld [vmem:[%s1 + $0x8] sm:$0xff]
          %v3797 = vld [vmem:[%s1 + $0x10] sm:$0xff]
          %v3798 = vld [vmem:[%s1 + $0x18] sm:$0xff]
          %v3799 = vld [vmem:[%s1 + $0x20] sm:$0xff]
          %v3800 = vld [vmem:[%s1 + $0x28] sm:$0xff]
          %v3801 = vld [vmem:[%s1 + $0x30] sm:$0xff]
          %v3802 = vld [vmem:[%s1 + $0x38] sm:$0xff]
          %v3803 = vld [vmem:[%s1 + $0x40] sm:$0xff]
          %v3804 = vld [vmem:[%s1 + $0x48] sm:$0xff]
          %v3805 = vld [vmem:[%s1 + $0x50] sm:$0xff]
          %v3806 = vld [vmem:[%s1 + $0x58] sm:$0xff]
          %v3807 = vld [vmem:[%s1 + $0x60] sm:$0xff]
          %v3808 = vld [vmem:[%s1 + $0x68] sm:$0xff]
          %v3809 = vld [vmem:[%s1 + $0x70] sm:$0xff]
          %v3810 = vld [vmem:[%s1 + $0x78] sm:$0xff]
          %3811 = vmatprep.subr.mxu0 0.0
          %3812 = vmatpush1.msra.mxu0 %v3810
          %3813 = vmatprep.subr.mxu0 0.0
          %3814 = vmatpush1.msra.mxu0 %v3809
          %3815 = vmatprep.subr.mxu0 0.0
          %3816 = vmatpush1.msra.mxu0 %v3808
          %3817 = vmatprep.subr.mxu0 0.0
          %3818 = vmatpush1.msra.mxu0 %v3807
          %3819 = vmatprep.subr.mxu0 0.0
          %3820 = vmatpush1.msra.mxu0 %v3806
          %3821 = vmatprep.subr.mxu0 0.0
          %3822 = vmatpush1.msra.mxu0 %v3805
          %3823 = vmatprep.subr.mxu0 0.0
          %3824 = vmatpush1.msra.mxu0 %v3804
          %3825 = vmatprep.subr.mxu0 0.0
          %3826 = vmatpush1.msra.mxu0 %v3803
          %3827 = vmatprep.subr.mxu0 0.0
          %3828 = vmatpush1.msra.mxu0 %v3802
          %3829 = vmatprep.subr.mxu0 0.0
          %3830 = vmatpush1.msra.mxu0 %v3801
          %3831 = vmatprep.subr.mxu0 0.0
          %3832 = vmatpush1.msra.mxu0 %v3800
          %3833 = vmatprep.subr.mxu0 0.0
          %3834 = vmatpush1.msra.mxu0 %v3799
          %3835 = vmatprep.subr.mxu0 0.0
          %3836 = vmatpush1.msra.mxu0 %v3798
          %3837 = vmatprep.subr.mxu0 0.0
          %3838 = vmatpush1.msra.mxu0 %v3797
          %3839 = vmatprep.subr.mxu0 0.0
          %3840 = vmatpush1.msra.mxu0 %v3796
          %3841 = vmatprep.subr.mxu0 0.0
          %3842 = vmatpush1.msra.mxu0 %v3795
          %3843 = vmatprep.subr.mxu0 0.0
          %3844 = vmatpush2.msra.mxu0 0.0
          %3845 = vmatprep.subr.mxu0 0.0
          %3846 = vmatpush2.msra.mxu0 0.0
          %3847 = vmatprep.subr.mxu0 0.0
          %3848 = vmatpush2.msra.mxu0 0.0
          %3849 = vmatprep.subr.mxu0 0.0
          %3850 = vmatpush2.msra.mxu0 0.0
          %3851 = vmatprep.subr.mxu0 0.0
          %3852 = vmatpush2.msra.mxu0 0.0
          %3853 = vmatprep.subr.mxu0 0.0
          %3854 = vmatpush2.msra.mxu0 0.0
          %3855 = vmatprep.subr.mxu0 0.0
          %3856 = vmatpush2.msra.mxu0 0.0
          %3857 = vmatprep.subr.mxu0 0.0
          %3858 = vmatpush2.msra.mxu0 0.0
          %3859 = vmatprep.subr.mxu0 0.0
          %3860 = vmatpush2.msra.mxu0 0.0
          %3861 = vmatprep.subr.mxu0 0.0
          %3862 = vmatpush2.msra.mxu0 0.0
          %3863 = vmatprep.subr.mxu0 0.0
          %3864 = vmatpush2.msra.mxu0 0.0
          %3865 = vmatprep.subr.mxu0 0.0
          %3866 = vmatpush2.msra.mxu0 0.0
          %3867 = vmatprep.subr.mxu0 0.0
          %3868 = vmatpush2.msra.mxu0 0.0
          %3869 = vmatprep.subr.mxu0 0.0
          %3870 = vmatpush2.msra.mxu0 0.0
          %3871 = vmatprep.subr.mxu0 0.0
          %3872 = vmatpush2.msra.mxu0 0.0
          %3873 = vmatprep.subr.mxu0 0.0
          %3874 = vmatpush2.msra.mxu0 0.0
          %3875 = vmatprep.mubr.f32.mxu0 0.0
          %3876 = vmatmul.mubr.f32.gmra.mxu0 %v3763
          %v3877 = vpop.f32.mrf.mxu0
          %v3878 = vadd.f32 0.0, %v3877
          %v3879 = vpop.f32.mrf.mxu0
          %3880 = vmatprep.mubr.f32.mxu0 0.0
          %3881 = vmatmul.mubr.f32.gmra.mxu0 %v3764
          %v3882 = vpop.f32.mrf.mxu0
          %v3883 = vadd.f32 0.0, %v3882
          %v3884 = vpop.f32.mrf.mxu0
          %3885 = vmatprep.mubr.f32.mxu0 0.0
          %3886 = vmatmul.mubr.f32.gmra.mxu0 %v3765
          %v3887 = vpop.f32.mrf.mxu0
          %v3888 = vadd.f32 0.0, %v3887
          %v3889 = vpop.f32.mrf.mxu0
          %3890 = vmatprep.mubr.f32.mxu0 0.0
          %3891 = vmatmul.mubr.f32.gmra.mxu0 %v3766
          %v3892 = vpop.f32.mrf.mxu0
          %v3893 = vadd.f32 0.0, %v3892
          %v3894 = vpop.f32.mrf.mxu0
          %3895 = vmatprep.mubr.f32.mxu0 0.0
          %3896 = vmatmul.mubr.f32.gmra.mxu0 %v3767
          %v3897 = vpop.f32.mrf.mxu0
          %v3898 = vadd.f32 0.0, %v3897
          %v3899 = vpop.f32.mrf.mxu0
          %3900 = vmatprep.mubr.f32.mxu0 0.0
          %3901 = vmatmul.mubr.f32.gmra.mxu0 %v3768
          %v3902 = vpop.f32.mrf.mxu0
          %v3903 = vadd.f32 0.0, %v3902
          %v3904 = vpop.f32.mrf.mxu0
          %3905 = vmatprep.mubr.f32.mxu0 0.0
          %3906 = vmatmul.mubr.f32.gmra.mxu0 %v3769
          %v3907 = vpop.f32.mrf.mxu0
          %v3908 = vadd.f32 0.0, %v3907
          %v3909 = vpop.f32.mrf.mxu0
          %3910 = vmatprep.mubr.f32.mxu0 0.0
          %3911 = vmatmul.mubr.f32.gmra.mxu0 %v3770
          %v3912 = vpop.f32.mrf.mxu0
          %v3913 = vadd.f32 0.0, %v3912
          %v3914 = vpop.f32.mrf.mxu0
          %3915 = vmatprep.mubr.f32.mxu0 0.0
          %3916 = vmatmul.mubr.f32.gmra.mxu0 %v3771
          %v3917 = vpop.f32.mrf.mxu0
          %v3918 = vadd.f32 0.0, %v3917
          %v3919 = vpop.f32.mrf.mxu0
          %3920 = vmatprep.mubr.f32.mxu0 0.0
          %3921 = vmatmul.mubr.f32.gmra.mxu0 %v3772
          %v3922 = vpop.f32.mrf.mxu0
          %v3923 = vadd.f32 0.0, %v3922
          %v3924 = vpop.f32.mrf.mxu0
          %3925 = vmatprep.mubr.f32.mxu0 0.0
          %3926 = vmatmul.mubr.f32.gmra.mxu0 %v3773
          %v3927 = vpop.f32.mrf.mxu0
          %v3928 = vadd.f32 0.0, %v3927
          %v3929 = vpop.f32.mrf.mxu0
          %3930 = vmatprep.mubr.f32.mxu0 0.0
          %3931 = vmatmul.mubr.f32.gmra.mxu0 %v3774
          %v3932 = vpop.f32.mrf.mxu0
          %v3933 = vadd.f32 0.0, %v3932
          %v3934 = vpop.f32.mrf.mxu0
          %3935 = vmatprep.mubr.f32.mxu0 0.0
          %3936 = vmatmul.mubr.f32.gmra.mxu0 %v3775
          %v3937 = vpop.f32.mrf.mxu0
          %v3938 = vadd.f32 0.0, %v3937
          %v3939 = vpop.f32.mrf.mxu0
          %3940 = vmatprep.mubr.f32.mxu0 0.0
          %3941 = vmatmul.mubr.f32.gmra.mxu0 %v3776
          %v3942 = vpop.f32.mrf.mxu0
          %v3943 = vadd.f32 0.0, %v3942
          %v3944 = vpop.f32.mrf.mxu0
          %3945 = vmatprep.mubr.f32.mxu0 0.0
          %3946 = vmatmul.mubr.f32.gmra.mxu0 %v3777
          %v3947 = vpop.f32.mrf.mxu0
          %v3948 = vadd.f32 0.0, %v3947
          %v3949 = vpop.f32.mrf.mxu0
          %3950 = vmatprep.mubr.f32.mxu0 0.0
          %3951 = vmatmul.mubr.f32.gmra.mxu0 %v3778
          %v3952 = vpop.f32.mrf.mxu0
          %v3953 = vadd.f32 0.0, %v3952
          %v3954 = vpop.f32.mrf.mxu0
          %3955 = vmatprep.mubr.f32.mxu0 0.0
          %3956 = vmatmul.mubr.f32.gmra.mxu0 %v3779
          %v3957 = vpop.f32.mrf.mxu0
          %v3958 = vadd.f32 0.0, %v3957
          %v3959 = vpop.f32.mrf.mxu0
          %3960 = vmatprep.mubr.f32.mxu0 0.0
          %3961 = vmatmul.mubr.f32.gmra.mxu0 %v3780
          %v3962 = vpop.f32.mrf.mxu0
          %v3963 = vadd.f32 0.0, %v3962
          %v3964 = vpop.f32.mrf.mxu0
          %3965 = vmatprep.mubr.f32.mxu0 0.0
          %3966 = vmatmul.mubr.f32.gmra.mxu0 %v3781
          %v3967 = vpop.f32.mrf.mxu0
          %v3968 = vadd.f32 0.0, %v3967
          %v3969 = vpop.f32.mrf.mxu0
          %3970 = vmatprep.mubr.f32.mxu0 0.0
          %3971 = vmatmul.mubr.f32.gmra.mxu0 %v3782
          %v3972 = vpop.f32.mrf.mxu0
          %v3973 = vadd.f32 0.0, %v3972
          %v3974 = vpop.f32.mrf.mxu0
          %3975 = vmatprep.mubr.f32.mxu0 0.0
          %3976 = vmatmul.mubr.f32.gmra.mxu0 %v3783
          %v3977 = vpop.f32.mrf.mxu0
          %v3978 = vadd.f32 0.0, %v3977
          %v3979 = vpop.f32.mrf.mxu0
          %3980 = vmatprep.mubr.f32.mxu0 0.0
          %3981 = vmatmul.mubr.f32.gmra.mxu0 %v3784
          %v3982 = vpop.f32.mrf.mxu0
          %v3983 = vadd.f32 0.0, %v3982
          %v3984 = vpop.f32.mrf.mxu0
          %3985 = vmatprep.mubr.f32.mxu0 0.0
          %3986 = vmatmul.mubr.f32.gmra.mxu0 %v3785
          %v3987 = vpop.f32.mrf.mxu0
          %v3988 = vadd.f32 0.0, %v3987
          %v3989 = vpop.f32.mrf.mxu0
          %3990 = vmatprep.mubr.f32.mxu0 0.0
          %3991 = vmatmul.mubr.f32.gmra.mxu0 %v3786
          %v3992 = vpop.f32.mrf.mxu0
          %v3993 = vadd.f32 0.0, %v3992
          %v3994 = vpop.f32.mrf.mxu0
          %3995 = vmatprep.mubr.f32.mxu0 0.0
          %3996 = vmatmul.mubr.f32.gmra.mxu0 %v3787
          %v3997 = vpop.f32.mrf.mxu0
          %v3998 = vadd.f32 0.0, %v3997
          %v3999 = vpop.f32.mrf.mxu0
          %4000 = vmatprep.mubr.f32.mxu0 0.0
          %4001 = vmatmul.mubr.f32.gmra.mxu0 %v3788
          %v4002 = vpop.f32.mrf.mxu0
          %v4003 = vadd.f32 0.0, %v4002
          %v4004 = vpop.f32.mrf.mxu0
          %4005 = vmatprep.mubr.f32.mxu0 0.0
          %4006 = vmatmul.mubr.f32.gmra.mxu0 %v3789
          %v4007 = vpop.f32.mrf.mxu0
          %v4008 = vadd.f32 0.0, %v4007
          %v4009 = vpop.f32.mrf.mxu0
          %4010 = vmatprep.mubr.f32.mxu0 0.0
          %4011 = vmatmul.mubr.f32.gmra.mxu0 %v3790
          %v4012 = vpop.f32.mrf.mxu0
          %v4013 = vadd.f32 0.0, %v4012
          %v4014 = vpop.f32.mrf.mxu0
          %4015 = vmatprep.mubr.f32.mxu0 0.0
          %4016 = vmatmul.mubr.f32.gmra.mxu0 %v3791
          %v4017 = vpop.f32.mrf.mxu0
          %v4018 = vadd.f32 0.0, %v4017
          %v4019 = vpop.f32.mrf.mxu0
          %4020 = vmatprep.mubr.f32.mxu0 0.0
          %4021 = vmatmul.mubr.f32.gmra.mxu0 %v3792
          %v4022 = vpop.f32.mrf.mxu0
          %v4023 = vadd.f32 0.0, %v4022
          %v4024 = vpop.f32.mrf.mxu0
          %4025 = vmatprep.mubr.f32.mxu0 0.0
          %4026 = vmatmul.mubr.f32.gmra.mxu0 %v3793
          %v4027 = vpop.f32.mrf.mxu0
          %v4028 = vadd.f32 0.0, %v4027
          %v4029 = vpop.f32.mrf.mxu0
          %4030 = vmatprep.mubr.f32.mxu0 0.0
          %4031 = vmatmul.mubr.f32.gmra.mxu0 %v3794
          %v4032 = vpop.f32.mrf.mxu0
          %v4033 = vadd.f32 0.0, %v4032
          %v4034 = vpop.f32.mrf.mxu0
          %4035 = vdwg.mxu0
          %4036 = vst [vmem:[%s160] sm:$0xff] %v3878
          %4037 = vst [vmem:[%s160 + $0x8] sm:$0xff] %v3883
          %4038 = vst [vmem:[%s160 + $0x10] sm:$0xff] %v3888
          %4039 = vst [vmem:[%s160 + $0x18] sm:$0xff] %v3893
          %4040 = vst [vmem:[%s160 + $0x20] sm:$0xff] %v3898
          %4041 = vst [vmem:[%s160 + $0x28] sm:$0xff] %v3903
          %4042 = vst [vmem:[%s160 + $0x30] sm:$0xff] %v3908
          %4043 = vst [vmem:[%s160 + $0x38] sm:$0xff] %v3913
          %4044 = vst [vmem:[%s160 + $0x40] sm:$0xff] %v3918
          %4045 = vst [vmem:[%s160 + $0x48] sm:$0xff] %v3923
          %4046 = vst [vmem:[%s160 + $0x50] sm:$0xff] %v3928
          %4047 = vst [vmem:[%s160 + $0x58] sm:$0xff] %v3933
          %4048 = vst [vmem:[%s160 + $0x60] sm:$0xff] %v3938
          %4049 = vst [vmem:[%s160 + $0x68] sm:$0xff] %v3943
          %4050 = vst [vmem:[%s160 + $0x70] sm:$0xff] %v3948
          %4051 = vst [vmem:[%s160 + $0x78] sm:$0xff] %v3953
          %4052 = vst [vmem:[%s160 + $0x80] sm:$0xff] %v3958
          %4053 = vst [vmem:[%s160 + $0x88] sm:$0xff] %v3963
          %4054 = vst [vmem:[%s160 + $0x90] sm:$0xff] %v3968
          %4055 = vst [vmem:[%s160 + $0x98] sm:$0xff] %v3973
          %4056 = vst [vmem:[%s160 + $0xa0] sm:$0xff] %v3978
          %4057 = vst [vmem:[%s160 + $0xa8] sm:$0xff] %v3983
          %4058 = vst [vmem:[%s160 + $0xb0] sm:$0xff] %v3988
          %4059 = vst [vmem:[%s160 + $0xb8] sm:$0xff] %v3993
          %4060 = vst [vmem:[%s160 + $0xc0] sm:$0xff] %v3998
          %4061 = vst [vmem:[%s160 + $0xc8] sm:$0xff] %v4003
          %4062 = vst [vmem:[%s160 + $0xd0] sm:$0xff] %v4008
          %4063 = vst [vmem:[%s160 + $0xd8] sm:$0xff] %v4013
          %4064 = vst [vmem:[%s160 + $0xe0] sm:$0xff] %v4018
          %4065 = vst [vmem:[%s160 + $0xe8] sm:$0xff] %v4023
          %4066 = vst [vmem:[%s160 + $0xf0] sm:$0xff] %v4028
          %4067 = vst [vmem:[%s160 + $0xf8] sm:$0xff] %v4033
        $region36: #{tpu_custom_call.1} parent=27 // pred_fallthru
          _
        %p4068 = scmp.eq.s32.totalorder %s21, 2
        // Predicated region
        $region37: #{tpu_custom_call.1} parent=27 // pred_check
          %p4069 = pneg %p4068
        $region38: #{tpu_custom_call.1} parent=27 // pred_check_branch
          %4071 = sbr.rel (%p4069) target = $region40
        $region39: #{tpu_custom_call.1} parent=27 // pred_region
          %v4072 = vld [vmem:[#allocation2 + $0x5] sm:$0xff]
          %v4073 = vld [vmem:[#allocation2 + $0xd] sm:$0xff]
          %v4074 = vld [vmem:[#allocation2 + $0x25] sm:$0xff]
          %v4075 = vld [vmem:[#allocation2 + $0x2d] sm:$0xff]
          %v4076 = vld [vmem:[#allocation2 + $0x45] sm:$0xff]
          %v4077 = vld [vmem:[#allocation2 + $0x4d] sm:$0xff]
          %v4078 = vld [vmem:[#allocation2 + $0x65] sm:$0xff]
          %v4079 = vld [vmem:[#allocation2 + $0x6d] sm:$0xff]
          %v4080 = vld [vmem:[#allocation2 + $0x85] sm:$0xff]
          %v4081 = vld [vmem:[#allocation2 + $0x8d] sm:$0xff]
          %v4082 = vld [vmem:[#allocation2 + $0xa5] sm:$0xff]
          %v4083 = vld [vmem:[#allocation2 + $0xad] sm:$0xff]
          %v4084 = vld [vmem:[#allocation2 + $0xc5] sm:$0xff]
          %v4085 = vld [vmem:[#allocation2 + $0xcd] sm:$0xff]
          %v4086 = vld [vmem:[#allocation2 + $0xe5] sm:$0xff]
          %v4087 = vld [vmem:[#allocation2 + $0xed] sm:$0xff]
          %v4088 = vld [vmem:[#allocation2 + $0x105] sm:$0xff]
          %v4089 = vld [vmem:[#allocation2 + $0x10d] sm:$0xff]
          %v4090 = vld [vmem:[#allocation2 + $0x125] sm:$0xff]
          %v4091 = vld [vmem:[#allocation2 + $0x12d] sm:$0xff]
          %v4092 = vld [vmem:[#allocation2 + $0x145] sm:$0xff]
          %v4093 = vld [vmem:[#allocation2 + $0x14d] sm:$0xff]
          %v4094 = vld [vmem:[#allocation2 + $0x165] sm:$0xff]
          %v4095 = vld [vmem:[#allocation2 + $0x16d] sm:$0xff]
          %v4096 = vld [vmem:[#allocation2 + $0x185] sm:$0xff]
          %v4097 = vld [vmem:[#allocation2 + $0x18d] sm:$0xff]
          %v4098 = vld [vmem:[#allocation2 + $0x1a5] sm:$0xff]
          %v4099 = vld [vmem:[#allocation2 + $0x1ad] sm:$0xff]
          %v4100 = vld [vmem:[#allocation2 + $0x1c5] sm:$0xff]
          %v4101 = vld [vmem:[#allocation2 + $0x1cd] sm:$0xff]
          %v4102 = vld [vmem:[#allocation2 + $0x1e5] sm:$0xff]
          %v4103 = vld [vmem:[#allocation2 + $0x1ed] sm:$0xff]
          %v4104 = vld [vmem:[#allocation2 + $0x8] sm:$0xff]
          %v4105 = vld [vmem:[#allocation2 + $0x10] sm:$0xff]
          %v4106 = vld [vmem:[#allocation2 + $0x28] sm:$0xff]
          %v4107 = vld [vmem:[#allocation2 + $0x30] sm:$0xff]
          %v4108 = vld [vmem:[#allocation2 + $0x48] sm:$0xff]
          %v4109 = vld [vmem:[#allocation2 + $0x50] sm:$0xff]
          %v4110 = vld [vmem:[#allocation2 + $0x68] sm:$0xff]
          %v4111 = vld [vmem:[#allocation2 + $0x70] sm:$0xff]
          %v4112 = vld [vmem:[#allocation2 + $0x88] sm:$0xff]
          %v4113 = vld [vmem:[#allocation2 + $0x90] sm:$0xff]
          %v4114 = vld [vmem:[#allocation2 + $0xa8] sm:$0xff]
          %v4115 = vld [vmem:[#allocation2 + $0xb0] sm:$0xff]
          %v4116 = vld [vmem:[#allocation2 + $0xc8] sm:$0xff]
          %v4117 = vld [vmem:[#allocation2 + $0xd0] sm:$0xff]
          %v4118 = vld [vmem:[#allocation2 + $0xe8] sm:$0xff]
          %v4119 = vld [vmem:[#allocation2 + $0xf0] sm:$0xff]
          %v4120 = vld [vmem:[#allocation2 + $0x108] sm:$0xff]
          %v4121 = vld [vmem:[#allocation2 + $0x110] sm:$0xff]
          %v4122 = vld [vmem:[#allocation2 + $0x128] sm:$0xff]
          %v4123 = vld [vmem:[#allocation2 + $0x130] sm:$0xff]
          %v4124 = vld [vmem:[#allocation2 + $0x148] sm:$0xff]
          %v4125 = vld [vmem:[#allocation2 + $0x150] sm:$0xff]
          %v4126 = vld [vmem:[#allocation2 + $0x168] sm:$0xff]
          %v4127 = vld [vmem:[#allocation2 + $0x170] sm:$0xff]
          %v4128 = vld [vmem:[#allocation2 + $0x188] sm:$0xff]
          %v4129 = vld [vmem:[#allocation2 + $0x190] sm:$0xff]
          %v4130 = vld [vmem:[#allocation2 + $0x1a8] sm:$0xff]
          %v4131 = vld [vmem:[#allocation2 + $0x1b0] sm:$0xff]
          %v4132 = vld [vmem:[#allocation2 + $0x1c8] sm:$0xff]
          %v4133 = vld [vmem:[#allocation2 + $0x1d0] sm:$0xff]
          %v4134 = vld [vmem:[#allocation2 + $0x1e8] sm:$0xff]
          %v4135 = vld [vmem:[#allocation2 + $0x1f0] sm:$0xff]
          %v4136 = vld [vmem:[#allocation2 + $0xb] sm:$0xff]
          %v4137 = vld [vmem:[#allocation2 + $0x13] sm:$0xff]
          %v4138 = vld [vmem:[#allocation2 + $0x2b] sm:$0xff]
          %v4139 = vld [vmem:[#allocation2 + $0x33] sm:$0xff]
          %v4140 = vld [vmem:[#allocation2 + $0x4b] sm:$0xff]
          %v4141 = vld [vmem:[#allocation2 + $0x53] sm:$0xff]
          %v4142 = vld [vmem:[#allocation2 + $0x6b] sm:$0xff]
          %v4143 = vld [vmem:[#allocation2 + $0x73] sm:$0xff]
          %v4144 = vld [vmem:[#allocation2 + $0x8b] sm:$0xff]
          %v4145 = vld [vmem:[#allocation2 + $0x93] sm:$0xff]
          %v4146 = vld [vmem:[#allocation2 + $0xab] sm:$0xff]
          %v4147 = vld [vmem:[#allocation2 + $0xb3] sm:$0xff]
          %v4148 = vld [vmem:[#allocation2 + $0xcb] sm:$0xff]
          %v4149 = vld [vmem:[#allocation2 + $0xd3] sm:$0xff]
          %v4150 = vld [vmem:[#allocation2 + $0xeb] sm:$0xff]
          %v4151 = vld [vmem:[#allocation2 + $0xf3] sm:$0xff]
          %v4152 = vld [vmem:[#allocation2 + $0x10b] sm:$0xff]
          %v4153 = vld [vmem:[#allocation2 + $0x113] sm:$0xff]
          %v4154 = vld [vmem:[#allocation2 + $0x12b] sm:$0xff]
          %v4155 = vld [vmem:[#allocation2 + $0x133] sm:$0xff]
          %v4156 = vld [vmem:[#allocation2 + $0x14b] sm:$0xff]
          %v4157 = vld [vmem:[#allocation2 + $0x153] sm:$0xff]
          %v4158 = vld [vmem:[#allocation2 + $0x16b] sm:$0xff]
          %v4159 = vld [vmem:[#allocation2 + $0x173] sm:$0xff]
          %v4160 = vld [vmem:[#allocation2 + $0x18b] sm:$0xff]
          %v4161 = vld [vmem:[#allocation2 + $0x193] sm:$0xff]
          %v4162 = vld [vmem:[#allocation2 + $0x1ab] sm:$0xff]
          %v4163 = vld [vmem:[#allocation2 + $0x1b3] sm:$0xff]
          %v4164 = vld [vmem:[#allocation2 + $0x1cb] sm:$0xff]
          %v4165 = vld [vmem:[#allocation2 + $0x1d3] sm:$0xff]
          %v4166 = vld [vmem:[#allocation2 + $0x1eb] sm:$0xff]
          %v4167 = vld [vmem:[#allocation2 + $0x1f3] sm:$0xff]
          %v4168 = vld [vmem:[%s197 + $0x5] sm:$0xff]
          %v4169 = vld [vmem:[%s197 + $0xd] sm:$0xff]
          %v4170 = vld [vmem:[%s197 + $0x25] sm:$0xff]
          %v4171 = vld [vmem:[%s197 + $0x2d] sm:$0xff]
          %v4172 = vld [vmem:[%s197 + $0x45] sm:$0xff]
          %v4173 = vld [vmem:[%s197 + $0x4d] sm:$0xff]
          %v4174 = vld [vmem:[%s197 + $0x65] sm:$0xff]
          %v4175 = vld [vmem:[%s197 + $0x6d] sm:$0xff]
          %v4176 = vld [vmem:[%s197 + $0x85] sm:$0xff]
          %v4177 = vld [vmem:[%s197 + $0x8d] sm:$0xff]
          %v4178 = vld [vmem:[%s197 + $0xa5] sm:$0xff]
          %v4179 = vld [vmem:[%s197 + $0xad] sm:$0xff]
          %v4180 = vld [vmem:[%s197 + $0xc5] sm:$0xff]
          %v4181 = vld [vmem:[%s197 + $0xcd] sm:$0xff]
          %v4182 = vld [vmem:[%s197 + $0xe5] sm:$0xff]
          %v4183 = vld [vmem:[%s197 + $0xed] sm:$0xff]
          %v4184 = vld [vmem:[%s197 + $0x105] sm:$0xff]
          %v4185 = vld [vmem:[%s197 + $0x10d] sm:$0xff]
          %v4186 = vld [vmem:[%s197 + $0x125] sm:$0xff]
          %v4187 = vld [vmem:[%s197 + $0x12d] sm:$0xff]
          %v4188 = vld [vmem:[%s197 + $0x145] sm:$0xff]
          %v4189 = vld [vmem:[%s197 + $0x14d] sm:$0xff]
          %v4190 = vld [vmem:[%s197 + $0x165] sm:$0xff]
          %v4191 = vld [vmem:[%s197 + $0x16d] sm:$0xff]
          %v4192 = vld [vmem:[%s197 + $0x185] sm:$0xff]
          %v4193 = vld [vmem:[%s197 + $0x18d] sm:$0xff]
          %v4194 = vld [vmem:[%s197 + $0x1a5] sm:$0xff]
          %v4195 = vld [vmem:[%s197 + $0x1ad] sm:$0xff]
          %v4196 = vld [vmem:[%s197 + $0x1c5] sm:$0xff]
          %v4197 = vld [vmem:[%s197 + $0x1cd] sm:$0xff]
          %v4198 = vld [vmem:[%s197 + $0x1e5] sm:$0xff]
          %v4199 = vld [vmem:[%s197 + $0x1ed] sm:$0xff]
          %v4200 = vld [vmem:[%s197 + $0x8] sm:$0xff]
          %v4201 = vld [vmem:[%s197 + $0x10] sm:$0xff]
          %v4202 = vld [vmem:[%s197 + $0x28] sm:$0xff]
          %v4203 = vld [vmem:[%s197 + $0x30] sm:$0xff]
          %v4204 = vld [vmem:[%s197 + $0x48] sm:$0xff]
          %v4205 = vld [vmem:[%s197 + $0x50] sm:$0xff]
          %v4206 = vld [vmem:[%s197 + $0x68] sm:$0xff]
          %v4207 = vld [vmem:[%s197 + $0x70] sm:$0xff]
          %v4208 = vld [vmem:[%s197 + $0x88] sm:$0xff]
          %v4209 = vld [vmem:[%s197 + $0x90] sm:$0xff]
          %v4210 = vld [vmem:[%s197 + $0xa8] sm:$0xff]
          %v4211 = vld [vmem:[%s197 + $0xb0] sm:$0xff]
          %v4212 = vld [vmem:[%s197 + $0xc8] sm:$0xff]
          %v4213 = vld [vmem:[%s197 + $0xd0] sm:$0xff]
          %v4214 = vld [vmem:[%s197 + $0xe8] sm:$0xff]
          %v4215 = vld [vmem:[%s197 + $0xf0] sm:$0xff]
          %v4216 = vld [vmem:[%s197 + $0x108] sm:$0xff]
          %v4217 = vld [vmem:[%s197 + $0x110] sm:$0xff]
          %v4218 = vld [vmem:[%s197 + $0x128] sm:$0xff]
          %v4219 = vld [vmem:[%s197 + $0x130] sm:$0xff]
          %v4220 = vld [vmem:[%s197 + $0x148] sm:$0xff]
          %v4221 = vld [vmem:[%s197 + $0x150] sm:$0xff]
          %v4222 = vld [vmem:[%s197 + $0x168] sm:$0xff]
          %v4223 = vld [vmem:[%s197 + $0x170] sm:$0xff]
          %v4224 = vld [vmem:[%s197 + $0x188] sm:$0xff]
          %v4225 = vld [vmem:[%s197 + $0x190] sm:$0xff]
          %v4226 = vld [vmem:[%s197 + $0x1a8] sm:$0xff]
          %v4227 = vld [vmem:[%s197 + $0x1b0] sm:$0xff]
          %v4228 = vld [vmem:[%s197 + $0x1c8] sm:$0xff]
          %v4229 = vld [vmem:[%s197 + $0x1d0] sm:$0xff]
          %v4230 = vld [vmem:[%s197 + $0x1e8] sm:$0xff]
          %v4231 = vld [vmem:[%s197 + $0x1f0] sm:$0xff]
          %v4232 = vld [vmem:[%s197 + $0xb] sm:$0xff]
          %v4233 = vld [vmem:[%s197 + $0x13] sm:$0xff]
          %v4234 = vld [vmem:[%s197 + $0x2b] sm:$0xff]
          %v4235 = vld [vmem:[%s197 + $0x33] sm:$0xff]
          %v4236 = vld [vmem:[%s197 + $0x4b] sm:$0xff]
          %v4237 = vld [vmem:[%s197 + $0x53] sm:$0xff]
          %v4238 = vld [vmem:[%s197 + $0x6b] sm:$0xff]
          %v4239 = vld [vmem:[%s197 + $0x73] sm:$0xff]
          %v4240 = vld [vmem:[%s197 + $0x8b] sm:$0xff]
          %v4241 = vld [vmem:[%s197 + $0x93] sm:$0xff]
          %v4242 = vld [vmem:[%s197 + $0xab] sm:$0xff]
          %v4243 = vld [vmem:[%s197 + $0xb3] sm:$0xff]
          %v4244 = vld [vmem:[%s197 + $0xcb] sm:$0xff]
          %v4245 = vld [vmem:[%s197 + $0xd3] sm:$0xff]
          %v4246 = vld [vmem:[%s197 + $0xeb] sm:$0xff]
          %v4247 = vld [vmem:[%s197 + $0xf3] sm:$0xff]
          %v4248 = vld [vmem:[%s197 + $0x10b] sm:$0xff]
          %v4249 = vld [vmem:[%s197 + $0x113] sm:$0xff]
          %v4250 = vld [vmem:[%s197 + $0x12b] sm:$0xff]
          %v4251 = vld [vmem:[%s197 + $0x133] sm:$0xff]
          %v4252 = vld [vmem:[%s197 + $0x14b] sm:$0xff]
          %v4253 = vld [vmem:[%s197 + $0x153] sm:$0xff]
          %v4254 = vld [vmem:[%s197 + $0x16b] sm:$0xff]
          %v4255 = vld [vmem:[%s197 + $0x173] sm:$0xff]
          %v4256 = vld [vmem:[%s197 + $0x18b] sm:$0xff]
          %v4257 = vld [vmem:[%s197 + $0x193] sm:$0xff]
          %v4258 = vld [vmem:[%s197 + $0x1ab] sm:$0xff]
          %v4259 = vld [vmem:[%s197 + $0x1b3] sm:$0xff]
          %v4260 = vld [vmem:[%s197 + $0x1cb] sm:$0xff]
          %v4261 = vld [vmem:[%s197 + $0x1d3] sm:$0xff]
          %v4262 = vld [vmem:[%s197 + $0x1eb] sm:$0xff]
          %v4263 = vld [vmem:[%s197 + $0x1f3] sm:$0xff]
          %s4264 = scalar_lea.vmem [#allocation2], 192
          %v4265 = vld [vmem:[%s4264 + $0x5] sm:$0xff]
          %v4266 = vld [vmem:[%s4264 + $0xd] sm:$0xff]
          %v4267 = vld [vmem:[%s4264 + $0x25] sm:$0xff]
          %v4268 = vld [vmem:[%s4264 + $0x2d] sm:$0xff]
          %v4269 = vld [vmem:[%s4264 + $0x45] sm:$0xff]
          %v4270 = vld [vmem:[%s4264 + $0x4d] sm:$0xff]
          %v4271 = vld [vmem:[%s4264 + $0x65] sm:$0xff]
          %v4272 = vld [vmem:[%s4264 + $0x6d] sm:$0xff]
          %v4273 = vld [vmem:[%s4264 + $0x85] sm:$0xff]
          %v4274 = vld [vmem:[%s4264 + $0x8d] sm:$0xff]
          %v4275 = vld [vmem:[%s4264 + $0xa5] sm:$0xff]
          %v4276 = vld [vmem:[%s4264 + $0xad] sm:$0xff]
          %v4277 = vld [vmem:[%s4264 + $0xc5] sm:$0xff]
          %v4278 = vld [vmem:[%s4264 + $0xcd] sm:$0xff]
          %v4279 = vld [vmem:[%s4264 + $0xe5] sm:$0xff]
          %v4280 = vld [vmem:[%s4264 + $0xed] sm:$0xff]
          %v4281 = vld [vmem:[%s4264 + $0x105] sm:$0xff]
          %v4282 = vld [vmem:[%s4264 + $0x10d] sm:$0xff]
          %v4283 = vld [vmem:[%s4264 + $0x125] sm:$0xff]
          %v4284 = vld [vmem:[%s4264 + $0x12d] sm:$0xff]
          %v4285 = vld [vmem:[%s4264 + $0x145] sm:$0xff]
          %v4286 = vld [vmem:[%s4264 + $0x14d] sm:$0xff]
          %v4287 = vld [vmem:[%s4264 + $0x165] sm:$0xff]
          %v4288 = vld [vmem:[%s4264 + $0x16d] sm:$0xff]
          %v4289 = vld [vmem:[%s4264 + $0x185] sm:$0xff]
          %v4290 = vld [vmem:[%s4264 + $0x18d] sm:$0xff]
          %v4291 = vld [vmem:[%s4264 + $0x1a5] sm:$0xff]
          %v4292 = vld [vmem:[%s4264 + $0x1ad] sm:$0xff]
          %v4293 = vld [vmem:[%s4264 + $0x1c5] sm:$0xff]
          %v4294 = vld [vmem:[%s4264 + $0x1cd] sm:$0xff]
          %v4295 = vld [vmem:[%s4264 + $0x1e5] sm:$0xff]
          %v4296 = vld [vmem:[%s4264 + $0x1ed] sm:$0xff]
          %v4297 = vld [vmem:[%s4264 + $0x8] sm:$0xff]
          %v4298 = vld [vmem:[%s4264 + $0x10] sm:$0xff]
          %v4299 = vld [vmem:[%s4264 + $0x28] sm:$0xff]
          %v4300 = vld [vmem:[%s4264 + $0x30] sm:$0xff]
          %v4301 = vld [vmem:[%s4264 + $0x48] sm:$0xff]
          %v4302 = vld [vmem:[%s4264 + $0x50] sm:$0xff]
          %v4303 = vld [vmem:[%s4264 + $0x68] sm:$0xff]
          %v4304 = vld [vmem:[%s4264 + $0x70] sm:$0xff]
          %v4305 = vld [vmem:[%s4264 + $0x88] sm:$0xff]
          %v4306 = vld [vmem:[%s4264 + $0x90] sm:$0xff]
          %v4307 = vld [vmem:[%s4264 + $0xa8] sm:$0xff]
          %v4308 = vld [vmem:[%s4264 + $0xb0] sm:$0xff]
          %v4309 = vld [vmem:[%s4264 + $0xc8] sm:$0xff]
          %v4310 = vld [vmem:[%s4264 + $0xd0] sm:$0xff]
          %v4311 = vld [vmem:[%s4264 + $0xe8] sm:$0xff]
          %v4312 = vld [vmem:[%s4264 + $0xf0] sm:$0xff]
          %v4313 = vld [vmem:[%s4264 + $0x108] sm:$0xff]
          %v4314 = vld [vmem:[%s4264 + $0x110] sm:$0xff]
          %v4315 = vld [vmem:[%s4264 + $0x128] sm:$0xff]
          %v4316 = vld [vmem:[%s4264 + $0x130] sm:$0xff]
          %v4317 = vld [vmem:[%s4264 + $0x148] sm:$0xff]
          %v4318 = vld [vmem:[%s4264 + $0x150] sm:$0xff]
          %v4319 = vld [vmem:[%s4264 + $0x168] sm:$0xff]
          %v4320 = vld [vmem:[%s4264 + $0x170] sm:$0xff]
          %v4321 = vld [vmem:[%s4264 + $0x188] sm:$0xff]
          %v4322 = vld [vmem:[%s4264 + $0x190] sm:$0xff]
          %v4323 = vld [vmem:[%s4264 + $0x1a8] sm:$0xff]
          %v4324 = vld [vmem:[%s4264 + $0x1b0] sm:$0xff]
          %v4325 = vld [vmem:[%s4264 + $0x1c8] sm:$0xff]
          %v4326 = vld [vmem:[%s4264 + $0x1d0] sm:$0xff]
          %v4327 = vld [vmem:[%s4264 + $0x1e8] sm:$0xff]
          %v4328 = vld [vmem:[%s4264 + $0x1f0] sm:$0xff]
          %v4329 = vld [vmem:[%s4264 + $0xb] sm:$0xff]
          %v4330 = vld [vmem:[%s4264 + $0x13] sm:$0xff]
          %v4331 = vld [vmem:[%s4264 + $0x2b] sm:$0xff]
          %v4332 = vld [vmem:[%s4264 + $0x33] sm:$0xff]
          %v4333 = vld [vmem:[%s4264 + $0x4b] sm:$0xff]
          %v4334 = vld [vmem:[%s4264 + $0x53] sm:$0xff]
          %v4335 = vld [vmem:[%s4264 + $0x6b] sm:$0xff]
          %v4336 = vld [vmem:[%s4264 + $0x73] sm:$0xff]
          %v4337 = vld [vmem:[%s4264 + $0x8b] sm:$0xff]
          %v4338 = vld [vmem:[%s4264 + $0x93] sm:$0xff]
          %v4339 = vld [vmem:[%s4264 + $0xab] sm:$0xff]
          %v4340 = vld [vmem:[%s4264 + $0xb3] sm:$0xff]
          %v4341 = vld [vmem:[%s4264 + $0xcb] sm:$0xff]
          %v4342 = vld [vmem:[%s4264 + $0xd3] sm:$0xff]
          %v4343 = vld [vmem:[%s4264 + $0xeb] sm:$0xff]
          %v4344 = vld [vmem:[%s4264 + $0xf3] sm:$0xff]
          %v4345 = vld [vmem:[%s4264 + $0x10b] sm:$0xff]
          %v4346 = vld [vmem:[%s4264 + $0x113] sm:$0xff]
          %v4347 = vld [vmem:[%s4264 + $0x12b] sm:$0xff]
          %v4348 = vld [vmem:[%s4264 + $0x133] sm:$0xff]
          %v4349 = vld [vmem:[%s4264 + $0x14b] sm:$0xff]
          %v4350 = vld [vmem:[%s4264 + $0x153] sm:$0xff]
          %v4351 = vld [vmem:[%s4264 + $0x16b] sm:$0xff]
          %v4352 = vld [vmem:[%s4264 + $0x173] sm:$0xff]
          %v4353 = vld [vmem:[%s4264 + $0x18b] sm:$0xff]
          %v4354 = vld [vmem:[%s4264 + $0x193] sm:$0xff]
          %v4355 = vld [vmem:[%s4264 + $0x1ab] sm:$0xff]
          %v4356 = vld [vmem:[%s4264 + $0x1b3] sm:$0xff]
          %v4357 = vld [vmem:[%s4264 + $0x1cb] sm:$0xff]
          %v4358 = vld [vmem:[%s4264 + $0x1d3] sm:$0xff]
          %v4359 = vld [vmem:[%s4264 + $0x1eb] sm:$0xff]
          %v4360 = vld [vmem:[%s4264 + $0x1f3] sm:$0xff]
          %4393 = vrot.lane.b32.xlu0 %v4104, 4
          %v4394 = vpop.permute.xlu0 %4393
          %4395 = vrot.lane.b32.xlu0 %v4105, 4
          %v4396 = vpop.permute.xlu0 %4395
          %4397 = vrot.lane.b32.xlu0 %v4106, 4
          %v4398 = vpop.permute.xlu0 %4397
          %4399 = vrot.lane.b32.xlu0 %v4107, 4
          %v4400 = vpop.permute.xlu0 %4399
          %4401 = vrot.lane.b32.xlu0 %v4108, 4
          %v4402 = vpop.permute.xlu0 %4401
          %4403 = vrot.lane.b32.xlu0 %v4109, 4
          %v4404 = vpop.permute.xlu0 %4403
          %4405 = vrot.lane.b32.xlu0 %v4110, 4
          %v4406 = vpop.permute.xlu0 %4405
          %4407 = vrot.lane.b32.xlu0 %v4111, 4
          %v4408 = vpop.permute.xlu0 %4407
          %4409 = vrot.lane.b32.xlu0 %v4112, 4
          %v4410 = vpop.permute.xlu0 %4409
          %4411 = vrot.lane.b32.xlu0 %v4113, 4
          %v4412 = vpop.permute.xlu0 %4411
          %4413 = vrot.lane.b32.xlu0 %v4114, 4
          %v4414 = vpop.permute.xlu0 %4413
          %4415 = vrot.lane.b32.xlu0 %v4115, 4
          %v4416 = vpop.permute.xlu0 %4415
          %4417 = vrot.lane.b32.xlu0 %v4116, 4
          %v4418 = vpop.permute.xlu0 %4417
          %4419 = vrot.lane.b32.xlu0 %v4117, 4
          %v4420 = vpop.permute.xlu0 %4419
          %4421 = vrot.lane.b32.xlu0 %v4118, 4
          %v4422 = vpop.permute.xlu0 %4421
          %4423 = vrot.lane.b32.xlu0 %v4119, 4
          %v4424 = vpop.permute.xlu0 %4423
          %4425 = vrot.lane.b32.xlu0 %v4120, 4
          %v4426 = vpop.permute.xlu0 %4425
          %4427 = vrot.lane.b32.xlu0 %v4121, 4
          %v4428 = vpop.permute.xlu0 %4427
          %4429 = vrot.lane.b32.xlu0 %v4122, 4
          %v4430 = vpop.permute.xlu0 %4429
          %4431 = vrot.lane.b32.xlu0 %v4123, 4
          %v4432 = vpop.permute.xlu0 %4431
          %4433 = vrot.lane.b32.xlu0 %v4124, 4
          %v4434 = vpop.permute.xlu0 %4433
          %4435 = vrot.lane.b32.xlu0 %v4125, 4
          %v4436 = vpop.permute.xlu0 %4435
          %4437 = vrot.lane.b32.xlu0 %v4126, 4
          %v4438 = vpop.permute.xlu0 %4437
          %4439 = vrot.lane.b32.xlu0 %v4127, 4
          %v4440 = vpop.permute.xlu0 %4439
          %4441 = vrot.lane.b32.xlu0 %v4128, 4
          %v4442 = vpop.permute.xlu0 %4441
          %4443 = vrot.lane.b32.xlu0 %v4129, 4
          %v4444 = vpop.permute.xlu0 %4443
          %4445 = vrot.lane.b32.xlu0 %v4130, 4
          %v4446 = vpop.permute.xlu0 %4445
          %4447 = vrot.lane.b32.xlu0 %v4131, 4
          %v4448 = vpop.permute.xlu0 %4447
          %4449 = vrot.lane.b32.xlu0 %v4132, 4
          %v4450 = vpop.permute.xlu0 %4449
          %4451 = vrot.lane.b32.xlu0 %v4133, 4
          %v4452 = vpop.permute.xlu0 %4451
          %4453 = vrot.lane.b32.xlu0 %v4134, 4
          %v4454 = vpop.permute.xlu0 %4453
          %4455 = vrot.lane.b32.xlu0 %v4135, 4
          %v4456 = vpop.permute.xlu0 %4455
          %4521 = vrot.lane.b32.xlu0 %v4136, 8
          %v4522 = vpop.permute.xlu0 %4521
          %4523 = vrot.lane.b32.xlu0 %v4137, 8
          %v4524 = vpop.permute.xlu0 %4523
          %4525 = vrot.lane.b32.xlu0 %v4138, 8
          %v4526 = vpop.permute.xlu0 %4525
          %4527 = vrot.lane.b32.xlu0 %v4139, 8
          %v4528 = vpop.permute.xlu0 %4527
          %4529 = vrot.lane.b32.xlu0 %v4140, 8
          %v4530 = vpop.permute.xlu0 %4529
          %4531 = vrot.lane.b32.xlu0 %v4141, 8
          %v4532 = vpop.permute.xlu0 %4531
          %4533 = vrot.lane.b32.xlu0 %v4142, 8
          %v4534 = vpop.permute.xlu0 %4533
          %4535 = vrot.lane.b32.xlu0 %v4143, 8
          %v4536 = vpop.permute.xlu0 %4535
          %4537 = vrot.lane.b32.xlu0 %v4144, 8
          %v4538 = vpop.permute.xlu0 %4537
          %4539 = vrot.lane.b32.xlu0 %v4145, 8
          %v4540 = vpop.permute.xlu0 %4539
          %4541 = vrot.lane.b32.xlu0 %v4146, 8
          %v4542 = vpop.permute.xlu0 %4541
          %4543 = vrot.lane.b32.xlu0 %v4147, 8
          %v4544 = vpop.permute.xlu0 %4543
          %4545 = vrot.lane.b32.xlu0 %v4148, 8
          %v4546 = vpop.permute.xlu0 %4545
          %4547 = vrot.lane.b32.xlu0 %v4149, 8
          %v4548 = vpop.permute.xlu0 %4547
          %4549 = vrot.lane.b32.xlu0 %v4150, 8
          %v4550 = vpop.permute.xlu0 %4549
          %4551 = vrot.lane.b32.xlu0 %v4151, 8
          %v4552 = vpop.permute.xlu0 %4551
          %4553 = vrot.lane.b32.xlu0 %v4152, 8
          %v4554 = vpop.permute.xlu0 %4553
          %4555 = vrot.lane.b32.xlu0 %v4153, 8
          %v4556 = vpop.permute.xlu0 %4555
          %4557 = vrot.lane.b32.xlu0 %v4154, 8
          %v4558 = vpop.permute.xlu0 %4557
          %4559 = vrot.lane.b32.xlu0 %v4155, 8
          %v4560 = vpop.permute.xlu0 %4559
          %4561 = vrot.lane.b32.xlu0 %v4156, 8
          %v4562 = vpop.permute.xlu0 %4561
          %4563 = vrot.lane.b32.xlu0 %v4157, 8
          %v4564 = vpop.permute.xlu0 %4563
          %4565 = vrot.lane.b32.xlu0 %v4158, 8
          %v4566 = vpop.permute.xlu0 %4565
          %4567 = vrot.lane.b32.xlu0 %v4159, 8
          %v4568 = vpop.permute.xlu0 %4567
          %4569 = vrot.lane.b32.xlu0 %v4160, 8
          %v4570 = vpop.permute.xlu0 %4569
          %4571 = vrot.lane.b32.xlu0 %v4161, 8
          %v4572 = vpop.permute.xlu0 %4571
          %4573 = vrot.lane.b32.xlu0 %v4162, 8
          %v4574 = vpop.permute.xlu0 %4573
          %4575 = vrot.lane.b32.xlu0 %v4163, 8
          %v4576 = vpop.permute.xlu0 %4575
          %4577 = vrot.lane.b32.xlu0 %v4164, 8
          %v4578 = vpop.permute.xlu0 %4577
          %4579 = vrot.lane.b32.xlu0 %v4165, 8
          %v4580 = vpop.permute.xlu0 %4579
          %4581 = vrot.lane.b32.xlu0 %v4166, 8
          %v4582 = vpop.permute.xlu0 %4581
          %4583 = vrot.lane.b32.xlu0 %v4167, 8
          %v4584 = vpop.permute.xlu0 %4583
          %4649 = vrot.lane.b32.xlu0 %v4168, 12
          %v4650 = vpop.permute.xlu0 %4649
          %4651 = vrot.lane.b32.xlu0 %v4169, 12
          %v4652 = vpop.permute.xlu0 %4651
          %4653 = vrot.lane.b32.xlu0 %v4170, 12
          %v4654 = vpop.permute.xlu0 %4653
          %4655 = vrot.lane.b32.xlu0 %v4171, 12
          %v4656 = vpop.permute.xlu0 %4655
          %4657 = vrot.lane.b32.xlu0 %v4172, 12
          %v4658 = vpop.permute.xlu0 %4657
          %4659 = vrot.lane.b32.xlu0 %v4173, 12
          %v4660 = vpop.permute.xlu0 %4659
          %4661 = vrot.lane.b32.xlu0 %v4174, 12
          %v4662 = vpop.permute.xlu0 %4661
          %4663 = vrot.lane.b32.xlu0 %v4175, 12
          %v4664 = vpop.permute.xlu0 %4663
          %4665 = vrot.lane.b32.xlu0 %v4176, 12
          %v4666 = vpop.permute.xlu0 %4665
          %4667 = vrot.lane.b32.xlu0 %v4177, 12
          %v4668 = vpop.permute.xlu0 %4667
          %4669 = vrot.lane.b32.xlu0 %v4178, 12
          %v4670 = vpop.permute.xlu0 %4669
          %4671 = vrot.lane.b32.xlu0 %v4179, 12
          %v4672 = vpop.permute.xlu0 %4671
          %4673 = vrot.lane.b32.xlu0 %v4180, 12
          %v4674 = vpop.permute.xlu0 %4673
          %4675 = vrot.lane.b32.xlu0 %v4181, 12
          %v4676 = vpop.permute.xlu0 %4675
          %4677 = vrot.lane.b32.xlu0 %v4182, 12
          %v4678 = vpop.permute.xlu0 %4677
          %4679 = vrot.lane.b32.xlu0 %v4183, 12
          %v4680 = vpop.permute.xlu0 %4679
          %4681 = vrot.lane.b32.xlu0 %v4184, 12
          %v4682 = vpop.permute.xlu0 %4681
          %4683 = vrot.lane.b32.xlu0 %v4185, 12
          %v4684 = vpop.permute.xlu0 %4683
          %4685 = vrot.lane.b32.xlu0 %v4186, 12
          %v4686 = vpop.permute.xlu0 %4685
          %4687 = vrot.lane.b32.xlu0 %v4187, 12
          %v4688 = vpop.permute.xlu0 %4687
          %4689 = vrot.lane.b32.xlu0 %v4188, 12
          %v4690 = vpop.permute.xlu0 %4689
          %4691 = vrot.lane.b32.xlu0 %v4189, 12
          %v4692 = vpop.permute.xlu0 %4691
          %4693 = vrot.lane.b32.xlu0 %v4190, 12
          %v4694 = vpop.permute.xlu0 %4693
          %4695 = vrot.lane.b32.xlu0 %v4191, 12
          %v4696 = vpop.permute.xlu0 %4695
          %4697 = vrot.lane.b32.xlu0 %v4192, 12
          %v4698 = vpop.permute.xlu0 %4697
          %4699 = vrot.lane.b32.xlu0 %v4193, 12
          %v4700 = vpop.permute.xlu0 %4699
          %4701 = vrot.lane.b32.xlu0 %v4194, 12
          %v4702 = vpop.permute.xlu0 %4701
          %4703 = vrot.lane.b32.xlu0 %v4195, 12
          %v4704 = vpop.permute.xlu0 %4703
          %4705 = vrot.lane.b32.xlu0 %v4196, 12
          %v4706 = vpop.permute.xlu0 %4705
          %4707 = vrot.lane.b32.xlu0 %v4197, 12
          %v4708 = vpop.permute.xlu0 %4707
          %4709 = vrot.lane.b32.xlu0 %v4198, 12
          %v4710 = vpop.permute.xlu0 %4709
          %4711 = vrot.lane.b32.xlu0 %v4199, 12
          %v4712 = vpop.permute.xlu0 %4711
          %4777 = vrot.lane.b32.xlu0 %v4200, 16
          %v4778 = vpop.permute.xlu0 %4777
          %4779 = vrot.lane.b32.xlu0 %v4201, 16
          %v4780 = vpop.permute.xlu0 %4779
          %4781 = vrot.lane.b32.xlu0 %v4202, 16
          %v4782 = vpop.permute.xlu0 %4781
          %4783 = vrot.lane.b32.xlu0 %v4203, 16
          %v4784 = vpop.permute.xlu0 %4783
          %4785 = vrot.lane.b32.xlu0 %v4204, 16
          %v4786 = vpop.permute.xlu0 %4785
          %4787 = vrot.lane.b32.xlu0 %v4205, 16
          %v4788 = vpop.permute.xlu0 %4787
          %4789 = vrot.lane.b32.xlu0 %v4206, 16
          %v4790 = vpop.permute.xlu0 %4789
          %4791 = vrot.lane.b32.xlu0 %v4207, 16
          %v4792 = vpop.permute.xlu0 %4791
          %4793 = vrot.lane.b32.xlu0 %v4208, 16
          %v4794 = vpop.permute.xlu0 %4793
          %4795 = vrot.lane.b32.xlu0 %v4209, 16
          %v4796 = vpop.permute.xlu0 %4795
          %4797 = vrot.lane.b32.xlu0 %v4210, 16
          %v4798 = vpop.permute.xlu0 %4797
          %4799 = vrot.lane.b32.xlu0 %v4211, 16
          %v4800 = vpop.permute.xlu0 %4799
          %4801 = vrot.lane.b32.xlu0 %v4212, 16
          %v4802 = vpop.permute.xlu0 %4801
          %4803 = vrot.lane.b32.xlu0 %v4213, 16
          %v4804 = vpop.permute.xlu0 %4803
          %4805 = vrot.lane.b32.xlu0 %v4214, 16
          %v4806 = vpop.permute.xlu0 %4805
          %4807 = vrot.lane.b32.xlu0 %v4215, 16
          %v4808 = vpop.permute.xlu0 %4807
          %4809 = vrot.lane.b32.xlu0 %v4216, 16
          %v4810 = vpop.permute.xlu0 %4809
          %4811 = vrot.lane.b32.xlu0 %v4217, 16
          %v4812 = vpop.permute.xlu0 %4811
          %4813 = vrot.lane.b32.xlu0 %v4218, 16
          %v4814 = vpop.permute.xlu0 %4813
          %4815 = vrot.lane.b32.xlu0 %v4219, 16
          %v4816 = vpop.permute.xlu0 %4815
          %4817 = vrot.lane.b32.xlu0 %v4220, 16
          %v4818 = vpop.permute.xlu0 %4817
          %4819 = vrot.lane.b32.xlu0 %v4221, 16
          %v4820 = vpop.permute.xlu0 %4819
          %4821 = vrot.lane.b32.xlu0 %v4222, 16
          %v4822 = vpop.permute.xlu0 %4821
          %4823 = vrot.lane.b32.xlu0 %v4223, 16
          %v4824 = vpop.permute.xlu0 %4823
          %4825 = vrot.lane.b32.xlu0 %v4224, 16
          %v4826 = vpop.permute.xlu0 %4825
          %4827 = vrot.lane.b32.xlu0 %v4225, 16
          %v4828 = vpop.permute.xlu0 %4827
          %4829 = vrot.lane.b32.xlu0 %v4226, 16
          %v4830 = vpop.permute.xlu0 %4829
          %4831 = vrot.lane.b32.xlu0 %v4227, 16
          %v4832 = vpop.permute.xlu0 %4831
          %4833 = vrot.lane.b32.xlu0 %v4228, 16
          %v4834 = vpop.permute.xlu0 %4833
          %4835 = vrot.lane.b32.xlu0 %v4229, 16
          %v4836 = vpop.permute.xlu0 %4835
          %4837 = vrot.lane.b32.xlu0 %v4230, 16
          %v4838 = vpop.permute.xlu0 %4837
          %4839 = vrot.lane.b32.xlu0 %v4231, 16
          %v4840 = vpop.permute.xlu0 %4839
          %4905 = vrot.lane.b32.xlu0 %v4232, 20
          %v4906 = vpop.permute.xlu0 %4905
          %4907 = vrot.lane.b32.xlu0 %v4233, 20
          %v4908 = vpop.permute.xlu0 %4907
          %4909 = vrot.lane.b32.xlu0 %v4234, 20
          %v4910 = vpop.permute.xlu0 %4909
          %4911 = vrot.lane.b32.xlu0 %v4235, 20
          %v4912 = vpop.permute.xlu0 %4911
          %4913 = vrot.lane.b32.xlu0 %v4236, 20
          %v4914 = vpop.permute.xlu0 %4913
          %4915 = vrot.lane.b32.xlu0 %v4237, 20
          %v4916 = vpop.permute.xlu0 %4915
          %4917 = vrot.lane.b32.xlu0 %v4238, 20
          %v4918 = vpop.permute.xlu0 %4917
          %4919 = vrot.lane.b32.xlu0 %v4239, 20
          %v4920 = vpop.permute.xlu0 %4919
          %4921 = vrot.lane.b32.xlu0 %v4240, 20
          %v4922 = vpop.permute.xlu0 %4921
          %4923 = vrot.lane.b32.xlu0 %v4241, 20
          %v4924 = vpop.permute.xlu0 %4923
          %4925 = vrot.lane.b32.xlu0 %v4242, 20
          %v4926 = vpop.permute.xlu0 %4925
          %4927 = vrot.lane.b32.xlu0 %v4243, 20
          %v4928 = vpop.permute.xlu0 %4927
          %4929 = vrot.lane.b32.xlu0 %v4244, 20
          %v4930 = vpop.permute.xlu0 %4929
          %4931 = vrot.lane.b32.xlu0 %v4245, 20
          %v4932 = vpop.permute.xlu0 %4931
          %4933 = vrot.lane.b32.xlu0 %v4246, 20
          %v4934 = vpop.permute.xlu0 %4933
          %4935 = vrot.lane.b32.xlu0 %v4247, 20
          %v4936 = vpop.permute.xlu0 %4935
          %4937 = vrot.lane.b32.xlu0 %v4248, 20
          %v4938 = vpop.permute.xlu0 %4937
          %4939 = vrot.lane.b32.xlu0 %v4249, 20
          %v4940 = vpop.permute.xlu0 %4939
          %4941 = vrot.lane.b32.xlu0 %v4250, 20
          %v4942 = vpop.permute.xlu0 %4941
          %4943 = vrot.lane.b32.xlu0 %v4251, 20
          %v4944 = vpop.permute.xlu0 %4943
          %4945 = vrot.lane.b32.xlu0 %v4252, 20
          %v4946 = vpop.permute.xlu0 %4945
          %4947 = vrot.lane.b32.xlu0 %v4253, 20
          %v4948 = vpop.permute.xlu0 %4947
          %4949 = vrot.lane.b32.xlu0 %v4254, 20
          %v4950 = vpop.permute.xlu0 %4949
          %4951 = vrot.lane.b32.xlu0 %v4255, 20
          %v4952 = vpop.permute.xlu0 %4951
          %4953 = vrot.lane.b32.xlu0 %v4256, 20
          %v4954 = vpop.permute.xlu0 %4953
          %4955 = vrot.lane.b32.xlu0 %v4257, 20
          %v4956 = vpop.permute.xlu0 %4955
          %4957 = vrot.lane.b32.xlu0 %v4258, 20
          %v4958 = vpop.permute.xlu0 %4957
          %4959 = vrot.lane.b32.xlu0 %v4259, 20
          %v4960 = vpop.permute.xlu0 %4959
          %4961 = vrot.lane.b32.xlu0 %v4260, 20
          %v4962 = vpop.permute.xlu0 %4961
          %4963 = vrot.lane.b32.xlu0 %v4261, 20
          %v4964 = vpop.permute.xlu0 %4963
          %4965 = vrot.lane.b32.xlu0 %v4262, 20
          %v4966 = vpop.permute.xlu0 %4965
          %4967 = vrot.lane.b32.xlu0 %v4263, 20
          %v4968 = vpop.permute.xlu0 %4967
          %5033 = vrot.lane.b32.xlu0 %v4265, 24
          %v5034 = vpop.permute.xlu0 %5033
          %5035 = vrot.lane.b32.xlu0 %v4266, 24
          %v5036 = vpop.permute.xlu0 %5035
          %5037 = vrot.lane.b32.xlu0 %v4267, 24
          %v5038 = vpop.permute.xlu0 %5037
          %5039 = vrot.lane.b32.xlu0 %v4268, 24
          %v5040 = vpop.permute.xlu0 %5039
          %5041 = vrot.lane.b32.xlu0 %v4269, 24
          %v5042 = vpop.permute.xlu0 %5041
          %5043 = vrot.lane.b32.xlu0 %v4270, 24
          %v5044 = vpop.permute.xlu0 %5043
          %5045 = vrot.lane.b32.xlu0 %v4271, 24
          %v5046 = vpop.permute.xlu0 %5045
          %5047 = vrot.lane.b32.xlu0 %v4272, 24
          %v5048 = vpop.permute.xlu0 %5047
          %5049 = vrot.lane.b32.xlu0 %v4273, 24
          %v5050 = vpop.permute.xlu0 %5049
          %5051 = vrot.lane.b32.xlu0 %v4274, 24
          %v5052 = vpop.permute.xlu0 %5051
          %5053 = vrot.lane.b32.xlu0 %v4275, 24
          %v5054 = vpop.permute.xlu0 %5053
          %5055 = vrot.lane.b32.xlu0 %v4276, 24
          %v5056 = vpop.permute.xlu0 %5055
          %5057 = vrot.lane.b32.xlu0 %v4277, 24
          %v5058 = vpop.permute.xlu0 %5057
          %5059 = vrot.lane.b32.xlu0 %v4278, 24
          %v5060 = vpop.permute.xlu0 %5059
          %5061 = vrot.lane.b32.xlu0 %v4279, 24
          %v5062 = vpop.permute.xlu0 %5061
          %5063 = vrot.lane.b32.xlu0 %v4280, 24
          %v5064 = vpop.permute.xlu0 %5063
          %5065 = vrot.lane.b32.xlu0 %v4281, 24
          %v5066 = vpop.permute.xlu0 %5065
          %5067 = vrot.lane.b32.xlu0 %v4282, 24
          %v5068 = vpop.permute.xlu0 %5067
          %5069 = vrot.lane.b32.xlu0 %v4283, 24
          %v5070 = vpop.permute.xlu0 %5069
          %5071 = vrot.lane.b32.xlu0 %v4284, 24
          %v5072 = vpop.permute.xlu0 %5071
          %5073 = vrot.lane.b32.xlu0 %v4285, 24
          %v5074 = vpop.permute.xlu0 %5073
          %5075 = vrot.lane.b32.xlu0 %v4286, 24
          %v5076 = vpop.permute.xlu0 %5075
          %5077 = vrot.lane.b32.xlu0 %v4287, 24
          %v5078 = vpop.permute.xlu0 %5077
          %5079 = vrot.lane.b32.xlu0 %v4288, 24
          %v5080 = vpop.permute.xlu0 %5079
          %5081 = vrot.lane.b32.xlu0 %v4289, 24
          %v5082 = vpop.permute.xlu0 %5081
          %5083 = vrot.lane.b32.xlu0 %v4290, 24
          %v5084 = vpop.permute.xlu0 %5083
          %5085 = vrot.lane.b32.xlu0 %v4291, 24
          %v5086 = vpop.permute.xlu0 %5085
          %5087 = vrot.lane.b32.xlu0 %v4292, 24
          %v5088 = vpop.permute.xlu0 %5087
          %5089 = vrot.lane.b32.xlu0 %v4293, 24
          %v5090 = vpop.permute.xlu0 %5089
          %5091 = vrot.lane.b32.xlu0 %v4294, 24
          %v5092 = vpop.permute.xlu0 %5091
          %5093 = vrot.lane.b32.xlu0 %v4295, 24
          %v5094 = vpop.permute.xlu0 %5093
          %5095 = vrot.lane.b32.xlu0 %v4296, 24
          %v5096 = vpop.permute.xlu0 %5095
          %5161 = vrot.lane.b32.xlu0 %v4297, 28
          %v5162 = vpop.permute.xlu0 %5161
          %5163 = vrot.lane.b32.xlu0 %v4298, 28
          %v5164 = vpop.permute.xlu0 %5163
          %5165 = vrot.lane.b32.xlu0 %v4299, 28
          %v5166 = vpop.permute.xlu0 %5165
          %5167 = vrot.lane.b32.xlu0 %v4300, 28
          %v5168 = vpop.permute.xlu0 %5167
          %5169 = vrot.lane.b32.xlu0 %v4301, 28
          %v5170 = vpop.permute.xlu0 %5169
          %5171 = vrot.lane.b32.xlu0 %v4302, 28
          %v5172 = vpop.permute.xlu0 %5171
          %5173 = vrot.lane.b32.xlu0 %v4303, 28
          %v5174 = vpop.permute.xlu0 %5173
          %5175 = vrot.lane.b32.xlu0 %v4304, 28
          %v5176 = vpop.permute.xlu0 %5175
          %5177 = vrot.lane.b32.xlu0 %v4305, 28
          %v5178 = vpop.permute.xlu0 %5177
          %5179 = vrot.lane.b32.xlu0 %v4306, 28
          %v5180 = vpop.permute.xlu0 %5179
          %5181 = vrot.lane.b32.xlu0 %v4307, 28
          %v5182 = vpop.permute.xlu0 %5181
          %5183 = vrot.lane.b32.xlu0 %v4308, 28
          %v5184 = vpop.permute.xlu0 %5183
          %5185 = vrot.lane.b32.xlu0 %v4309, 28
          %v5186 = vpop.permute.xlu0 %5185
          %5187 = vrot.lane.b32.xlu0 %v4310, 28
          %v5188 = vpop.permute.xlu0 %5187
          %5189 = vrot.lane.b32.xlu0 %v4311, 28
          %v5190 = vpop.permute.xlu0 %5189
          %5191 = vrot.lane.b32.xlu0 %v4312, 28
          %v5192 = vpop.permute.xlu0 %5191
          %5193 = vrot.lane.b32.xlu0 %v4313, 28
          %v5194 = vpop.permute.xlu0 %5193
          %5195 = vrot.lane.b32.xlu0 %v4314, 28
          %v5196 = vpop.permute.xlu0 %5195
          %5197 = vrot.lane.b32.xlu0 %v4315, 28
          %v5198 = vpop.permute.xlu0 %5197
          %5199 = vrot.lane.b32.xlu0 %v4316, 28
          %v5200 = vpop.permute.xlu0 %5199
          %5201 = vrot.lane.b32.xlu0 %v4317, 28
          %v5202 = vpop.permute.xlu0 %5201
          %5203 = vrot.lane.b32.xlu0 %v4318, 28
          %v5204 = vpop.permute.xlu0 %5203
          %5205 = vrot.lane.b32.xlu0 %v4319, 28
          %v5206 = vpop.permute.xlu0 %5205
          %5207 = vrot.lane.b32.xlu0 %v4320, 28
          %v5208 = vpop.permute.xlu0 %5207
          %5209 = vrot.lane.b32.xlu0 %v4321, 28
          %v5210 = vpop.permute.xlu0 %5209
          %5211 = vrot.lane.b32.xlu0 %v4322, 28
          %v5212 = vpop.permute.xlu0 %5211
          %5213 = vrot.lane.b32.xlu0 %v4323, 28
          %v5214 = vpop.permute.xlu0 %5213
          %5215 = vrot.lane.b32.xlu0 %v4324, 28
          %v5216 = vpop.permute.xlu0 %5215
          %5217 = vrot.lane.b32.xlu0 %v4325, 28
          %v5218 = vpop.permute.xlu0 %5217
          %5219 = vrot.lane.b32.xlu0 %v4326, 28
          %v5220 = vpop.permute.xlu0 %5219
          %5221 = vrot.lane.b32.xlu0 %v4327, 28
          %v5222 = vpop.permute.xlu0 %5221
          %5223 = vrot.lane.b32.xlu0 %v4328, 28
          %v5224 = vpop.permute.xlu0 %5223
          %5289 = vrot.lane.b32.xlu0 %v4329, 32
          %v5290 = vpop.permute.xlu0 %5289
          %5291 = vrot.lane.b32.xlu0 %v4330, 32
          %v5292 = vpop.permute.xlu0 %5291
          %5293 = vrot.lane.b32.xlu0 %v4331, 32
          %v5294 = vpop.permute.xlu0 %5293
          %5295 = vrot.lane.b32.xlu0 %v4332, 32
          %v5296 = vpop.permute.xlu0 %5295
          %5297 = vrot.lane.b32.xlu0 %v4333, 32
          %v5298 = vpop.permute.xlu0 %5297
          %5299 = vrot.lane.b32.xlu0 %v4334, 32
          %v5300 = vpop.permute.xlu0 %5299
          %5301 = vrot.lane.b32.xlu0 %v4335, 32
          %v5302 = vpop.permute.xlu0 %5301
          %5303 = vrot.lane.b32.xlu0 %v4336, 32
          %v5304 = vpop.permute.xlu0 %5303
          %5305 = vrot.lane.b32.xlu0 %v4337, 32
          %v5306 = vpop.permute.xlu0 %5305
          %5307 = vrot.lane.b32.xlu0 %v4338, 32
          %v5308 = vpop.permute.xlu0 %5307
          %5309 = vrot.lane.b32.xlu0 %v4339, 32
          %v5310 = vpop.permute.xlu0 %5309
          %5311 = vrot.lane.b32.xlu0 %v4340, 32
          %v5312 = vpop.permute.xlu0 %5311
          %5313 = vrot.lane.b32.xlu0 %v4341, 32
          %v5314 = vpop.permute.xlu0 %5313
          %5315 = vrot.lane.b32.xlu0 %v4342, 32
          %v5316 = vpop.permute.xlu0 %5315
          %5317 = vrot.lane.b32.xlu0 %v4343, 32
          %v5318 = vpop.permute.xlu0 %5317
          %5319 = vrot.lane.b32.xlu0 %v4344, 32
          %v5320 = vpop.permute.xlu0 %5319
          %5321 = vrot.lane.b32.xlu0 %v4345, 32
          %v5322 = vpop.permute.xlu0 %5321
          %5323 = vrot.lane.b32.xlu0 %v4346, 32
          %v5324 = vpop.permute.xlu0 %5323
          %5325 = vrot.lane.b32.xlu0 %v4347, 32
          %v5326 = vpop.permute.xlu0 %5325
          %5327 = vrot.lane.b32.xlu0 %v4348, 32
          %v5328 = vpop.permute.xlu0 %5327
          %5329 = vrot.lane.b32.xlu0 %v4349, 32
          %v5330 = vpop.permute.xlu0 %5329
          %5331 = vrot.lane.b32.xlu0 %v4350, 32
          %v5332 = vpop.permute.xlu0 %5331
          %5333 = vrot.lane.b32.xlu0 %v4351, 32
          %v5334 = vpop.permute.xlu0 %5333
          %5335 = vrot.lane.b32.xlu0 %v4352, 32
          %v5336 = vpop.permute.xlu0 %5335
          %5337 = vrot.lane.b32.xlu0 %v4353, 32
          %v5338 = vpop.permute.xlu0 %5337
          %5339 = vrot.lane.b32.xlu0 %v4354, 32
          %v5340 = vpop.permute.xlu0 %5339
          %5341 = vrot.lane.b32.xlu0 %v4355, 32
          %v5342 = vpop.permute.xlu0 %5341
          %5343 = vrot.lane.b32.xlu0 %v4356, 32
          %v5344 = vpop.permute.xlu0 %5343
          %5345 = vrot.lane.b32.xlu0 %v4357, 32
          %v5346 = vpop.permute.xlu0 %5345
          %5347 = vrot.lane.b32.xlu0 %v4358, 32
          %v5348 = vpop.permute.xlu0 %5347
          %5349 = vrot.lane.b32.xlu0 %v4359, 32
          %v5350 = vpop.permute.xlu0 %5349
          %5351 = vrot.lane.b32.xlu0 %v4360, 32
          %v5352 = vpop.permute.xlu0 %5351
          %v5385 = vsel %vm170, %v4072, %v4394
          %v5386 = vsel %vm170, %v4073, %v4396
          %v5387 = vsel %vm170, %v4074, %v4398
          %v5388 = vsel %vm170, %v4075, %v4400
          %v5389 = vsel %vm170, %v4076, %v4402
          %v5390 = vsel %vm170, %v4077, %v4404
          %v5391 = vsel %vm170, %v4078, %v4406
          %v5392 = vsel %vm170, %v4079, %v4408
          %v5393 = vsel %vm170, %v4080, %v4410
          %v5394 = vsel %vm170, %v4081, %v4412
          %v5395 = vsel %vm170, %v4082, %v4414
          %v5396 = vsel %vm170, %v4083, %v4416
          %v5397 = vsel %vm170, %v4084, %v4418
          %v5398 = vsel %vm170, %v4085, %v4420
          %v5399 = vsel %vm170, %v4086, %v4422
          %v5400 = vsel %vm170, %v4087, %v4424
          %v5401 = vsel %vm170, %v4088, %v4426
          %v5402 = vsel %vm170, %v4089, %v4428
          %v5403 = vsel %vm170, %v4090, %v4430
          %v5404 = vsel %vm170, %v4091, %v4432
          %v5405 = vsel %vm170, %v4092, %v4434
          %v5406 = vsel %vm170, %v4093, %v4436
          %v5407 = vsel %vm170, %v4094, %v4438
          %v5408 = vsel %vm170, %v4095, %v4440
          %v5409 = vsel %vm170, %v4096, %v4442
          %v5410 = vsel %vm170, %v4097, %v4444
          %v5411 = vsel %vm170, %v4098, %v4446
          %v5412 = vsel %vm170, %v4099, %v4448
          %v5413 = vsel %vm170, %v4100, %v4450
          %v5414 = vsel %vm170, %v4101, %v4452
          %v5415 = vsel %vm170, %v4102, %v4454
          %v5416 = vsel %vm170, %v4103, %v4456
          %vm5417 = vcmask 64512
          %v5418 = vsel %vm5417, %v5385, %v4522
          %v5419 = vsel %vm5417, %v5386, %v4524
          %v5420 = vsel %vm5417, %v5387, %v4526
          %v5421 = vsel %vm5417, %v5388, %v4528
          %v5422 = vsel %vm5417, %v5389, %v4530
          %v5423 = vsel %vm5417, %v5390, %v4532
          %v5424 = vsel %vm5417, %v5391, %v4534
          %v5425 = vsel %vm5417, %v5392, %v4536
          %v5426 = vsel %vm5417, %v5393, %v4538
          %v5427 = vsel %vm5417, %v5394, %v4540
          %v5428 = vsel %vm5417, %v5395, %v4542
          %v5429 = vsel %vm5417, %v5396, %v4544
          %v5430 = vsel %vm5417, %v5397, %v4546
          %v5431 = vsel %vm5417, %v5398, %v4548
          %v5432 = vsel %vm5417, %v5399, %v4550
          %v5433 = vsel %vm5417, %v5400, %v4552
          %v5434 = vsel %vm5417, %v5401, %v4554
          %v5435 = vsel %vm5417, %v5402, %v4556
          %v5436 = vsel %vm5417, %v5403, %v4558
          %v5437 = vsel %vm5417, %v5404, %v4560
          %v5438 = vsel %vm5417, %v5405, %v4562
          %v5439 = vsel %vm5417, %v5406, %v4564
          %v5440 = vsel %vm5417, %v5407, %v4566
          %v5441 = vsel %vm5417, %v5408, %v4568
          %v5442 = vsel %vm5417, %v5409, %v4570
          %v5443 = vsel %vm5417, %v5410, %v4572
          %v5444 = vsel %vm5417, %v5411, %v4574
          %v5445 = vsel %vm5417, %v5412, %v4576
          %v5446 = vsel %vm5417, %v5413, %v4578
          %v5447 = vsel %vm5417, %v5414, %v4580
          %v5448 = vsel %vm5417, %v5415, %v4582
          %v5449 = vsel %vm5417, %v5416, %v4584
          %vm5450 = vcmask 97280
          %v5451 = vsel %vm5450, %v5418, %v4650
          %v5452 = vsel %vm5450, %v5419, %v4652
          %v5453 = vsel %vm5450, %v5420, %v4654
          %v5454 = vsel %vm5450, %v5421, %v4656
          %v5455 = vsel %vm5450, %v5422, %v4658
          %v5456 = vsel %vm5450, %v5423, %v4660
          %v5457 = vsel %vm5450, %v5424, %v4662
          %v5458 = vsel %vm5450, %v5425, %v4664
          %v5459 = vsel %vm5450, %v5426, %v4666
          %v5460 = vsel %vm5450, %v5427, %v4668
          %v5461 = vsel %vm5450, %v5428, %v4670
          %v5462 = vsel %vm5450, %v5429, %v4672
          %v5463 = vsel %vm5450, %v5430, %v4674
          %v5464 = vsel %vm5450, %v5431, %v4676
          %v5465 = vsel %vm5450, %v5432, %v4678
          %v5466 = vsel %vm5450, %v5433, %v4680
          %v5467 = vsel %vm5450, %v5434, %v4682
          %v5468 = vsel %vm5450, %v5435, %v4684
          %v5469 = vsel %vm5450, %v5436, %v4686
          %v5470 = vsel %vm5450, %v5437, %v4688
          %v5471 = vsel %vm5450, %v5438, %v4690
          %v5472 = vsel %vm5450, %v5439, %v4692
          %v5473 = vsel %vm5450, %v5440, %v4694
          %v5474 = vsel %vm5450, %v5441, %v4696
          %v5475 = vsel %vm5450, %v5442, %v4698
          %v5476 = vsel %vm5450, %v5443, %v4700
          %v5477 = vsel %vm5450, %v5444, %v4702
          %v5478 = vsel %vm5450, %v5445, %v4704
          %v5479 = vsel %vm5450, %v5446, %v4706
          %v5480 = vsel %vm5450, %v5447, %v4708
          %v5481 = vsel %vm5450, %v5448, %v4710
          %v5482 = vsel %vm5450, %v5449, %v4712
          %vm5483 = vcmask 130048
          %v5484 = vsel %vm5483, %v5451, %v4778
          %v5485 = vsel %vm5483, %v5452, %v4780
          %v5486 = vsel %vm5483, %v5453, %v4782
          %v5487 = vsel %vm5483, %v5454, %v4784
          %v5488 = vsel %vm5483, %v5455, %v4786
          %v5489 = vsel %vm5483, %v5456, %v4788
          %v5490 = vsel %vm5483, %v5457, %v4790
          %v5491 = vsel %vm5483, %v5458, %v4792
          %v5492 = vsel %vm5483, %v5459, %v4794
          %v5493 = vsel %vm5483, %v5460, %v4796
          %v5494 = vsel %vm5483, %v5461, %v4798
          %v5495 = vsel %vm5483, %v5462, %v4800
          %v5496 = vsel %vm5483, %v5463, %v4802
          %v5497 = vsel %vm5483, %v5464, %v4804
          %v5498 = vsel %vm5483, %v5465, %v4806
          %v5499 = vsel %vm5483, %v5466, %v4808
          %v5500 = vsel %vm5483, %v5467, %v4810
          %v5501 = vsel %vm5483, %v5468, %v4812
          %v5502 = vsel %vm5483, %v5469, %v4814
          %v5503 = vsel %vm5483, %v5470, %v4816
          %v5504 = vsel %vm5483, %v5471, %v4818
          %v5505 = vsel %vm5483, %v5472, %v4820
          %v5506 = vsel %vm5483, %v5473, %v4822
          %v5507 = vsel %vm5483, %v5474, %v4824
          %v5508 = vsel %vm5483, %v5475, %v4826
          %v5509 = vsel %vm5483, %v5476, %v4828
          %v5510 = vsel %vm5483, %v5477, %v4830
          %v5511 = vsel %vm5483, %v5478, %v4832
          %v5512 = vsel %vm5483, %v5479, %v4834
          %v5513 = vsel %vm5483, %v5480, %v4836
          %v5514 = vsel %vm5483, %v5481, %v4838
          %v5515 = vsel %vm5483, %v5482, %v4840
          %vm5516 = vcmask 162816
          %v5517 = vsel %vm5516, %v5484, %v4906
          %v5518 = vsel %vm5516, %v5485, %v4908
          %v5519 = vsel %vm5516, %v5486, %v4910
          %v5520 = vsel %vm5516, %v5487, %v4912
          %v5521 = vsel %vm5516, %v5488, %v4914
          %v5522 = vsel %vm5516, %v5489, %v4916
          %v5523 = vsel %vm5516, %v5490, %v4918
          %v5524 = vsel %vm5516, %v5491, %v4920
          %v5525 = vsel %vm5516, %v5492, %v4922
          %v5526 = vsel %vm5516, %v5493, %v4924
          %v5527 = vsel %vm5516, %v5494, %v4926
          %v5528 = vsel %vm5516, %v5495, %v4928
          %v5529 = vsel %vm5516, %v5496, %v4930
          %v5530 = vsel %vm5516, %v5497, %v4932
          %v5531 = vsel %vm5516, %v5498, %v4934
          %v5532 = vsel %vm5516, %v5499, %v4936
          %v5533 = vsel %vm5516, %v5500, %v4938
          %v5534 = vsel %vm5516, %v5501, %v4940
          %v5535 = vsel %vm5516, %v5502, %v4942
          %v5536 = vsel %vm5516, %v5503, %v4944
          %v5537 = vsel %vm5516, %v5504, %v4946
          %v5538 = vsel %vm5516, %v5505, %v4948
          %v5539 = vsel %vm5516, %v5506, %v4950
          %v5540 = vsel %vm5516, %v5507, %v4952
          %v5541 = vsel %vm5516, %v5508, %v4954
          %v5542 = vsel %vm5516, %v5509, %v4956
          %v5543 = vsel %vm5516, %v5510, %v4958
          %v5544 = vsel %vm5516, %v5511, %v4960
          %v5545 = vsel %vm5516, %v5512, %v4962
          %v5546 = vsel %vm5516, %v5513, %v4964
          %v5547 = vsel %vm5516, %v5514, %v4966
          %v5548 = vsel %vm5516, %v5515, %v4968
          %vm5549 = vcmask 195584
          %v5550 = vsel %vm5549, %v5517, %v5034
          %v5551 = vsel %vm5549, %v5518, %v5036
          %v5552 = vsel %vm5549, %v5519, %v5038
          %v5553 = vsel %vm5549, %v5520, %v5040
          %v5554 = vsel %vm5549, %v5521, %v5042
          %v5555 = vsel %vm5549, %v5522, %v5044
          %v5556 = vsel %vm5549, %v5523, %v5046
          %v5557 = vsel %vm5549, %v5524, %v5048
          %v5558 = vsel %vm5549, %v5525, %v5050
          %v5559 = vsel %vm5549, %v5526, %v5052
          %v5560 = vsel %vm5549, %v5527, %v5054
          %v5561 = vsel %vm5549, %v5528, %v5056
          %v5562 = vsel %vm5549, %v5529, %v5058
          %v5563 = vsel %vm5549, %v5530, %v5060
          %v5564 = vsel %vm5549, %v5531, %v5062
          %v5565 = vsel %vm5549, %v5532, %v5064
          %v5566 = vsel %vm5549, %v5533, %v5066
          %v5567 = vsel %vm5549, %v5534, %v5068
          %v5568 = vsel %vm5549, %v5535, %v5070
          %v5569 = vsel %vm5549, %v5536, %v5072
          %v5570 = vsel %vm5549, %v5537, %v5074
          %v5571 = vsel %vm5549, %v5538, %v5076
          %v5572 = vsel %vm5549, %v5539, %v5078
          %v5573 = vsel %vm5549, %v5540, %v5080
          %v5574 = vsel %vm5549, %v5541, %v5082
          %v5575 = vsel %vm5549, %v5542, %v5084
          %v5576 = vsel %vm5549, %v5543, %v5086
          %v5577 = vsel %vm5549, %v5544, %v5088
          %v5578 = vsel %vm5549, %v5545, %v5090
          %v5579 = vsel %vm5549, %v5546, %v5092
          %v5580 = vsel %vm5549, %v5547, %v5094
          %v5581 = vsel %vm5549, %v5548, %v5096
          %vm5582 = vcmask 228352
          %v5583 = vsel %vm5582, %v5550, %v5162
          %v5584 = vsel %vm5582, %v5551, %v5164
          %v5585 = vsel %vm5582, %v5552, %v5166
          %v5586 = vsel %vm5582, %v5553, %v5168
          %v5587 = vsel %vm5582, %v5554, %v5170
          %v5588 = vsel %vm5582, %v5555, %v5172
          %v5589 = vsel %vm5582, %v5556, %v5174
          %v5590 = vsel %vm5582, %v5557, %v5176
          %v5591 = vsel %vm5582, %v5558, %v5178
          %v5592 = vsel %vm5582, %v5559, %v5180
          %v5593 = vsel %vm5582, %v5560, %v5182
          %v5594 = vsel %vm5582, %v5561, %v5184
          %v5595 = vsel %vm5582, %v5562, %v5186
          %v5596 = vsel %vm5582, %v5563, %v5188
          %v5597 = vsel %vm5582, %v5564, %v5190
          %v5598 = vsel %vm5582, %v5565, %v5192
          %v5599 = vsel %vm5582, %v5566, %v5194
          %v5600 = vsel %vm5582, %v5567, %v5196
          %v5601 = vsel %vm5582, %v5568, %v5198
          %v5602 = vsel %vm5582, %v5569, %v5200
          %v5603 = vsel %vm5582, %v5570, %v5202
          %v5604 = vsel %vm5582, %v5571, %v5204
          %v5605 = vsel %vm5582, %v5572, %v5206
          %v5606 = vsel %vm5582, %v5573, %v5208
          %v5607 = vsel %vm5582, %v5574, %v5210
          %v5608 = vsel %vm5582, %v5575, %v5212
          %v5609 = vsel %vm5582, %v5576, %v5214
          %v5610 = vsel %vm5582, %v5577, %v5216
          %v5611 = vsel %vm5582, %v5578, %v5218
          %v5612 = vsel %vm5582, %v5579, %v5220
          %v5613 = vsel %vm5582, %v5580, %v5222
          %v5614 = vsel %vm5582, %v5581, %v5224
          %vm5615 = vcmask 261120
          %v5616 = vsel %vm5615, %v5583, %v5290
          %v5617 = vsel %vm5615, %v5584, %v5292
          %v5618 = vsel %vm5615, %v5585, %v5294
          %v5619 = vsel %vm5615, %v5586, %v5296
          %v5620 = vsel %vm5615, %v5587, %v5298
          %v5621 = vsel %vm5615, %v5588, %v5300
          %v5622 = vsel %vm5615, %v5589, %v5302
          %v5623 = vsel %vm5615, %v5590, %v5304
          %v5624 = vsel %vm5615, %v5591, %v5306
          %v5625 = vsel %vm5615, %v5592, %v5308
          %v5626 = vsel %vm5615, %v5593, %v5310
          %v5627 = vsel %vm5615, %v5594, %v5312
          %v5628 = vsel %vm5615, %v5595, %v5314
          %v5629 = vsel %vm5615, %v5596, %v5316
          %v5630 = vsel %vm5615, %v5597, %v5318
          %v5631 = vsel %vm5615, %v5598, %v5320
          %v5632 = vsel %vm5615, %v5599, %v5322
          %v5633 = vsel %vm5615, %v5600, %v5324
          %v5634 = vsel %vm5615, %v5601, %v5326
          %v5635 = vsel %vm5615, %v5602, %v5328
          %v5636 = vsel %vm5615, %v5603, %v5330
          %v5637 = vsel %vm5615, %v5604, %v5332
          %v5638 = vsel %vm5615, %v5605, %v5334
          %v5639 = vsel %vm5615, %v5606, %v5336
          %v5640 = vsel %vm5615, %v5607, %v5338
          %v5641 = vsel %vm5615, %v5608, %v5340
          %v5642 = vsel %vm5615, %v5609, %v5342
          %v5643 = vsel %vm5615, %v5610, %v5344
          %v5644 = vsel %vm5615, %v5611, %v5346
          %v5645 = vsel %vm5615, %v5612, %v5348
          %v5646 = vsel %vm5615, %v5613, %v5350
          %v5647 = vsel %vm5615, %v5614, %v5352
          %vm5648 = vcmask 293888
          %v5649 = vsel %vm5648, %v5616, 0.0
          %v5650 = vsel %vm5648, %v5617, 0.0
          %v5651 = vsel %vm5648, %v5618, 0.0
          %v5652 = vsel %vm5648, %v5619, 0.0
          %v5653 = vsel %vm5648, %v5620, 0.0
          %v5654 = vsel %vm5648, %v5621, 0.0
          %v5655 = vsel %vm5648, %v5622, 0.0
          %v5656 = vsel %vm5648, %v5623, 0.0
          %v5657 = vsel %vm5648, %v5624, 0.0
          %v5658 = vsel %vm5648, %v5625, 0.0
          %v5659 = vsel %vm5648, %v5626, 0.0
          %v5660 = vsel %vm5648, %v5627, 0.0
          %v5661 = vsel %vm5648, %v5628, 0.0
          %v5662 = vsel %vm5648, %v5629, 0.0
          %v5663 = vsel %vm5648, %v5630, 0.0
          %v5664 = vsel %vm5648, %v5631, 0.0
          %v5665 = vsel %vm5648, %v5632, 0.0
          %v5666 = vsel %vm5648, %v5633, 0.0
          %v5667 = vsel %vm5648, %v5634, 0.0
          %v5668 = vsel %vm5648, %v5635, 0.0
          %v5669 = vsel %vm5648, %v5636, 0.0
          %v5670 = vsel %vm5648, %v5637, 0.0
          %v5671 = vsel %vm5648, %v5638, 0.0
          %v5672 = vsel %vm5648, %v5639, 0.0
          %v5673 = vsel %vm5648, %v5640, 0.0
          %v5674 = vsel %vm5648, %v5641, 0.0
          %v5675 = vsel %vm5648, %v5642, 0.0
          %v5676 = vsel %vm5648, %v5643, 0.0
          %v5677 = vsel %vm5648, %v5644, 0.0
          %v5678 = vsel %vm5648, %v5645, 0.0
          %v5679 = vsel %vm5648, %v5646, 0.0
          %v5680 = vsel %vm5648, %v5647, 0.0
          %v5681 = vld [vmem:[%s1] sm:$0xff]
          %v5682 = vld [vmem:[%s1 + $0x8] sm:$0xff]
          %v5683 = vld [vmem:[%s1 + $0x10] sm:$0xff]
          %v5684 = vld [vmem:[%s1 + $0x18] sm:$0xff]
          %v5685 = vld [vmem:[%s1 + $0x20] sm:$0xff]
          %v5686 = vld [vmem:[%s1 + $0x28] sm:$0xff]
          %v5687 = vld [vmem:[%s1 + $0x30] sm:$0xff]
          %v5688 = vld [vmem:[%s1 + $0x38] sm:$0xff]
          %v5689 = vld [vmem:[%s1 + $0x40] sm:$0xff]
          %v5690 = vld [vmem:[%s1 + $0x48] sm:$0xff]
          %v5691 = vld [vmem:[%s1 + $0x50] sm:$0xff]
          %v5692 = vld [vmem:[%s1 + $0x58] sm:$0xff]
          %v5693 = vld [vmem:[%s1 + $0x60] sm:$0xff]
          %v5694 = vld [vmem:[%s1 + $0x68] sm:$0xff]
          %v5695 = vld [vmem:[%s1 + $0x70] sm:$0xff]
          %v5696 = vld [vmem:[%s1 + $0x78] sm:$0xff]
          %5697 = vmatprep.subr.mxu0 0.0
          %5698 = vmatpush1.msra.mxu0 %v5696
          %5699 = vmatprep.subr.mxu0 0.0
          %5700 = vmatpush1.msra.mxu0 %v5695
          %5701 = vmatprep.subr.mxu0 0.0
          %5702 = vmatpush1.msra.mxu0 %v5694
          %5703 = vmatprep.subr.mxu0 0.0
          %5704 = vmatpush1.msra.mxu0 %v5693
          %5705 = vmatprep.subr.mxu0 0.0
          %5706 = vmatpush1.msra.mxu0 %v5692
          %5707 = vmatprep.subr.mxu0 0.0
          %5708 = vmatpush1.msra.mxu0 %v5691
          %5709 = vmatprep.subr.mxu0 0.0
          %5710 = vmatpush1.msra.mxu0 %v5690
          %5711 = vmatprep.subr.mxu0 0.0
          %5712 = vmatpush1.msra.mxu0 %v5689
          %5713 = vmatprep.subr.mxu0 0.0
          %5714 = vmatpush1.msra.mxu0 %v5688
          %5715 = vmatprep.subr.mxu0 0.0
          %5716 = vmatpush1.msra.mxu0 %v5687
          %5717 = vmatprep.subr.mxu0 0.0
          %5718 = vmatpush1.msra.mxu0 %v5686
          %5719 = vmatprep.subr.mxu0 0.0
          %5720 = vmatpush1.msra.mxu0 %v5685
          %5721 = vmatprep.subr.mxu0 0.0
          %5722 = vmatpush1.msra.mxu0 %v5684
          %5723 = vmatprep.subr.mxu0 0.0
          %5724 = vmatpush1.msra.mxu0 %v5683
          %5725 = vmatprep.subr.mxu0 0.0
          %5726 = vmatpush1.msra.mxu0 %v5682
          %5727 = vmatprep.subr.mxu0 0.0
          %5728 = vmatpush1.msra.mxu0 %v5681
          %5729 = vmatprep.subr.mxu0 0.0
          %5730 = vmatpush2.msra.mxu0 0.0
          %5731 = vmatprep.subr.mxu0 0.0
          %5732 = vmatpush2.msra.mxu0 0.0
          %5733 = vmatprep.subr.mxu0 0.0
          %5734 = vmatpush2.msra.mxu0 0.0
          %5735 = vmatprep.subr.mxu0 0.0
          %5736 = vmatpush2.msra.mxu0 0.0
          %5737 = vmatprep.subr.mxu0 0.0
          %5738 = vmatpush2.msra.mxu0 0.0
          %5739 = vmatprep.subr.mxu0 0.0
          %5740 = vmatpush2.msra.mxu0 0.0
          %5741 = vmatprep.subr.mxu0 0.0
          %5742 = vmatpush2.msra.mxu0 0.0
          %5743 = vmatprep.subr.mxu0 0.0
          %5744 = vmatpush2.msra.mxu0 0.0
          %5745 = vmatprep.subr.mxu0 0.0
          %5746 = vmatpush2.msra.mxu0 0.0
          %5747 = vmatprep.subr.mxu0 0.0
          %5748 = vmatpush2.msra.mxu0 0.0
          %5749 = vmatprep.subr.mxu0 0.0
          %5750 = vmatpush2.msra.mxu0 0.0
          %5751 = vmatprep.subr.mxu0 0.0
          %5752 = vmatpush2.msra.mxu0 0.0
          %5753 = vmatprep.subr.mxu0 0.0
          %5754 = vmatpush2.msra.mxu0 0.0
          %5755 = vmatprep.subr.mxu0 0.0
          %5756 = vmatpush2.msra.mxu0 0.0
          %5757 = vmatprep.subr.mxu0 0.0
          %5758 = vmatpush2.msra.mxu0 0.0
          %5759 = vmatprep.subr.mxu0 0.0
          %5760 = vmatpush2.msra.mxu0 0.0
          %5761 = vmatprep.mubr.f32.mxu0 0.0
          %5762 = vmatmul.mubr.f32.gmra.mxu0 %v5649
          %v5763 = vpop.f32.mrf.mxu0
          %v5764 = vadd.f32 0.0, %v5763
          %v5765 = vpop.f32.mrf.mxu0
          %5766 = vmatprep.mubr.f32.mxu0 0.0
          %5767 = vmatmul.mubr.f32.gmra.mxu0 %v5650
          %v5768 = vpop.f32.mrf.mxu0
          %v5769 = vadd.f32 0.0, %v5768
          %v5770 = vpop.f32.mrf.mxu0
          %5771 = vmatprep.mubr.f32.mxu0 0.0
          %5772 = vmatmul.mubr.f32.gmra.mxu0 %v5651
          %v5773 = vpop.f32.mrf.mxu0
          %v5774 = vadd.f32 0.0, %v5773
          %v5775 = vpop.f32.mrf.mxu0
          %5776 = vmatprep.mubr.f32.mxu0 0.0
          %5777 = vmatmul.mubr.f32.gmra.mxu0 %v5652
          %v5778 = vpop.f32.mrf.mxu0
          %v5779 = vadd.f32 0.0, %v5778
          %v5780 = vpop.f32.mrf.mxu0
          %5781 = vmatprep.mubr.f32.mxu0 0.0
          %5782 = vmatmul.mubr.f32.gmra.mxu0 %v5653
          %v5783 = vpop.f32.mrf.mxu0
          %v5784 = vadd.f32 0.0, %v5783
          %v5785 = vpop.f32.mrf.mxu0
          %5786 = vmatprep.mubr.f32.mxu0 0.0
          %5787 = vmatmul.mubr.f32.gmra.mxu0 %v5654
          %v5788 = vpop.f32.mrf.mxu0
          %v5789 = vadd.f32 0.0, %v5788
          %v5790 = vpop.f32.mrf.mxu0
          %5791 = vmatprep.mubr.f32.mxu0 0.0
          %5792 = vmatmul.mubr.f32.gmra.mxu0 %v5655
          %v5793 = vpop.f32.mrf.mxu0
          %v5794 = vadd.f32 0.0, %v5793
          %v5795 = vpop.f32.mrf.mxu0
          %5796 = vmatprep.mubr.f32.mxu0 0.0
          %5797 = vmatmul.mubr.f32.gmra.mxu0 %v5656
          %v5798 = vpop.f32.mrf.mxu0
          %v5799 = vadd.f32 0.0, %v5798
          %v5800 = vpop.f32.mrf.mxu0
          %5801 = vmatprep.mubr.f32.mxu0 0.0
          %5802 = vmatmul.mubr.f32.gmra.mxu0 %v5657
          %v5803 = vpop.f32.mrf.mxu0
          %v5804 = vadd.f32 0.0, %v5803
          %v5805 = vpop.f32.mrf.mxu0
          %5806 = vmatprep.mubr.f32.mxu0 0.0
          %5807 = vmatmul.mubr.f32.gmra.mxu0 %v5658
          %v5808 = vpop.f32.mrf.mxu0
          %v5809 = vadd.f32 0.0, %v5808
          %v5810 = vpop.f32.mrf.mxu0
          %5811 = vmatprep.mubr.f32.mxu0 0.0
          %5812 = vmatmul.mubr.f32.gmra.mxu0 %v5659
          %v5813 = vpop.f32.mrf.mxu0
          %v5814 = vadd.f32 0.0, %v5813
          %v5815 = vpop.f32.mrf.mxu0
          %5816 = vmatprep.mubr.f32.mxu0 0.0
          %5817 = vmatmul.mubr.f32.gmra.mxu0 %v5660
          %v5818 = vpop.f32.mrf.mxu0
          %v5819 = vadd.f32 0.0, %v5818
          %v5820 = vpop.f32.mrf.mxu0
          %5821 = vmatprep.mubr.f32.mxu0 0.0
          %5822 = vmatmul.mubr.f32.gmra.mxu0 %v5661
          %v5823 = vpop.f32.mrf.mxu0
          %v5824 = vadd.f32 0.0, %v5823
          %v5825 = vpop.f32.mrf.mxu0
          %5826 = vmatprep.mubr.f32.mxu0 0.0
          %5827 = vmatmul.mubr.f32.gmra.mxu0 %v5662
          %v5828 = vpop.f32.mrf.mxu0
          %v5829 = vadd.f32 0.0, %v5828
          %v5830 = vpop.f32.mrf.mxu0
          %5831 = vmatprep.mubr.f32.mxu0 0.0
          %5832 = vmatmul.mubr.f32.gmra.mxu0 %v5663
          %v5833 = vpop.f32.mrf.mxu0
          %v5834 = vadd.f32 0.0, %v5833
          %v5835 = vpop.f32.mrf.mxu0
          %5836 = vmatprep.mubr.f32.mxu0 0.0
          %5837 = vmatmul.mubr.f32.gmra.mxu0 %v5664
          %v5838 = vpop.f32.mrf.mxu0
          %v5839 = vadd.f32 0.0, %v5838
          %v5840 = vpop.f32.mrf.mxu0
          %5841 = vmatprep.mubr.f32.mxu0 0.0
          %5842 = vmatmul.mubr.f32.gmra.mxu0 %v5665
          %v5843 = vpop.f32.mrf.mxu0
          %v5844 = vadd.f32 0.0, %v5843
          %v5845 = vpop.f32.mrf.mxu0
          %5846 = vmatprep.mubr.f32.mxu0 0.0
          %5847 = vmatmul.mubr.f32.gmra.mxu0 %v5666
          %v5848 = vpop.f32.mrf.mxu0
          %v5849 = vadd.f32 0.0, %v5848
          %v5850 = vpop.f32.mrf.mxu0
          %5851 = vmatprep.mubr.f32.mxu0 0.0
          %5852 = vmatmul.mubr.f32.gmra.mxu0 %v5667
          %v5853 = vpop.f32.mrf.mxu0
          %v5854 = vadd.f32 0.0, %v5853
          %v5855 = vpop.f32.mrf.mxu0
          %5856 = vmatprep.mubr.f32.mxu0 0.0
          %5857 = vmatmul.mubr.f32.gmra.mxu0 %v5668
          %v5858 = vpop.f32.mrf.mxu0
          %v5859 = vadd.f32 0.0, %v5858
          %v5860 = vpop.f32.mrf.mxu0
          %5861 = vmatprep.mubr.f32.mxu0 0.0
          %5862 = vmatmul.mubr.f32.gmra.mxu0 %v5669
          %v5863 = vpop.f32.mrf.mxu0
          %v5864 = vadd.f32 0.0, %v5863
          %v5865 = vpop.f32.mrf.mxu0
          %5866 = vmatprep.mubr.f32.mxu0 0.0
          %5867 = vmatmul.mubr.f32.gmra.mxu0 %v5670
          %v5868 = vpop.f32.mrf.mxu0
          %v5869 = vadd.f32 0.0, %v5868
          %v5870 = vpop.f32.mrf.mxu0
          %5871 = vmatprep.mubr.f32.mxu0 0.0
          %5872 = vmatmul.mubr.f32.gmra.mxu0 %v5671
          %v5873 = vpop.f32.mrf.mxu0
          %v5874 = vadd.f32 0.0, %v5873
          %v5875 = vpop.f32.mrf.mxu0
          %5876 = vmatprep.mubr.f32.mxu0 0.0
          %5877 = vmatmul.mubr.f32.gmra.mxu0 %v5672
          %v5878 = vpop.f32.mrf.mxu0
          %v5879 = vadd.f32 0.0, %v5878
          %v5880 = vpop.f32.mrf.mxu0
          %5881 = vmatprep.mubr.f32.mxu0 0.0
          %5882 = vmatmul.mubr.f32.gmra.mxu0 %v5673
          %v5883 = vpop.f32.mrf.mxu0
          %v5884 = vadd.f32 0.0, %v5883
          %v5885 = vpop.f32.mrf.mxu0
          %5886 = vmatprep.mubr.f32.mxu0 0.0
          %5887 = vmatmul.mubr.f32.gmra.mxu0 %v5674
          %v5888 = vpop.f32.mrf.mxu0
          %v5889 = vadd.f32 0.0, %v5888
          %v5890 = vpop.f32.mrf.mxu0
          %5891 = vmatprep.mubr.f32.mxu0 0.0
          %5892 = vmatmul.mubr.f32.gmra.mxu0 %v5675
          %v5893 = vpop.f32.mrf.mxu0
          %v5894 = vadd.f32 0.0, %v5893
          %v5895 = vpop.f32.mrf.mxu0
          %5896 = vmatprep.mubr.f32.mxu0 0.0
          %5897 = vmatmul.mubr.f32.gmra.mxu0 %v5676
          %v5898 = vpop.f32.mrf.mxu0
          %v5899 = vadd.f32 0.0, %v5898
          %v5900 = vpop.f32.mrf.mxu0
          %5901 = vmatprep.mubr.f32.mxu0 0.0
          %5902 = vmatmul.mubr.f32.gmra.mxu0 %v5677
          %v5903 = vpop.f32.mrf.mxu0
          %v5904 = vadd.f32 0.0, %v5903
          %v5905 = vpop.f32.mrf.mxu0
          %5906 = vmatprep.mubr.f32.mxu0 0.0
          %5907 = vmatmul.mubr.f32.gmra.mxu0 %v5678
          %v5908 = vpop.f32.mrf.mxu0
          %v5909 = vadd.f32 0.0, %v5908
          %v5910 = vpop.f32.mrf.mxu0
          %5911 = vmatprep.mubr.f32.mxu0 0.0
          %5912 = vmatmul.mubr.f32.gmra.mxu0 %v5679
          %v5913 = vpop.f32.mrf.mxu0
          %v5914 = vadd.f32 0.0, %v5913
          %v5915 = vpop.f32.mrf.mxu0
          %5916 = vmatprep.mubr.f32.mxu0 0.0
          %5917 = vmatmul.mubr.f32.gmra.mxu0 %v5680
          %v5918 = vpop.f32.mrf.mxu0
          %v5919 = vadd.f32 0.0, %v5918
          %v5920 = vpop.f32.mrf.mxu0
          %5921 = vdwg.mxu0
          %5922 = vst [vmem:[%s160] sm:$0xff] %v5764
          %5923 = vst [vmem:[%s160 + $0x8] sm:$0xff] %v5769
          %5924 = vst [vmem:[%s160 + $0x10] sm:$0xff] %v5774
          %5925 = vst [vmem:[%s160 + $0x18] sm:$0xff] %v5779
          %5926 = vst [vmem:[%s160 + $0x20] sm:$0xff] %v5784
          %5927 = vst [vmem:[%s160 + $0x28] sm:$0xff] %v5789
          %5928 = vst [vmem:[%s160 + $0x30] sm:$0xff] %v5794
          %5929 = vst [vmem:[%s160 + $0x38] sm:$0xff] %v5799
          %5930 = vst [vmem:[%s160 + $0x40] sm:$0xff] %v5804
          %5931 = vst [vmem:[%s160 + $0x48] sm:$0xff] %v5809
          %5932 = vst [vmem:[%s160 + $0x50] sm:$0xff] %v5814
          %5933 = vst [vmem:[%s160 + $0x58] sm:$0xff] %v5819
          %5934 = vst [vmem:[%s160 + $0x60] sm:$0xff] %v5824
          %5935 = vst [vmem:[%s160 + $0x68] sm:$0xff] %v5829
          %5936 = vst [vmem:[%s160 + $0x70] sm:$0xff] %v5834
          %5937 = vst [vmem:[%s160 + $0x78] sm:$0xff] %v5839
          %5938 = vst [vmem:[%s160 + $0x80] sm:$0xff] %v5844
          %5939 = vst [vmem:[%s160 + $0x88] sm:$0xff] %v5849
          %5940 = vst [vmem:[%s160 + $0x90] sm:$0xff] %v5854
          %5941 = vst [vmem:[%s160 + $0x98] sm:$0xff] %v5859
          %5942 = vst [vmem:[%s160 + $0xa0] sm:$0xff] %v5864
          %5943 = vst [vmem:[%s160 + $0xa8] sm:$0xff] %v5869
          %5944 = vst [vmem:[%s160 + $0xb0] sm:$0xff] %v5874
          %5945 = vst [vmem:[%s160 + $0xb8] sm:$0xff] %v5879
          %5946 = vst [vmem:[%s160 + $0xc0] sm:$0xff] %v5884
          %5947 = vst [vmem:[%s160 + $0xc8] sm:$0xff] %v5889
          %5948 = vst [vmem:[%s160 + $0xd0] sm:$0xff] %v5894
          %5949 = vst [vmem:[%s160 + $0xd8] sm:$0xff] %v5899
          %5950 = vst [vmem:[%s160 + $0xe0] sm:$0xff] %v5904
          %5951 = vst [vmem:[%s160 + $0xe8] sm:$0xff] %v5909
          %5952 = vst [vmem:[%s160 + $0xf0] sm:$0xff] %v5914
          %5953 = vst [vmem:[%s160 + $0xf8] sm:$0xff] %v5919
        $region40: #{tpu_custom_call.1} parent=27 // pred_fallthru
          _
        %s5954 = sand.u32 %s87, 1
        %s5955 = scalar_lea.sflag [#allocation4], %s5954
        %s5956 = sand.u32 %s87, 1
        %s5957 = smul.addr %s5956, 256
        %s5958 = scalar_lea.vmem [#allocation3], %s5957
        // Predicated region
        $region41: #{tpu_custom_call.1} parent=27 // pred_check
          %p5959 = pneg %p97
        $region42: #{tpu_custom_call.1} parent=27 // pred_check_branch
          %5961 = sbr.rel (%p5959) target = $region44
        $region43: #{tpu_custom_call.1} parent=27 // pred_region
          %s5963 = ssub.s32 4096, 4096
          %5964 = vsyncadd %s5955, %s5963
          %s5965 = smul.addr %s21, 32
          %s5966 = smul.addr %s20, 96
          %s5967 = sadd.s32 %s5965, %s5966
          %s5968 = smul.addr %s5967, 128
          %s5969 = scalar_lea.hbm %s2, %s5968
          %s5970 = sshll.u32 %s5958, 4
          %s5971 = int_to_ptr.vmem [resolvable:$true] %s5970
          %5976 = dma.vmem_to_hbm [thread:$0]  %s5971, 4096, %s5969, %s5955, 128, 128, 8
        $region44: #{tpu_custom_call.1} parent=27 // pred_fallthru
          _
      $region28: #{tpu_custom_call.1} parent=5 // pred_fallthru
        _
      %p5977 = scmp.le.s32.totalorder 2, %s11
      // Predicated region
      $region45: #{tpu_custom_call.1} parent=5 // pred_check
        %p5978 = pneg %p5977
      $region46: #{tpu_custom_call.1} parent=5 // pred_check_branch
        %5980 = sbr.rel (%p5978) target = $region48
      $region47: #{tpu_custom_call.1} parent=5 // pred_region
        %s5981 = ssub.s32 %s11, 2
        // Predicated region
        $region49: #{tpu_custom_call.1} parent=47 // pred_check
          %p5982 = pneg %p103
        $region50: #{tpu_custom_call.1} parent=47 // pred_check_branch
          %5984 = sbr.rel (%p5982) target = $region52
        $region51: #{tpu_custom_call.1} parent=47 // pred_region
          %s5985 = sand.u32 %s88, 1
          %s5986 = scalar_lea.sflag [#allocation4], %s5985
          %s5987 = sand.u32 %s88, 1
          %s5988 = smul.addr %s5987, 256
          %s5989 = scalar_lea.vmem [#allocation3], %s5988
          %5990 = dma.done %s5986, 4096
        $region52: #{tpu_custom_call.1} parent=47 // pred_fallthru
          _
      $region48: #{tpu_custom_call.1} parent=5 // pred_fallthru
        _
    $region6: #{tpu_custom_call.1} parent=1 // loop_footer
      %s15 = sadd.s32 1, %s11
    $region7: #{tpu_custom_call.1} parent=1 // loop_footer_branch
      %10 = sbr.rel target = $region3
    $region8: #{tpu_custom_call.1} parent=1 // loop_exit
      _
    %5991 = vsyncpa [#allocation4], 1
    %s5992 = scalar_lea.sflag [#allocation4], 1
    %5993 = vsyncpa %s5992, 1

</llo_original>
